<compile_context>
chip_gen: v7x
topology: tpu7x:2x2x1
jax: 0.10.0
libtpu: 0.0.40
codegen_flags: <defaults>
</compile_context>

<pallas_src>
import functools

import jax
import jax.numpy as jnp
from jax.experimental import pallas as pl
from jax.experimental.pallas import tpu as pltpu

_BN_EPS = 1e-5


# --------------------------------------------------------------------------
# Pallas kernels (all refs are 2-D VMEM tiles; batch dim squeezed via grid)
# --------------------------------------------------------------------------
def _conv_kernel(x_ref, w_ref, b_ref, o_ref):
    # (M, K) @ (K, Co) + bias, ReLU.  bf16 operands, f32 accumulate.
    acc = jnp.dot(x_ref[...], w_ref[...], preferred_element_type=jnp.float32)
    o_ref[...] = jnp.maximum(acc + b_ref[...], 0.0).astype(o_ref.dtype)


def _conv_add_kernel(x_ref, w_ref, b_ref, r_ref, o_ref):
    # conv2 + folded-BN bias + identity residual + ReLU.
    acc = jnp.dot(x_ref[...], w_ref[...], preferred_element_type=jnp.float32)
    acc = acc + b_ref[...] + r_ref[...].astype(jnp.float32)
    o_ref[...] = jnp.maximum(acc, 0.0).astype(o_ref.dtype)


def _conv_proj_add_kernel(x_ref, w_ref, b_ref, xs_ref, ws_ref, bs_ref, o_ref):
    # conv2 + folded-BN bias + (fused 1x1 projection shortcut + BN) + ReLU.
    acc = jnp.dot(x_ref[...], w_ref[...], preferred_element_type=jnp.float32)
    sc = jnp.dot(xs_ref[...], ws_ref[...], preferred_element_type=jnp.float32)
    acc = acc + b_ref[...] + sc + bs_ref[...]
    o_ref[...] = jnp.maximum(acc, 0.0).astype(o_ref.dtype)


def _head_kernel(x_ref, w_ref, b_ref, o_ref):
    # Global average pool over spatial axis, then Linear.
    pooled = jnp.mean(x_ref[...].astype(jnp.float32), axis=1)        # (N, C)
    o_ref[...] = jnp.dot(pooled, w_ref[...],
                         preferred_element_type=jnp.float32) + b_ref[...]


# --------------------------------------------------------------------------
# pallas_call wrappers
# --------------------------------------------------------------------------
def _pcall(kernel, args, in_specs, n, m, co):
    """Batch-parallel fused matmul call; output (N, M, Co) in bf16."""
    return pl.pallas_call(
        kernel,
        out_shape=jax.ShapeDtypeStruct((n, m, co), jnp.bfloat16),
        grid=(n,),
        in_specs=in_specs,
        out_specs=pl.BlockSpec((None, m, co), lambda i: (i, 0, 0)),
        compiler_params=pltpu.CompilerParams(
            dimension_semantics=("parallel",)),
    )(*args)


def _im2col(x, kh, kw, stride, pad):
    """(N,H,W,C) -> (N, Ho*Wo, kh*kw*C) bf16 patch matrix (runs in XLA/jit)."""
    n, h, w, c = x.shape
    xp = jnp.pad(x, ((0, 0), (pad, pad), (pad, pad), (0, 0)))
    ho = (h + 2 * pad - kh) // stride + 1
    wo = (w + 2 * pad - kw) // stride + 1
    cols = [xp[:, i:i + stride * ho:stride, j:j + stride * wo:stride, :]
            for i in range(kh) for j in range(kw)]
    patches = jnp.stack(cols, axis=-2)               # (N, Ho, Wo, kh*kw, C)
    return patches.reshape(n, ho * wo, kh * kw * c), ho, wo


def conv_bn_relu_pallas(x, w2d, b, *, stride):
    """3x3 conv (pad=1, BN folded into w2d) + bias + ReLU."""
    n = x.shape[0]
    co = w2d.shape[-1]
    patches, ho, wo = _im2col(x, 3, 3, stride, 1)
    m, k = patches.shape[1], patches.shape[2]
    out = _pcall(
        _conv_kernel,
        [patches, w2d, b],
        [pl.BlockSpec((None, m, k), lambda i: (i, 0, 0)),
         pl.BlockSpec((k, co), lambda i: (0, 0)),
         pl.BlockSpec((1, co), lambda i: (0, 0))],
        n, m, co)
    return out.reshape(n, ho, wo, co)


def basic_block_pallas(x, bp):
    """BasicBlock: conv1+bn1+relu (1 call), conv2+bn2+shortcut+relu (1 call)."""
    n, h, w, cin = x.shape
    stride = bp["stride"]
    out1 = conv_bn_relu_pallas(x, bp["w1"], bp["b1"], stride=stride)
    _, ho, wo, co = out1.shape
    m = ho * wo

    p2, _, _ = _im2col(out1, 3, 3, 1, 1)             # (N, M, 9*Co)
    k2 = p2.shape[-1]

    if "ws" in bp:
        # 1x1 stride-s projection shortcut: subsample spatially (exact for
        # a 1x1 conv) and fuse the (M,Cin)@(Cin,Co) matmul into the kernel.
        xs = x[:, ::stride, ::stride, :].reshape(n, m, cin)
        out = _pcall(
            _conv_proj_add_kernel,
            [p2, bp["w2"], bp["b2"], xs, bp["ws"], bp["bs"]],
            [pl.BlockSpec((None, m, k2), lambda i: (i, 0, 0)),
             pl.BlockSpec((k2, co), lambda i: (0, 0)),
             pl.BlockSpec((1, co), lambda i: (0, 0)),
             pl.BlockSpec((None, m, cin), lambda i: (i, 0, 0)),
             pl.BlockSpec((cin, co), lambda i: (0, 0)),
             pl.BlockSpec((1, co), lambda i: (0, 0))],
            n, m, co)
    else:
        res = x.reshape(n, m, co)                    # identity shortcut (bf16)
        out = _pcall(
            _conv_add_kernel,
            [p2, bp["w2"], bp["b2"], res],
            [pl.BlockSpec((None, m, k2), lambda i: (i, 0, 0)),
             pl.BlockSpec((k2, co), lambda i: (0, 0)),
             pl.BlockSpec((1, co), lambda i: (0, 0)),
             pl.BlockSpec((None, m, co), lambda i: (i, 0, 0))],
            n, m, co)
    return out.reshape(n, ho, wo, co)


def head_pallas(x, w, b):
    n, h, ww, c = x.shape
    nc = w.shape[-1]
    x3 = x.reshape(n, h * ww, c)
    return pl.pallas_call(
        _head_kernel,
        out_shape=jax.ShapeDtypeStruct((n, nc), jnp.float32),
    )(x3, w, b)


# --------------------------------------------------------------------------
# Parameters: deterministic synthetic init (PyTorch layouts), then folding
# --------------------------------------------------------------------------
def init_params(key, num_blocks=(1, 1, 1), num_classes=10):
    keys = iter(jax.random.split(key, 128))

    def conv_w(cout, cin, k):
        return 0.1 * jax.random.normal(next(keys), (cout, cin, k, k),
                                       jnp.float32)

    def bn(c):
        gamma = 1.0 + 0.1 * jax.random.normal(next(keys), (c,), jnp.float32)
        beta = 0.1 * jax.random.normal(next(keys), (c,), jnp.float32)
        # Eval-mode fold with running_mean=0, running_var=1 (fresh BatchNorm2d)
        scale = gamma / jnp.sqrt(1.0 + _BN_EPS)
        bias = beta
        return scale, bias

    params = {"conv1_w": conv_w(16, 3, 3)}
    params["bn1_s"], params["bn1_b"] = bn(16)

    layers = []
    in_c = 16
    for out_c, nb, stride0 in ((16, num_blocks[0], 1),
                               (32, num_blocks[1], 2),
                               (64, num_blocks[2], 2)):
        blocks = []
        for bi in range(nb):
            stride = stride0 if bi == 0 else 1
            bp = {"stride": stride,
                  "w1": conv_w(out_c, in_c, 3),
                  "w2": conv_w(out_c, out_c, 3)}
            bp["s1"], bp["b1"] = bn(out_c)
            bp["s2"], bp["b2"] = bn(out_c)
            if stride != 1 or in_c != out_c:
                bp["ws"] = conv_w(out_c, in_c, 1)
                bp["ss"], bp["bs"] = bn(out_c)
            blocks.append(bp)
            in_c = out_c
        layers.append(blocks)
    params["layers"] = layers
    params["lin_w"] = 0.1 * jax.random.normal(next(keys), (64, num_classes),
                                              jnp.float32)
    params["lin_b"] = 0.1 * jax.random.normal(next(keys), (num_classes,),
                                              jnp.float32)
    return params


def prepare_params(params):
    """Fold BN scale into conv weights, convert layouts, cast to bf16."""
    def fold(w_oihw, scale, bias):
        co, cin, kh, kw = w_oihw.shape
        w2d = jnp.transpose(w_oihw, (2, 3, 1, 0)).reshape(kh * kw * cin, co)
        return ((w2d * scale[None, :]).astype(jnp.bfloat16),
                bias.reshape(1, co).astype(jnp.float32))

    p = {}
    p["conv1_w"], p["conv1_b"] = fold(params["conv1_w"],
                                      params["bn1_s"], params["bn1_b"])
    layers = []
    for blocks in params["layers"]:
        nblocks = []
        for bp in blocks:
            nbp = {"stride": int(bp["stride"])}
            nbp["w1"], nbp["b1"] = fold(bp["w1"], bp["s1"], bp["b1"])
            nbp["w2"], nbp["b2"] = fold(bp["w2"], bp["s2"], bp["b2"])
            if "ws" in bp:
                nbp["ws"], nbp["bs"] = fold(bp["ws"], bp["ss"], bp["bs"])
            nblocks.append(nbp)
        layers.append(nblocks)
    p["layers"] = layers
    p["lin_w"] = params["lin_w"].astype(jnp.float32)
    p["lin_b"] = params["lin_b"].reshape(1, -1).astype(jnp.float32)
    return p


def make_forward(params):
    """Returns a jitted forward; prepared params are compile-time constants."""
    prepped = prepare_params(params)

    @jax.jit
    def forward(x_nchw):
        # NCHW (PyTorch) -> NHWC, bf16 activations internally.
        x = jnp.transpose(x_nchw, (0, 2, 3, 1)).astype(jnp.bfloat16)
        out = conv_bn_relu_pallas(x, prepped["conv1_w"], prepped["conv1_b"],
                                  stride=1)
        for blocks in prepped["layers"]:
            for bp in blocks:
                out = basic_block_pallas(out, bp)
        return head_pallas(out, prepped["lin_w"], prepped["lin_b"])

    return forward


# --------------------------------------------------------------------------
if __name__ == "__main__":
    key = jax.random.PRNGKey(0)
    pkey, xkey = jax.random.split(key)
    params = init_params(pkey, num_blocks=(1, 1, 1), num_classes=10)
    x = jax.random.normal(xkey, (2, 3, 16, 16), jnp.float32)  # NCHW like torch

    forward = make_forward(params)
    logits = jax.block_until_ready(forward(x))

    assert logits.shape == (2, 10)
    assert bool(jnp.all(jnp.isfinite(logits)))
    print("KERNEL_OK")
</pallas_src>

<mosaic_0001>
module attributes {stable_mosaic.version = 11 : i64} {
  func.func @_conv_kernel(%arg0: i32, %arg1: memref<1x256x27xbf16, #tpu.memory_space<vmem>>, %arg2: memref<27x16xbf16, #tpu.memory_space<vmem>>, %arg3: memref<1x16xf32, #tpu.memory_space<vmem>>, %arg4: memref<1x256x16xbf16, #tpu.memory_space<vmem>>) attributes {dimension_semantics = [#tpu.dimension_semantics<parallel>], iteration_bounds = array<i64: 2>, scalar_prefetch = 0 : i64, scratch_operands = 0 : i64, tpu.core_type = #tpu.core_type<tc>, window_params = [{transform_indices = @transform_0, window_bounds = array<i64: 1, 256, 27>}, {pipeline_mode = #tpu.pipeline_mode<synchronous>, transform_indices = @transform_1, window_bounds = array<i64: 27, 16>}, {pipeline_mode = #tpu.pipeline_mode<synchronous>, transform_indices = @transform_2, window_bounds = array<i64: 1, 16>}, {transform_indices = @transform_3, window_bounds = array<i64: 1, 256, 16>}]} {
    %c0 = arith.constant 0 : index
    %c0_0 = arith.constant 0 : index
    %c0_1 = arith.constant 0 : index
    %0 = vector.load %arg1[%c0, %c0_0, %c0_1] : memref<1x256x27xbf16, #tpu.memory_space<vmem>>, vector<1x256x27xbf16>
    %1 = vector.shape_cast %0 : vector<1x256x27xbf16> to vector<256x27xbf16>
    %c0_2 = arith.constant 0 : index
    %c0_3 = arith.constant 0 : index
    %2 = vector.load %arg2[%c0_2, %c0_3] : memref<27x16xbf16, #tpu.memory_space<vmem>>, vector<27x16xbf16>
    %cst = arith.constant dense<0.000000e+00> : vector<256x16xf32>
    %3 = tpu.matmul %1, %2, %cst {dimension_numbers = #tpu.dot_dimension_numbers<[1], [0], [0], [1], [0, 0, 1, 1], [], []>} : vector<256x27xbf16>, vector<27x16xbf16>, vector<256x16xf32> -> vector<256x16xf32>
    %c0_4 = arith.constant 0 : index
    %c0_5 = arith.constant 0 : index
    %4 = vector.load %arg3[%c0_4, %c0_5] : memref<1x16xf32, #tpu.memory_space<vmem>>, vector<1x16xf32>
    %5 = vector.broadcast %4 : vector<1x16xf32> to vector<256x16xf32>
    %6 = arith.addf %3, %5 : vector<256x16xf32>
    %cst_6 = arith.constant 0.000000e+00 : f32
    %7 = vector.broadcast %cst_6 : f32 to vector<256x16xf32>
    %8 = arith.maximumf %6, %7 : vector<256x16xf32>
    %9 = arith.truncf %8 : vector<256x16xf32> to vector<256x16xbf16>
    %c0_7 = arith.constant 0 : index
    %c0_8 = arith.constant 0 : index
    %c0_9 = arith.constant 0 : index
    %10 = vector.load %arg4[%c0_7, %c0_8, %c0_9] : memref<1x256x16xbf16, #tpu.memory_space<vmem>>, vector<1x256x16xbf16>
    %11 = vector.shape_cast %10 : vector<1x256x16xbf16> to vector<256x16xbf16>
    %12 = vector.shape_cast %9 : vector<256x16xbf16> to vector<1x256x16xbf16>
    tpu.vector_store %arg4[%c0_7, %c0_8, %c0_9], %12 {strides = array<i32>} : memref<1x256x16xbf16, #tpu.memory_space<vmem>>, vector<1x256x16xbf16>,
    return
  }
  func.func @transform_0(%arg0: i32) -> (i32, i32, i32) {
    %c0_i32 = arith.constant 0 : i32
    %c0_i32_0 = arith.constant 0 : i32
    %c0_i32_1 = arith.constant 0 : i32
    return %arg0, %c0_i32, %c0_i32_0 : i32, i32, i32
  }
  func.func @transform_1(%arg0: i32) -> (i32, i32) {
    %c0_i32 = arith.constant 0 : i32
    %c0_i32_0 = arith.constant 0 : i32
    %c0_i32_1 = arith.constant 0 : i32
    return %c0_i32, %c0_i32_0 : i32, i32
  }
  func.func @transform_2(%arg0: i32) -> (i32, i32) {
    %c0_i32 = arith.constant 0 : i32
    %c0_i32_0 = arith.constant 0 : i32
    %c0_i32_1 = arith.constant 0 : i32
    return %c0_i32, %c0_i32_0 : i32, i32
  }
  func.func @transform_3(%arg0: i32) -> (i32, i32, i32) {
    %c0_i32 = arith.constant 0 : i32
    %c0_i32_0 = arith.constant 0 : i32
    %c0_i32_1 = arith.constant 0 : i32
    return %arg0, %c0_i32, %c0_i32_0 : i32, i32, i32
  }
}

module attributes {stable_mosaic.version = 11 : i64} {
  func.func @_conv_kernel(%arg0: i32, %arg1: memref<1x256x144xbf16, #tpu.memory_space<vmem>>, %arg2: memref<144x16xbf16, #tpu.memory_space<vmem>>, %arg3: memref<1x16xf32, #tpu.memory_space<vmem>>, %arg4: memref<1x256x16xbf16, #tpu.memory_space<vmem>>) attributes {dimension_semantics = [#tpu.dimension_semantics<parallel>], iteration_bounds = array<i64: 2>, scalar_prefetch = 0 : i64, scratch_operands = 0 : i64, tpu.core_type = #tpu.core_type<tc>, window_params = [{transform_indices = @transform_0, window_bounds = array<i64: 1, 256, 144>}, {pipeline_mode = #tpu.pipeline_mode<synchronous>, transform_indices = @transform_1, window_bounds = array<i64: 144, 16>}, {pipeline_mode = #tpu.pipeline_mode<synchronous>, transform_indices = @transform_2, window_bounds = array<i64: 1, 16>}, {transform_indices = @transform_3, window_bounds = array<i64: 1, 256, 16>}]} {
    %c0 = arith.constant 0 : index
    %c0_0 = arith.constant 0 : index
    %c0_1 = arith.constant 0 : index
    %0 = vector.load %arg1[%c0, %c0_0, %c0_1] : memref<1x256x144xbf16, #tpu.memory_space<vmem>>, vector<1x256x144xbf16>
    %1 = vector.shape_cast %0 : vector<1x256x144xbf16> to vector<256x144xbf16>
    %c0_2 = arith.constant 0 : index
    %c0_3 = arith.constant 0 : index
    %2 = vector.load %arg2[%c0_2, %c0_3] : memref<144x16xbf16, #tpu.memory_space<vmem>>, vector<144x16xbf16>
    %cst = arith.constant dense<0.000000e+00> : vector<256x16xf32>
    %3 = tpu.matmul %1, %2, %cst {dimension_numbers = #tpu.dot_dimension_numbers<[1], [0], [0], [1], [0, 0, 1, 1], [], []>} : vector<256x144xbf16>, vector<144x16xbf16>, vector<256x16xf32> -> vector<256x16xf32>
    %c0_4 = arith.constant 0 : index
    %c0_5 = arith.constant 0 : index
    %4 = vector.load %arg3[%c0_4, %c0_5] : memref<1x16xf32, #tpu.memory_space<vmem>>, vector<1x16xf32>
    %5 = vector.broadcast %4 : vector<1x16xf32> to vector<256x16xf32>
    %6 = arith.addf %3, %5 : vector<256x16xf32>
    %cst_6 = arith.constant 0.000000e+00 : f32
    %7 = vector.broadcast %cst_6 : f32 to vector<256x16xf32>
    %8 = arith.maximumf %6, %7 : vector<256x16xf32>
    %9 = arith.truncf %8 : vector<256x16xf32> to vector<256x16xbf16>
    %c0_7 = arith.constant 0 : index
    %c0_8 = arith.constant 0 : index
    %c0_9 = arith.constant 0 : index
    %10 = vector.load %arg4[%c0_7, %c0_8, %c0_9] : memref<1x256x16xbf16, #tpu.memory_space<vmem>>, vector<1x256x16xbf16>
    %11 = vector.shape_cast %10 : vector<1x256x16xbf16> to vector<256x16xbf16>
    %12 = vector.shape_cast %9 : vector<256x16xbf16> to vector<1x256x16xbf16>
    tpu.vector_store %arg4[%c0_7, %c0_8, %c0_9], %12 {strides = array<i32>} : memref<1x256x16xbf16, #tpu.memory_space<vmem>>, vector<1x256x16xbf16>,
    return
  }
  func.func @transform_0(%arg0: i32) -> (i32, i32, i32) {
    %c0_i32 = arith.constant 0 : i32
    %c0_i32_0 = arith.constant 0 : i32
    %c0_i32_1 = arith.constant 0 : i32
    return %arg0, %c0_i32, %c0_i32_0 : i32, i32, i32
  }
  func.func @transform_1(%arg0: i32) -> (i32, i32) {
    %c0_i32 = arith.constant 0 : i32
    %c0_i32_0 = arith.constant 0 : i32
    %c0_i32_1 = arith.constant 0 : i32
    return %c0_i32, %c0_i32_0 : i32, i32
  }
  func.func @transform_2(%arg0: i32) -> (i32, i32) {
    %c0_i32 = arith.constant 0 : i32
    %c0_i32_0 = arith.constant 0 : i32
    %c0_i32_1 = arith.constant 0 : i32
    return %c0_i32, %c0_i32_0 : i32, i32
  }
  func.func @transform_3(%arg0: i32) -> (i32, i32, i32) {
    %c0_i32 = arith.constant 0 : i32
    %c0_i32_0 = arith.constant 0 : i32
    %c0_i32_1 = arith.constant 0 : i32
    return %arg0, %c0_i32, %c0_i32_0 : i32, i32, i32
  }
}

module attributes {stable_mosaic.version = 11 : i64} {
  func.func @_conv_add_kernel(%arg0: i32, %arg1: memref<1x256x144xbf16, #tpu.memory_space<vmem>>, %arg2: memref<144x16xbf16, #tpu.memory_space<vmem>>, %arg3: memref<1x16xf32, #tpu.memory_space<vmem>>, %arg4: memref<1x256x16xbf16, #tpu.memory_space<vmem>>, %arg5: memref<1x256x16xbf16, #tpu.memory_space<vmem>>) attributes {dimension_semantics = [#tpu.dimension_semantics<parallel>], iteration_bounds = array<i64: 2>, scalar_prefetch = 0 : i64, scratch_operands = 0 : i64, tpu.core_type = #tpu.core_type<tc>, window_params = [{transform_indices = @transform_0, window_bounds = array<i64: 1, 256, 144>}, {pipeline_mode = #tpu.pipeline_mode<synchronous>, transform_indices = @transform_1, window_bounds = array<i64: 144, 16>}, {pipeline_mode = #tpu.pipeline_mode<synchronous>, transform_indices = @transform_2, window_bounds = array<i64: 1, 16>}, {transform_indices = @transform_3, window_bounds = array<i64: 1, 256, 16>}, {transform_indices = @transform_4, window_bounds = array<i64: 1, 256, 16>}]} {
    %c0 = arith.constant 0 : index
    %c0_0 = arith.constant 0 : index
    %c0_1 = arith.constant 0 : index
    %0 = vector.load %arg1[%c0, %c0_0, %c0_1] : memref<1x256x144xbf16, #tpu.memory_space<vmem>>, vector<1x256x144xbf16>
    %1 = vector.shape_cast %0 : vector<1x256x144xbf16> to vector<256x144xbf16>
    %c0_2 = arith.constant 0 : index
    %c0_3 = arith.constant 0 : index
    %2 = vector.load %arg2[%c0_2, %c0_3] : memref<144x16xbf16, #tpu.memory_space<vmem>>, vector<144x16xbf16>
    %cst = arith.constant dense<0.000000e+00> : vector<256x16xf32>
    %3 = tpu.matmul %1, %2, %cst {dimension_numbers = #tpu.dot_dimension_numbers<[1], [0], [0], [1], [0, 0, 1, 1], [], []>} : vector<256x144xbf16>, vector<144x16xbf16>, vector<256x16xf32> -> vector<256x16xf32>
    %c0_4 = arith.constant 0 : index
    %c0_5 = arith.constant 0 : index
    %4 = vector.load %arg3[%c0_4, %c0_5] : memref<1x16xf32, #tpu.memory_space<vmem>>, vector<1x16xf32>
    %5 = vector.broadcast %4 : vector<1x16xf32> to vector<256x16xf32>
    %6 = arith.addf %3, %5 : vector<256x16xf32>
    %c0_6 = arith.constant 0 : index
    %c0_7 = arith.constant 0 : index
    %c0_8 = arith.constant 0 : index
    %7 = vector.load %arg4[%c0_6, %c0_7, %c0_8] : memref<1x256x16xbf16, #tpu.memory_space<vmem>>, vector<1x256x16xbf16>
    %8 = vector.shape_cast %7 : vector<1x256x16xbf16> to vector<256x16xbf16>
    %9 = arith.extf %8 : vector<256x16xbf16> to vector<256x16xf32>
    %10 = arith.addf %6, %9 : vector<256x16xf32>
    %cst_9 = arith.constant 0.000000e+00 : f32
    %11 = vector.broadcast %cst_9 : f32 to vector<256x16xf32>
    %12 = arith.maximumf %10, %11 : vector<256x16xf32>
    %13 = arith.truncf %12 : vector<256x16xf32> to vector<256x16xbf16>
    %c0_10 = arith.constant 0 : index
    %c0_11 = arith.constant 0 : index
    %c0_12 = arith.constant 0 : index
    %14 = vector.load %arg5[%c0_10, %c0_11, %c0_12] : memref<1x256x16xbf16, #tpu.memory_space<vmem>>, vector<1x256x16xbf16>
    %15 = vector.shape_cast %14 : vector<1x256x16xbf16> to vector<256x16xbf16>
    %16 = vector.shape_cast %13 : vector<256x16xbf16> to vector<1x256x16xbf16>
    tpu.vector_store %arg5[%c0_10, %c0_11, %c0_12], %16 {strides = array<i32>} : memref<1x256x16xbf16, #tpu.memory_space<vmem>>, vector<1x256x16xbf16>,
    return
  }
  func.func @transform_0(%arg0: i32) -> (i32, i32, i32) {
    %c0_i32 = arith.constant 0 : i32
    %c0_i32_0 = arith.constant 0 : i32
    %c0_i32_1 = arith.constant 0 : i32
    return %arg0, %c0_i32, %c0_i32_0 : i32, i32, i32
  }
  func.func @transform_1(%arg0: i32) -> (i32, i32) {
    %c0_i32 = arith.constant 0 : i32
    %c0_i32_0 = arith.constant 0 : i32
    %c0_i32_1 = arith.constant 0 : i32
    return %c0_i32, %c0_i32_0 : i32, i32
  }
  func.func @transform_2(%arg0: i32) -> (i32, i32) {
    %c0_i32 = arith.constant 0 : i32
    %c0_i32_0 = arith.constant 0 : i32
    %c0_i32_1 = arith.constant 0 : i32
    return %c0_i32, %c0_i32_0 : i32, i32
  }
  func.func @transform_3(%arg0: i32) -> (i32, i32, i32) {
    %c0_i32 = arith.constant 0 : i32
    %c0_i32_0 = arith.constant 0 : i32
    %c0_i32_1 = arith.constant 0 : i32
    return %arg0, %c0_i32, %c0_i32_0 : i32, i32, i32
  }
  func.func @transform_4(%arg0: i32) -> (i32, i32, i32) {
    %c0_i32 = arith.constant 0 : i32
    %c0_i32_0 = arith.constant 0 : i32
    %c0_i32_1 = arith.constant 0 : i32
    return %arg0, %c0_i32, %c0_i32_0 : i32, i32, i32
  }
}

module attributes {stable_mosaic.version = 11 : i64} {
  func.func @_conv_kernel(%arg0: i32, %arg1: memref<1x64x144xbf16, #tpu.memory_space<vmem>>, %arg2: memref<144x32xbf16, #tpu.memory_space<vmem>>, %arg3: memref<1x32xf32, #tpu.memory_space<vmem>>, %arg4: memref<1x64x32xbf16, #tpu.memory_space<vmem>>) attributes {dimension_semantics = [#tpu.dimension_semantics<parallel>], iteration_bounds = array<i64: 2>, scalar_prefetch = 0 : i64, scratch_operands = 0 : i64, tpu.core_type = #tpu.core_type<tc>, window_params = [{transform_indices = @transform_0, window_bounds = array<i64: 1, 64, 144>}, {pipeline_mode = #tpu.pipeline_mode<synchronous>, transform_indices = @transform_1, window_bounds = array<i64: 144, 32>}, {pipeline_mode = #tpu.pipeline_mode<synchronous>, transform_indices = @transform_2, window_bounds = array<i64: 1, 32>}, {transform_indices = @transform_3, window_bounds = array<i64: 1, 64, 32>}]} {
    %c0 = arith.constant 0 : index
    %c0_0 = arith.constant 0 : index
    %c0_1 = arith.constant 0 : index
    %0 = vector.load %arg1[%c0, %c0_0, %c0_1] : memref<1x64x144xbf16, #tpu.memory_space<vmem>>, vector<1x64x144xbf16>
    %1 = vector.shape_cast %0 : vector<1x64x144xbf16> to vector<64x144xbf16>
    %c0_2 = arith.constant 0 : index
    %c0_3 = arith.constant 0 : index
    %2 = vector.load %arg2[%c0_2, %c0_3] : memref<144x32xbf16, #tpu.memory_space<vmem>>, vector<144x32xbf16>
    %cst = arith.constant dense<0.000000e+00> : vector<64x32xf32>
    %3 = tpu.matmul %1, %2, %cst {dimension_numbers = #tpu.dot_dimension_numbers<[1], [0], [0], [1], [0, 0, 1, 1], [], []>} : vector<64x144xbf16>, vector<144x32xbf16>, vector<64x32xf32> -> vector<64x32xf32>
    %c0_4 = arith.constant 0 : index
    %c0_5 = arith.constant 0 : index
    %4 = vector.load %arg3[%c0_4, %c0_5] : memref<1x32xf32, #tpu.memory_space<vmem>>, vector<1x32xf32>
    %5 = vector.broadcast %4 : vector<1x32xf32> to vector<64x32xf32>
    %6 = arith.addf %3, %5 : vector<64x32xf32>
    %cst_6 = arith.constant 0.000000e+00 : f32
    %7 = vector.broadcast %cst_6 : f32 to vector<64x32xf32>
    %8 = arith.maximumf %6, %7 : vector<64x32xf32>
    %9 = arith.truncf %8 : vector<64x32xf32> to vector<64x32xbf16>
    %c0_7 = arith.constant 0 : index
    %c0_8 = arith.constant 0 : index
    %c0_9 = arith.constant 0 : index
    %10 = vector.load %arg4[%c0_7, %c0_8, %c0_9] : memref<1x64x32xbf16, #tpu.memory_space<vmem>>, vector<1x64x32xbf16>
    %11 = vector.shape_cast %10 : vector<1x64x32xbf16> to vector<64x32xbf16>
    %12 = vector.shape_cast %9 : vector<64x32xbf16> to vector<1x64x32xbf16>
    tpu.vector_store %arg4[%c0_7, %c0_8, %c0_9], %12 {strides = array<i32>} : memref<1x64x32xbf16, #tpu.memory_space<vmem>>, vector<1x64x32xbf16>,
    return
  }
  func.func @transform_0(%arg0: i32) -> (i32, i32, i32) {
    %c0_i32 = arith.constant 0 : i32
    %c0_i32_0 = arith.constant 0 : i32
    %c0_i32_1 = arith.constant 0 : i32
    return %arg0, %c0_i32, %c0_i32_0 : i32, i32, i32
  }
  func.func @transform_1(%arg0: i32) -> (i32, i32) {
    %c0_i32 = arith.constant 0 : i32
    %c0_i32_0 = arith.constant 0 : i32
    %c0_i32_1 = arith.constant 0 : i32
    return %c0_i32, %c0_i32_0 : i32, i32
  }
  func.func @transform_2(%arg0: i32) -> (i32, i32) {
    %c0_i32 = arith.constant 0 : i32
    %c0_i32_0 = arith.constant 0 : i32
    %c0_i32_1 = arith.constant 0 : i32
    return %c0_i32, %c0_i32_0 : i32, i32
  }
  func.func @transform_3(%arg0: i32) -> (i32, i32, i32) {
    %c0_i32 = arith.constant 0 : i32
    %c0_i32_0 = arith.constant 0 : i32
    %c0_i32_1 = arith.constant 0 : i32
    return %arg0, %c0_i32, %c0_i32_0 : i32, i32, i32
  }
}

module attributes {stable_mosaic.version = 11 : i64} {
  func.func @_conv_proj_add_kernel(%arg0: i32, %arg1: memref<1x64x288xbf16, #tpu.memory_space<vmem>>, %arg2: memref<288x32xbf16, #tpu.memory_space<vmem>>, %arg3: memref<1x32xf32, #tpu.memory_space<vmem>>, %arg4: memref<1x64x16xbf16, #tpu.memory_space<vmem>>, %arg5: memref<16x32xbf16, #tpu.memory_space<vmem>>, %arg6: memref<1x32xf32, #tpu.memory_space<vmem>>, %arg7: memref<1x64x32xbf16, #tpu.memory_space<vmem>>) attributes {dimension_semantics = [#tpu.dimension_semantics<parallel>], iteration_bounds = array<i64: 2>, scalar_prefetch = 0 : i64, scratch_operands = 0 : i64, tpu.core_type = #tpu.core_type<tc>, window_params = [{transform_indices = @transform_0, window_bounds = array<i64: 1, 64, 288>}, {pipeline_mode = #tpu.pipeline_mode<synchronous>, transform_indices = @transform_1, window_bounds = array<i64: 288, 32>}, {pipeline_mode = #tpu.pipeline_mode<synchronous>, transform_indices = @transform_2, window_bounds = array<i64: 1, 32>}, {transform_indices = @transform_3, window_bounds = array<i64: 1, 64, 16>}, {pipeline_mode = #tpu.pipeline_mode<synchronous>, transform_indices = @transform_4, window_bounds = array<i64: 16, 32>}, {pipeline_mode = #tpu.pipeline_mode<synchronous>, transform_indices = @transform_5, window_bounds = array<i64: 1, 32>}, {transform_indices = @transform_6, window_bounds = array<i64: 1, 64, 32>}]} {
    %c0 = arith.constant 0 : index
    %c0_0 = arith.constant 0 : index
    %c0_1 = arith.constant 0 : index
    %0 = vector.load %arg1[%c0, %c0_0, %c0_1] : memref<1x64x288xbf16, #tpu.memory_space<vmem>>, vector<1x64x288xbf16>
    %1 = vector.shape_cast %0 : vector<1x64x288xbf16> to vector<64x288xbf16>
    %c0_2 = arith.constant 0 : index
    %c0_3 = arith.constant 0 : index
    %2 = vector.load %arg2[%c0_2, %c0_3] : memref<288x32xbf16, #tpu.memory_space<vmem>>, vector<288x32xbf16>
    %cst = arith.constant dense<0.000000e+00> : vector<64x32xf32>
    %3 = tpu.matmul %1, %2, %cst {dimension_numbers = #tpu.dot_dimension_numbers<[1], [0], [0], [1], [0, 0, 1, 1], [], []>} : vector<64x288xbf16>, vector<288x32xbf16>, vector<64x32xf32> -> vector<64x32xf32>
    %c0_4 = arith.constant 0 : index
    %c0_5 = arith.constant 0 : index
    %c0_6 = arith.constant 0 : index
    %4 = vector.load %arg4[%c0_4, %c0_5, %c0_6] : memref<1x64x16xbf16, #tpu.memory_space<vmem>>, vector<1x64x16xbf16>
    %5 = vector.shape_cast %4 : vector<1x64x16xbf16> to vector<64x16xbf16>
    %c0_7 = arith.constant 0 : index
    %c0_8 = arith.constant 0 : index
    %6 = vector.load %arg5[%c0_7, %c0_8] : memref<16x32xbf16, #tpu.memory_space<vmem>>, vector<16x32xbf16>
    %cst_9 = arith.constant dense<0.000000e+00> : vector<64x32xf32>
    %7 = tpu.matmul %5, %6, %cst_9 {dimension_numbers = #tpu.dot_dimension_numbers<[1], [0], [0], [1], [0, 0, 1, 1], [], []>} : vector<64x16xbf16>, vector<16x32xbf16>, vector<64x32xf32> -> vector<64x32xf32>
    %c0_10 = arith.constant 0 : index
    %c0_11 = arith.constant 0 : index
    %8 = vector.load %arg3[%c0_10, %c0_11] : memref<1x32xf32, #tpu.memory_space<vmem>>, vector<1x32xf32>
    %9 = vector.broadcast %8 : vector<1x32xf32> to vector<64x32xf32>
    %10 = arith.addf %3, %9 : vector<64x32xf32>
    %11 = arith.addf %10, %7 : vector<64x32xf32>
    %c0_12 = arith.constant 0 : index
    %c0_13 = arith.constant 0 : index
    %12 = vector.load %arg6[%c0_12, %c0_13] : memref<1x32xf32, #tpu.memory_space<vmem>>, vector<1x32xf32>
    %13 = vector.broadcast %12 : vector<1x32xf32> to vector<64x32xf32>
    %14 = arith.addf %11, %13 : vector<64x32xf32>
    %cst_14 = arith.constant 0.000000e+00 : f32
    %15 = vector.broadcast %cst_14 : f32 to vector<64x32xf32>
    %16 = arith.maximumf %14, %15 : vector<64x32xf32>
    %17 = arith.truncf %16 : vector<64x32xf32> to vector<64x32xbf16>
    %c0_15 = arith.constant 0 : index
    %c0_16 = arith.constant 0 : index
    %c0_17 = arith.constant 0 : index
    %18 = vector.load %arg7[%c0_15, %c0_16, %c0_17] : memref<1x64x32xbf16, #tpu.memory_space<vmem>>, vector<1x64x32xbf16>
    %19 = vector.shape_cast %18 : vector<1x64x32xbf16> to vector<64x32xbf16>
    %20 = vector.shape_cast %17 : vector<64x32xbf16> to vector<1x64x32xbf16>
    tpu.vector_store %arg7[%c0_15, %c0_16, %c0_17], %20 {strides = array<i32>} : memref<1x64x32xbf16, #tpu.memory_space<vmem>>, vector<1x64x32xbf16>,
    return
  }
  func.func @transform_0(%arg0: i32) -> (i32, i32, i32) {
    %c0_i32 = arith.constant 0 : i32
    %c0_i32_0 = arith.constant 0 : i32
    %c0_i32_1 = arith.constant 0 : i32
    return %arg0, %c0_i32, %c0_i32_0 : i32, i32, i32
  }
  func.func @transform_1(%arg0: i32) -> (i32, i32) {
    %c0_i32 = arith.constant 0 : i32
    %c0_i32_0 = arith.constant 0 : i32
    %c0_i32_1 = arith.constant 0 : i32
    return %c0_i32, %c0_i32_0 : i32, i32
  }
  func.func @transform_2(%arg0: i32) -> (i32, i32) {
    %c0_i32 = arith.constant 0 : i32
    %c0_i32_0 = arith.constant 0 : i32
    %c0_i32_1 = arith.constant 0 : i32
    return %c0_i32, %c0_i32_0 : i32, i32
  }
  func.func @transform_3(%arg0: i32) -> (i32, i32, i32) {
    %c0_i32 = arith.constant 0 : i32
    %c0_i32_0 = arith.constant 0 : i32
    %c0_i32_1 = arith.constant 0 : i32
    return %arg0, %c0_i32, %c0_i32_0 : i32, i32, i32
  }
  func.func @transform_4(%arg0: i32) -> (i32, i32) {
    %c0_i32 = arith.constant 0 : i32
    %c0_i32_0 = arith.constant 0 : i32
    %c0_i32_1 = arith.constant 0 : i32
    return %c0_i32, %c0_i32_0 : i32, i32
  }
  func.func @transform_5(%arg0: i32) -> (i32, i32) {
    %c0_i32 = arith.constant 0 : i32
    %c0_i32_0 = arith.constant 0 : i32
    %c0_i32_1 = arith.constant 0 : i32
    return %c0_i32, %c0_i32_0 : i32, i32
  }
  func.func @transform_6(%arg0: i32) -> (i32, i32, i32) {
    %c0_i32 = arith.constant 0 : i32
    %c0_i32_0 = arith.constant 0 : i32
    %c0_i32_1 = arith.constant 0 : i32
    return %arg0, %c0_i32, %c0_i32_0 : i32, i32, i32
  }
}

module attributes {stable_mosaic.version = 11 : i64} {
  func.func @_conv_kernel(%arg0: i32, %arg1: memref<1x16x288xbf16, #tpu.memory_space<vmem>>, %arg2: memref<288x64xbf16, #tpu.memory_space<vmem>>, %arg3: memref<1x64xf32, #tpu.memory_space<vmem>>, %arg4: memref<1x16x64xbf16, #tpu.memory_space<vmem>>) attributes {dimension_semantics = [#tpu.dimension_semantics<parallel>], iteration_bounds = array<i64: 2>, scalar_prefetch = 0 : i64, scratch_operands = 0 : i64, tpu.core_type = #tpu.core_type<tc>, window_params = [{transform_indices = @transform_0, window_bounds = array<i64: 1, 16, 288>}, {pipeline_mode = #tpu.pipeline_mode<synchronous>, transform_indices = @transform_1, window_bounds = array<i64: 288, 64>}, {pipeline_mode = #tpu.pipeline_mode<synchronous>, transform_indices = @transform_2, window_bounds = array<i64: 1, 64>}, {transform_indices = @transform_3, window_bounds = array<i64: 1, 16, 64>}]} {
    %c0 = arith.constant 0 : index
    %c0_0 = arith.constant 0 : index
    %c0_1 = arith.constant 0 : index
    %0 = vector.load %arg1[%c0, %c0_0, %c0_1] : memref<1x16x288xbf16, #tpu.memory_space<vmem>>, vector<1x16x288xbf16>
    %1 = vector.shape_cast %0 : vector<1x16x288xbf16> to vector<16x288xbf16>
    %c0_2 = arith.constant 0 : index
    %c0_3 = arith.constant 0 : index
    %2 = vector.load %arg2[%c0_2, %c0_3] : memref<288x64xbf16, #tpu.memory_space<vmem>>, vector<288x64xbf16>
    %cst = arith.constant dense<0.000000e+00> : vector<16x64xf32>
    %3 = tpu.matmul %1, %2, %cst {dimension_numbers = #tpu.dot_dimension_numbers<[1], [0], [0], [1], [0, 0, 1, 1], [], []>} : vector<16x288xbf16>, vector<288x64xbf16>, vector<16x64xf32> -> vector<16x64xf32>
    %c0_4 = arith.constant 0 : index
    %c0_5 = arith.constant 0 : index
    %4 = vector.load %arg3[%c0_4, %c0_5] : memref<1x64xf32, #tpu.memory_space<vmem>>, vector<1x64xf32>
    %5 = vector.broadcast %4 : vector<1x64xf32> to vector<16x64xf32>
    %6 = arith.addf %3, %5 : vector<16x64xf32>
    %cst_6 = arith.constant 0.000000e+00 : f32
    %7 = vector.broadcast %cst_6 : f32 to vector<16x64xf32>
    %8 = arith.maximumf %6, %7 : vector<16x64xf32>
    %9 = arith.truncf %8 : vector<16x64xf32> to vector<16x64xbf16>
    %c0_7 = arith.constant 0 : index
    %c0_8 = arith.constant 0 : index
    %c0_9 = arith.constant 0 : index
    %10 = vector.load %arg4[%c0_7, %c0_8, %c0_9] : memref<1x16x64xbf16, #tpu.memory_space<vmem>>, vector<1x16x64xbf16>
    %11 = vector.shape_cast %10 : vector<1x16x64xbf16> to vector<16x64xbf16>
    %12 = vector.shape_cast %9 : vector<16x64xbf16> to vector<1x16x64xbf16>
    tpu.vector_store %arg4[%c0_7, %c0_8, %c0_9], %12 {strides = array<i32>} : memref<1x16x64xbf16, #tpu.memory_space<vmem>>, vector<1x16x64xbf16>,
    return
  }
  func.func @transform_0(%arg0: i32) -> (i32, i32, i32) {
    %c0_i32 = arith.constant 0 : i32
    %c0_i32_0 = arith.constant 0 : i32
    %c0_i32_1 = arith.constant 0 : i32
    return %arg0, %c0_i32, %c0_i32_0 : i32, i32, i32
  }
  func.func @transform_1(%arg0: i32) -> (i32, i32) {
    %c0_i32 = arith.constant 0 : i32
    %c0_i32_0 = arith.constant 0 : i32
    %c0_i32_1 = arith.constant 0 : i32
    return %c0_i32, %c0_i32_0 : i32, i32
  }
  func.func @transform_2(%arg0: i32) -> (i32, i32) {
    %c0_i32 = arith.constant 0 : i32
    %c0_i32_0 = arith.constant 0 : i32
    %c0_i32_1 = arith.constant 0 : i32
    return %c0_i32, %c0_i32_0 : i32, i32
  }
  func.func @transform_3(%arg0: i32) -> (i32, i32, i32) {
    %c0_i32 = arith.constant 0 : i32
    %c0_i32_0 = arith.constant 0 : i32
    %c0_i32_1 = arith.constant 0 : i32
    return %arg0, %c0_i32, %c0_i32_0 : i32, i32, i32
  }
}

module attributes {stable_mosaic.version = 11 : i64} {
  func.func @_conv_proj_add_kernel(%arg0: i32, %arg1: memref<1x16x576xbf16, #tpu.memory_space<vmem>>, %arg2: memref<576x64xbf16, #tpu.memory_space<vmem>>, %arg3: memref<1x64xf32, #tpu.memory_space<vmem>>, %arg4: memref<1x16x32xbf16, #tpu.memory_space<vmem>>, %arg5: memref<32x64xbf16, #tpu.memory_space<vmem>>, %arg6: memref<1x64xf32, #tpu.memory_space<vmem>>, %arg7: memref<1x16x64xbf16, #tpu.memory_space<vmem>>) attributes {dimension_semantics = [#tpu.dimension_semantics<parallel>], iteration_bounds = array<i64: 2>, scalar_prefetch = 0 : i64, scratch_operands = 0 : i64, tpu.core_type = #tpu.core_type<tc>, window_params = [{transform_indices = @transform_0, window_bounds = array<i64: 1, 16, 576>}, {pipeline_mode = #tpu.pipeline_mode<synchronous>, transform_indices = @transform_1, window_bounds = array<i64: 576, 64>}, {pipeline_mode = #tpu.pipeline_mode<synchronous>, transform_indices = @transform_2, window_bounds = array<i64: 1, 64>}, {transform_indices = @transform_3, window_bounds = array<i64: 1, 16, 32>}, {pipeline_mode = #tpu.pipeline_mode<synchronous>, transform_indices = @transform_4, window_bounds = array<i64: 32, 64>}, {pipeline_mode = #tpu.pipeline_mode<synchronous>, transform_indices = @transform_5, window_bounds = array<i64: 1, 64>}, {transform_indices = @transform_6, window_bounds = array<i64: 1, 16, 64>}]} {
    %c0 = arith.constant 0 : index
    %c0_0 = arith.constant 0 : index
    %c0_1 = arith.constant 0 : index
    %0 = vector.load %arg1[%c0, %c0_0, %c0_1] : memref<1x16x576xbf16, #tpu.memory_space<vmem>>, vector<1x16x576xbf16>
    %1 = vector.shape_cast %0 : vector<1x16x576xbf16> to vector<16x576xbf16>
    %c0_2 = arith.constant 0 : index
    %c0_3 = arith.constant 0 : index
    %2 = vector.load %arg2[%c0_2, %c0_3] : memref<576x64xbf16, #tpu.memory_space<vmem>>, vector<576x64xbf16>
    %cst = arith.constant dense<0.000000e+00> : vector<16x64xf32>
    %3 = tpu.matmul %1, %2, %cst {dimension_numbers = #tpu.dot_dimension_numbers<[1], [0], [0], [1], [0, 0, 1, 1], [], []>} : vector<16x576xbf16>, vector<576x64xbf16>, vector<16x64xf32> -> vector<16x64xf32>
    %c0_4 = arith.constant 0 : index
    %c0_5 = arith.constant 0 : index
    %c0_6 = arith.constant 0 : index
    %4 = vector.load %arg4[%c0_4, %c0_5, %c0_6] : memref<1x16x32xbf16, #tpu.memory_space<vmem>>, vector<1x16x32xbf16>
    %5 = vector.shape_cast %4 : vector<1x16x32xbf16> to vector<16x32xbf16>
    %c0_7 = arith.constant 0 : index
    %c0_8 = arith.constant 0 : index
    %6 = vector.load %arg5[%c0_7, %c0_8] : memref<32x64xbf16, #tpu.memory_space<vmem>>, vector<32x64xbf16>
    %cst_9 = arith.constant dense<0.000000e+00> : vector<16x64xf32>
    %7 = tpu.matmul %5, %6, %cst_9 {dimension_numbers = #tpu.dot_dimension_numbers<[1], [0], [0], [1], [0, 0, 1, 1], [], []>} : vector<16x32xbf16>, vector<32x64xbf16>, vector<16x64xf32> -> vector<16x64xf32>
    %c0_10 = arith.constant 0 : index
    %c0_11 = arith.constant 0 : index
    %8 = vector.load %arg3[%c0_10, %c0_11] : memref<1x64xf32, #tpu.memory_space<vmem>>, vector<1x64xf32>
    %9 = vector.broadcast %8 : vector<1x64xf32> to vector<16x64xf32>
    %10 = arith.addf %3, %9 : vector<16x64xf32>
    %11 = arith.addf %10, %7 : vector<16x64xf32>
    %c0_12 = arith.constant 0 : index
    %c0_13 = arith.constant 0 : index
    %12 = vector.load %arg6[%c0_12, %c0_13] : memref<1x64xf32, #tpu.memory_space<vmem>>, vector<1x64xf32>
    %13 = vector.broadcast %12 : vector<1x64xf32> to vector<16x64xf32>
    %14 = arith.addf %11, %13 : vector<16x64xf32>
    %cst_14 = arith.constant 0.000000e+00 : f32
    %15 = vector.broadcast %cst_14 : f32 to vector<16x64xf32>
    %16 = arith.maximumf %14, %15 : vector<16x64xf32>
    %17 = arith.truncf %16 : vector<16x64xf32> to vector<16x64xbf16>
    %c0_15 = arith.constant 0 : index
    %c0_16 = arith.constant 0 : index
    %c0_17 = arith.constant 0 : index
    %18 = vector.load %arg7[%c0_15, %c0_16, %c0_17] : memref<1x16x64xbf16, #tpu.memory_space<vmem>>, vector<1x16x64xbf16>
    %19 = vector.shape_cast %18 : vector<1x16x64xbf16> to vector<16x64xbf16>
    %20 = vector.shape_cast %17 : vector<16x64xbf16> to vector<1x16x64xbf16>
    tpu.vector_store %arg7[%c0_15, %c0_16, %c0_17], %20 {strides = array<i32>} : memref<1x16x64xbf16, #tpu.memory_space<vmem>>, vector<1x16x64xbf16>,
    return
  }
  func.func @transform_0(%arg0: i32) -> (i32, i32, i32) {
    %c0_i32 = arith.constant 0 : i32
    %c0_i32_0 = arith.constant 0 : i32
    %c0_i32_1 = arith.constant 0 : i32
    return %arg0, %c0_i32, %c0_i32_0 : i32, i32, i32
  }
  func.func @transform_1(%arg0: i32) -> (i32, i32) {
    %c0_i32 = arith.constant 0 : i32
    %c0_i32_0 = arith.constant 0 : i32
    %c0_i32_1 = arith.constant 0 : i32
    return %c0_i32, %c0_i32_0 : i32, i32
  }
  func.func @transform_2(%arg0: i32) -> (i32, i32) {
    %c0_i32 = arith.constant 0 : i32
    %c0_i32_0 = arith.constant 0 : i32
    %c0_i32_1 = arith.constant 0 : i32
    return %c0_i32, %c0_i32_0 : i32, i32
  }
  func.func @transform_3(%arg0: i32) -> (i32, i32, i32) {
    %c0_i32 = arith.constant 0 : i32
    %c0_i32_0 = arith.constant 0 : i32
    %c0_i32_1 = arith.constant 0 : i32
    return %arg0, %c0_i32, %c0_i32_0 : i32, i32, i32
  }
  func.func @transform_4(%arg0: i32) -> (i32, i32) {
    %c0_i32 = arith.constant 0 : i32
    %c0_i32_0 = arith.constant 0 : i32
    %c0_i32_1 = arith.constant 0 : i32
    return %c0_i32, %c0_i32_0 : i32, i32
  }
  func.func @transform_5(%arg0: i32) -> (i32, i32) {
    %c0_i32 = arith.constant 0 : i32
    %c0_i32_0 = arith.constant 0 : i32
    %c0_i32_1 = arith.constant 0 : i32
    return %c0_i32, %c0_i32_0 : i32, i32
  }
  func.func @transform_6(%arg0: i32) -> (i32, i32, i32) {
    %c0_i32 = arith.constant 0 : i32
    %c0_i32_0 = arith.constant 0 : i32
    %c0_i32_1 = arith.constant 0 : i32
    return %arg0, %c0_i32, %c0_i32_0 : i32, i32, i32
  }
}

module attributes {stable_mosaic.version = 11 : i64} {
  func.func @_head_kernel(%arg0: memref<2x16x64xbf16, #tpu.memory_space<vmem>>, %arg1: memref<64x10xf32, #tpu.memory_space<vmem>>, %arg2: memref<1x10xf32, #tpu.memory_space<vmem>>, %arg3: memref<2x10xf32, #tpu.memory_space<vmem>>) attributes {dimension_semantics = [], scalar_prefetch = 0 : i64, scratch_operands = 0 : i64, tpu.core_type = #tpu.core_type<tc>} {
    %c0 = arith.constant 0 : index
    %c0_0 = arith.constant 0 : index
    %c0_1 = arith.constant 0 : index
    %0 = vector.load %arg0[%c0, %c0_0, %c0_1] : memref<2x16x64xbf16, #tpu.memory_space<vmem>>, vector<2x16x64xbf16>
    %1 = arith.extf %0 : vector<2x16x64xbf16> to vector<2x16x64xf32>
    %cst = arith.constant dense<0.000000e+00> : vector<2x64xf32>
    %2 = vector.multi_reduction <add>, %1, %cst [1] : vector<2x16x64xf32> to vector<2x64xf32>
    %cst_2 = arith.constant 1.600000e+01 : f32
    %3 = vector.broadcast %cst_2 : f32 to vector<2x64xf32>
    %4 = arith.divf %2, %3 : vector<2x64xf32>
    %c0_3 = arith.constant 0 : index
    %c0_4 = arith.constant 0 : index
    %5 = vector.load %arg1[%c0_3, %c0_4] : memref<64x10xf32, #tpu.memory_space<vmem>>, vector<64x10xf32>
    %cst_5 = arith.constant dense<0.000000e+00> : vector<2x10xf32>
    %6 = tpu.matmul %4, %5, %cst_5 {dimension_numbers = #tpu.dot_dimension_numbers<[1], [0], [0], [1], [0, 0, 1, 1], [], []>} : vector<2x64xf32>, vector<64x10xf32>, vector<2x10xf32> -> vector<2x10xf32>
    %c0_6 = arith.constant 0 : index
    %c0_7 = arith.constant 0 : index
    %7 = vector.load %arg2[%c0_6, %c0_7] : memref<1x10xf32, #tpu.memory_space<vmem>>, vector<1x10xf32>
    %8 = vector.broadcast %7 : vector<1x10xf32> to vector<2x10xf32>
    %9 = arith.addf %6, %8 : vector<2x10xf32>
    %c0_8 = arith.constant 0 : index
    %c0_9 = arith.constant 0 : index
    %10 = vector.load %arg3[%c0_8, %c0_9] : memref<2x10xf32, #tpu.memory_space<vmem>>, vector<2x10xf32>
    tpu.vector_store %arg3[%c0_8, %c0_9], %9 {strides = array<i32>} : memref<2x10xf32, #tpu.memory_space<vmem>>, vector<2x10xf32>,
    return
  }
}

</mosaic_0001>

<llo_original>
// kernel: forward.8
$region0: #{forward.8}
  #allocation0 [shape = 'u32[]', space=smem, size = 0x4, offset = 0x4, fixed_abs, tag = 'smem constant byte address 0x4 - core index']
  #allocation1 [shape = 'u32[144,128]{1,0:T(1,128)}', space=vmem, size = 0x12000, scoped, tag = 'internal scratch']
  %s0 = inlined_call_operand.vmem [shape: bf16[2,256,27], index: 0, kind: input, shape index: {}]
  %s1 = inlined_call_operand.vmem [shape: bf16[27,16], index: 1, kind: input, shape index: {}]
  %s2 = inlined_call_operand.vmem [shape: f32[1,16], index: 2, kind: input, shape index: {}]
  %s3 = inlined_call_operand.vmem [shape: bf16[2,256,16], index: 3, kind: output, shape index: {}]
  %s4 = sld [smem:[#allocation0]]
  $region45: #{forward.8} parent=0
    _
  %s6 = ssub.s32 1, %s4
  %s7 = scalar_select 0, %s6, %s4
  loop: start=0, step=1, limit=4
  $region2: #{forward.8} parent=0 // loop_pre_header
    _
  $region3: #{forward.8} parent=0 // loop_header
    %s9 = sphi 0, %s13
    %p10 = scmp.ge.s32.totalorder %s9, 4
    %s19 = sphi 0, %s21
    %s22 = sphi 0, %s19
    %s23 = sphi 0, %s22
    %s39 = sphi 0, %s23
    %s43 = sphi 0, %s43
    %s45 = sphi 0, %s43
    %s46 = sphi 0, %s45
    %s60 = sphi 0, %s46
    %s64 = sphi 0, %s64
    %s66 = sphi 0, %s64
    %s67 = sphi 0, %s66
    %s81 = sphi 0, %s67
    %s87 = sphi 0, %s89
    %s90 = sphi 0, %s87
    %s91 = sphi 0, %s90
    %s107 = sphi 0, %s91
  $region4: #{forward.8} parent=0 // loop_header_branch
    %12 = sbr.rel (%p10) target = $region8
  $region5: #{forward.8} parent=0 // loop_body
    %s14 = ssub.s32 %s9, 1
    %s15 = ssub.s32 %s9, 2
    %s16 = sadd.s32 %s9, 1
    %s17 = ssub.s32 %s9, %s16
    %p18 = scmp.eq.s32.totalorder %s17, 0
    %s20 = sadd.s32 %s19, 1
    %s21 = scalar_select %p18, %s19, %s20
    %p24 = pneg %p18
    %p25 = scmp.eq.s32.totalorder %s9, 1
    %p26 = por %p24, %p25
    %p27 = scmp.ne.s32.totalorder %s19, %s22
    %p28 = scmp.eq.s32.totalorder %s9, 0
    %p29 = por %p27, %p28
    %p30 = scmp.ne.s32.totalorder %s19, %s22
    %p31 = scmp.eq.s32.totalorder %s14, 1
    %p32 = por %p30, %p31
    %p33 = scmp.ne.s32.totalorder %s22, %s23
    %p34 = scmp.eq.s32.totalorder %s14, 0
    %p35 = por %p33, %p34
    %p36 = scmp.ne.s32.totalorder %s22, %s23
    %p37 = scmp.eq.s32.totalorder %s15, 1
    %p38 = por %p36, %p37
    %p40 = scmp.ne.s32.totalorder %s23, %s39
    %p41 = scmp.eq.s32.totalorder %s15, 0
    %p42 = por %p40, %p41
    %s44 = sadd.s32 %s43, 1
    %p47 = scmp.eq.s32.totalorder %s9, 1
    %p48 = scmp.ne.s32.totalorder %s43, %s45
    %p49 = scmp.eq.s32.totalorder %s9, 0
    %p50 = por %p48, %p49
    %p51 = scmp.ne.s32.totalorder %s43, %s45
    %p52 = scmp.eq.s32.totalorder %s14, 1
    %p53 = por %p51, %p52
    %p54 = scmp.ne.s32.totalorder %s45, %s46
    %p55 = scmp.eq.s32.totalorder %s14, 0
    %p56 = por %p54, %p55
    %p57 = scmp.ne.s32.totalorder %s45, %s46
    %p58 = scmp.eq.s32.totalorder %s15, 1
    %p59 = por %p57, %p58
    %p61 = scmp.ne.s32.totalorder %s46, %s60
    %p62 = scmp.eq.s32.totalorder %s15, 0
    %p63 = por %p61, %p62
    %s65 = sadd.s32 %s64, 1
    %p68 = scmp.eq.s32.totalorder %s9, 1
    %p69 = scmp.ne.s32.totalorder %s64, %s66
    %p70 = scmp.eq.s32.totalorder %s9, 0
    %p71 = por %p69, %p70
    %p72 = scmp.ne.s32.totalorder %s64, %s66
    %p73 = scmp.eq.s32.totalorder %s14, 1
    %p74 = por %p72, %p73
    %p75 = scmp.ne.s32.totalorder %s66, %s67
    %p76 = scmp.eq.s32.totalorder %s14, 0
    %p77 = por %p75, %p76
    %p78 = scmp.ne.s32.totalorder %s66, %s67
    %p79 = scmp.eq.s32.totalorder %s15, 1
    %p80 = por %p78, %p79
    %p82 = scmp.ne.s32.totalorder %s67, %s81
    %p83 = scmp.eq.s32.totalorder %s15, 0
    %p84 = por %p82, %p83
    %s85 = ssub.s32 %s9, %s16
    %p86 = scmp.eq.s32.totalorder %s85, 0
    %s88 = sadd.s32 %s87, 1
    %s89 = scalar_select %p86, %s87, %s88
    %p92 = pneg %p86
    %p93 = scmp.eq.s32.totalorder %s9, 1
    %p94 = por %p92, %p93
    %p95 = scmp.ne.s32.totalorder %s87, %s90
    %p96 = scmp.eq.s32.totalorder %s9, 0
    %p97 = por %p95, %p96
    %p98 = scmp.ne.s32.totalorder %s87, %s90
    %p99 = scmp.eq.s32.totalorder %s14, 1
    %p100 = por %p98, %p99
    %p101 = scmp.ne.s32.totalorder %s90, %s91
    %p102 = scmp.eq.s32.totalorder %s14, 0
    %p103 = por %p101, %p102
    %p104 = scmp.ne.s32.totalorder %s90, %s91
    %p105 = scmp.eq.s32.totalorder %s15, 1
    %p106 = por %p104, %p105
    %p108 = scmp.ne.s32.totalorder %s91, %s107
    %p109 = scmp.eq.s32.totalorder %s15, 0
    %p110 = por %p108, %p109
    %p111 = scmp.le.s32.totalorder 1, %s9
    %p112 = scmp.lt.s32.totalorder %s9, 3
    %p113 = pnand %p111, %p112
    %p114 = pneg %p113
    // Predicated region
    $region9: #{forward.8} parent=5 // pred_check
      _
    $region10: #{forward.8} parent=5 // pred_check_branch
      %116 = sbr.rel (%p113) target = $region12
    $region11: #{forward.8} parent=5 // pred_region
      %s117 = ssub.s32 %s9, 1
      // Predicated region
      $region13: #{forward.8} parent=11 // pred_check
        %p118 = pneg %p56
      $region14: #{forward.8} parent=11 // pred_check_branch
        %120 = sbr.rel (%p118) target = $region16
      $region15: #{forward.8} parent=11 // pred_region
        _
      $region16: #{forward.8} parent=11 // pred_fallthru
        _
      // Predicated region
      $region17: #{forward.8} parent=11 // pred_check
        %p121 = pneg %p77
      $region18: #{forward.8} parent=11 // pred_check_branch
        %123 = sbr.rel (%p121) target = $region20
      $region19: #{forward.8} parent=11 // pred_region
        _
      $region20: #{forward.8} parent=11 // pred_fallthru
        _
    $region12: #{forward.8} parent=5 // pred_fallthru
      _
    %p124 = scmp.lt.s32.totalorder %s9, 2
    // Predicated region
    $region21: #{forward.8} parent=5 // pred_check
      %p125 = pneg %p124
    $region22: #{forward.8} parent=5 // pred_check_branch
      %127 = sbr.rel (%p125) target = $region24
    $region23: #{forward.8} parent=5 // pred_region
      // Predicated region
      $region25: #{forward.8} parent=23 // pred_check
        %p128 = pneg %p29
      $region26: #{forward.8} parent=23 // pred_check_branch
        %130 = sbr.rel (%p128) target = $region28
      $region27: #{forward.8} parent=23 // pred_region
        %p131 = scmp.lt.s32.totalorder %s9, 1
        %s132 = scalar_select %p131, %s9, 1
        %s133 = smul.addr %s132, 32
        %s134 = smul.addr %s133, 4
        %s135 = scalar_lea.vmem %s0, %s134
      $region28: #{forward.8} parent=23 // pred_fallthru
        _
    $region24: #{forward.8} parent=5 // pred_fallthru
      _
    %p136 = scmp.le.s32.totalorder 1, %s9
    %p137 = scmp.lt.s32.totalorder %s9, 3
    %p138 = pnand %p136, %p137
    %p139 = pneg %p138
    // Predicated region
    $region29: #{forward.8} parent=5 // pred_check
      _
    $region30: #{forward.8} parent=5 // pred_check_branch
      %141 = sbr.rel (%p138) target = $region32
    $region31: #{forward.8} parent=5 // pred_region
      %s142 = ssub.s32 %s9, 1
      %p143 = scmp.lt.s32.totalorder %s14, 1
      %s144 = scalar_select %p143, %s14, 1
      %s145 = smul.addr %s144, 32
      %s146 = smul.addr %s145, 4
      %s147 = scalar_lea.vmem %s0, %s146
      %p148 = pneg %p35
      %p149 = pneg %p32
      %p150 = pneg %p56
      %p151 = pneg %p53
      %p152 = pneg %p77
      %p153 = pneg %p74
      %p154 = pneg %p103
      %p155 = pneg %p100
      %p156 = scmp.lt.s32.totalorder %s14, 1
      %s157 = scalar_select %p156, %s14, 1
      %s158 = smul.addr %s157, 32
      %s159 = smul.addr %s158, 4
      %s160 = scalar_lea.vmem %s3, %s159
      %p161 = scmp.lt.s32.totalorder %s14, 1
      %s162 = scalar_select %p161, %s14, 1
      %s163 = smul.addr %s162, 32
      %s164 = smul.addr %s163, 4
      %s165 = scalar_lea.vmem %s0, %s164
      %p166 = scmp.lt.s32.totalorder %s14, 1
      %s167 = scalar_select %p166, %s14, 1
      %s168 = smul.addr %s167, 32
      %s169 = smul.addr %s168, 4
      %s170 = scalar_lea.vmem %s3, %s169
      %v172 = vld [vmem:[%s165] sm:$0xf]
      %v173 = vld [vmem:[%s165 + $0x4] sm:$0xf]
      %v174 = vld [vmem:[%s165 + $0x8] sm:$0xf]
      %v175 = vld [vmem:[%s165 + $0xc] sm:$0xf]
      %v176 = vld [vmem:[%s165 + $0x10] sm:$0xf]
      %v177 = vld [vmem:[%s165 + $0x14] sm:$0xf]
      %v178 = vld [vmem:[%s165 + $0x18] sm:$0xf]
      %v179 = vld [vmem:[%s165 + $0x1c] sm:$0xf]
      %v180 = vld [vmem:[%s165 + $0x20] sm:$0xf]
      %v181 = vld [vmem:[%s165 + $0x24] sm:$0xf]
      %v182 = vld [vmem:[%s165 + $0x28] sm:$0xf]
      %v183 = vld [vmem:[%s165 + $0x2c] sm:$0xf]
      %v184 = vld [vmem:[%s165 + $0x30] sm:$0xf]
      %v185 = vld [vmem:[%s165 + $0x34] sm:$0xf]
      %v186 = vld [vmem:[%s165 + $0x38] sm:$0xf]
      %v187 = vld [vmem:[%s165 + $0x3c] sm:$0xf]
      %v188 = vld [vmem:[%s165 + $0x40] sm:$0xf]
      %v189 = vld [vmem:[%s165 + $0x44] sm:$0xf]
      %v190 = vld [vmem:[%s165 + $0x48] sm:$0xf]
      %v191 = vld [vmem:[%s165 + $0x4c] sm:$0xf]
      %v192 = vld [vmem:[%s165 + $0x50] sm:$0xf]
      %v193 = vld [vmem:[%s165 + $0x54] sm:$0xf]
      %v194 = vld [vmem:[%s165 + $0x58] sm:$0xf]
      %v195 = vld [vmem:[%s165 + $0x5c] sm:$0xf]
      %v196 = vld [vmem:[%s165 + $0x60] sm:$0xf]
      %v197 = vld [vmem:[%s165 + $0x64] sm:$0xf]
      %v198 = vld [vmem:[%s165 + $0x68] sm:$0xf]
      %v199 = vld [vmem:[%s165 + $0x6c] sm:$0xf]
      %v200 = vld [vmem:[%s165 + $0x70] sm:$0xf]
      %v201 = vld [vmem:[%s165 + $0x74] sm:$0xf]
      %v202 = vld [vmem:[%s165 + $0x78] sm:$0xf]
      %v203 = vld [vmem:[%s165 + $0x7c] sm:$0xf]
      %v204 = vld [vmem:[%s1] sm:$0xf]
      %v205 = vld [vmem:[%s1 + $0x4] sm:$0xf]
      %v206 = vld [vmem:[%s1 + $0x8] sm:$0xf]
      %v207 = vld [vmem:[%s1 + $0xc] sm:$0x3]
      %v208 = vld [vmem:[%s2] sm:$0x1]
      %v210 = vlaneseq
      %v211 = vshrl.u32 %v210, 7
      %v212 = vsub.s32 0, %v211
      %v213 = vrot.slane %v208, %v212
      %v247 = vunpack.c.l.b16 %v172
      %v248 = vunpack.c.l.b16 %v173
      %v249 = vunpack.c.l.b16 %v174
      %v250 = vunpack.c.l.b16 %v175
      %v251 = vunpack.c.l.b16 %v176
      %v252 = vunpack.c.l.b16 %v177
      %v253 = vunpack.c.l.b16 %v178
      %v254 = vunpack.c.l.b16 %v179
      %v255 = vunpack.c.l.b16 %v180
      %v256 = vunpack.c.l.b16 %v181
      %v257 = vunpack.c.l.b16 %v182
      %v258 = vunpack.c.l.b16 %v183
      %v259 = vunpack.c.l.b16 %v184
      %v260 = vunpack.c.l.b16 %v185
      %v261 = vunpack.c.l.b16 %v186
      %v262 = vunpack.c.l.b16 %v187
      %v263 = vunpack.c.l.b16 %v188
      %v264 = vunpack.c.l.b16 %v189
      %v265 = vunpack.c.l.b16 %v190
      %v266 = vunpack.c.l.b16 %v191
      %v267 = vunpack.c.l.b16 %v192
      %v268 = vunpack.c.l.b16 %v193
      %v269 = vunpack.c.l.b16 %v194
      %v270 = vunpack.c.l.b16 %v195
      %v271 = vunpack.c.l.b16 %v196
      %v272 = vunpack.c.l.b16 %v197
      %v273 = vunpack.c.l.b16 %v198
      %v274 = vunpack.c.l.b16 %v199
      %v275 = vunpack.c.l.b16 %v200
      %v276 = vunpack.c.l.b16 %v201
      %v277 = vunpack.c.l.b16 %v202
      %v278 = vunpack.c.l.b16 %v203
      %v279 = vpack.c.b16 %v248, %v247
      %v280 = vpack.c.b16 %v250, %v249
      %v281 = vpack.c.b16 %v252, %v251
      %v282 = vpack.c.b16 %v254, %v253
      %v283 = vpack.c.b16 %v256, %v255
      %v284 = vpack.c.b16 %v258, %v257
      %v285 = vpack.c.b16 %v260, %v259
      %v286 = vpack.c.b16 %v262, %v261
      %v287 = vpack.c.b16 %v264, %v263
      %v288 = vpack.c.b16 %v266, %v265
      %v289 = vpack.c.b16 %v268, %v267
      %v290 = vpack.c.b16 %v270, %v269
      %v291 = vpack.c.b16 %v272, %v271
      %v292 = vpack.c.b16 %v274, %v273
      %v293 = vpack.c.b16 %v276, %v275
      %v294 = vpack.c.b16 %v278, %v277
      %v299 = vunpack.c.l.b16 %v204
      %v300 = vunpack.c.l.b16 %v205
      %v301 = vunpack.c.l.b16 %v206
      %v302 = vunpack.c.l.b16 %v207
      %v303 = vpack.c.b16 %v300, %v299
      %v304 = vpack.c.b16 %v302, %v301
      %vm306 = vcmask 220160
      %v308 = vsel %vm306, %v279, 0
      %v311 = vsel %vm306, %v280, 0
      %v314 = vsel %vm306, %v281, 0
      %v317 = vsel %vm306, %v282, 0
      %v320 = vsel %vm306, %v283, 0
      %v323 = vsel %vm306, %v284, 0
      %v326 = vsel %vm306, %v285, 0
      %v329 = vsel %vm306, %v286, 0
      %v332 = vsel %vm306, %v287, 0
      %v335 = vsel %vm306, %v288, 0
      %v338 = vsel %vm306, %v289, 0
      %v341 = vsel %vm306, %v290, 0
      %v344 = vsel %vm306, %v291, 0
      %v347 = vsel %vm306, %v292, 0
      %v350 = vsel %vm306, %v293, 0
      %v353 = vsel %vm306, %v294, 0
      %vm355 = vcmask 1044480
      %vm356 = vcmask 1045504
      %v357 = vsel %vm355, 4294967295, 65535
      %v358 = vsel %vm356, %v357, 0
      %v360 = vand.u32 %v304, %v358
      %362 = vmatprep.subr.bf16.mxu0 0
      %363 = vmatpush1.bf16.msra.mxu0 %v303
      %364 = vmatprep.subr.bf16.mxu0 0
      %365 = vmatpush1.bf16.msra.mxu0 %v360
      %366 = vmatprep.subr.bf16.mxu0 0
      %367 = vmatpush1.bf16.msra.mxu0 0
      %368 = vmatprep.subr.bf16.mxu0 0
      %369 = vmatpush1.bf16.msra.mxu0 0
      %370 = vmatprep.subr.bf16.mxu0 0
      %371 = vmatpush1.bf16.msra.mxu0 0
      %372 = vmatprep.subr.bf16.mxu0 0
      %373 = vmatpush1.bf16.msra.mxu0 0
      %374 = vmatprep.subr.bf16.mxu0 0
      %375 = vmatpush1.bf16.msra.mxu0 0
      %376 = vmatprep.subr.bf16.mxu0 0
      %377 = vmatpush1.bf16.msra.mxu0 0
      %378 = vmatprep.subr.bf16.mxu0 0
      %379 = vmatpush1.bf16.msra.mxu0 0
      %380 = vmatprep.subr.bf16.mxu0 0
      %381 = vmatpush1.bf16.msra.mxu0 0
      %382 = vmatprep.subr.bf16.mxu0 0
      %383 = vmatpush1.bf16.msra.mxu0 0
      %384 = vmatprep.subr.bf16.mxu0 0
      %385 = vmatpush1.bf16.msra.mxu0 0
      %386 = vmatprep.subr.bf16.mxu0 0
      %387 = vmatpush1.bf16.msra.mxu0 0
      %388 = vmatprep.subr.bf16.mxu0 0
      %389 = vmatpush1.bf16.msra.mxu0 0
      %390 = vmatprep.subr.bf16.mxu0 0
      %391 = vmatpush1.bf16.msra.mxu0 0
      %392 = vmatprep.subr.bf16.mxu0 0
      %393 = vmatpush1.bf16.msra.mxu0 0
      %394 = vmatprep.mubr.bf16.mxu0 0
      %395 = vmatmul.mubr.bf16.gmra.mrb[0].mxu0 %v308
      %v396 = vpop.f32.mrb[0].mxu0
      %v397 = vadd.f32 %v213, %v396
      %v398 = vpop.f32.mrb[0].mxu0
      %v399 = vpop.f32.mrb[0].mxu0
      %v400 = vadd.f32 %v213, %v399
      %v401 = vpop.f32.mrb[0].mxu0
      %402 = vmatprep.mubr.bf16.mxu0 0
      %403 = vmatmul.mubr.bf16.gmra.mrb[0].mxu0 %v311
      %v404 = vpop.f32.mrb[0].mxu0
      %v405 = vadd.f32 %v213, %v404
      %v406 = vpop.f32.mrb[0].mxu0
      %v407 = vpop.f32.mrb[0].mxu0
      %v408 = vadd.f32 %v213, %v407
      %v409 = vpop.f32.mrb[0].mxu0
      %410 = vmatprep.mubr.bf16.mxu0 0
      %411 = vmatmul.mubr.bf16.gmra.mrb[0].mxu0 %v314
      %v412 = vpop.f32.mrb[0].mxu0
      %v413 = vadd.f32 %v213, %v412
      %v414 = vpop.f32.mrb[0].mxu0
      %v415 = vpop.f32.mrb[0].mxu0
      %v416 = vadd.f32 %v213, %v415
      %v417 = vpop.f32.mrb[0].mxu0
      %418 = vmatprep.mubr.bf16.mxu0 0
      %419 = vmatmul.mubr.bf16.gmra.mrb[0].mxu0 %v317
      %v420 = vpop.f32.mrb[0].mxu0
      %v421 = vadd.f32 %v213, %v420
      %v422 = vpop.f32.mrb[0].mxu0
      %v423 = vpop.f32.mrb[0].mxu0
      %v424 = vadd.f32 %v213, %v423
      %v425 = vpop.f32.mrb[0].mxu0
      %426 = vmatprep.mubr.bf16.mxu0 0
      %427 = vmatmul.mubr.bf16.gmra.mrb[0].mxu0 %v320
      %v428 = vpop.f32.mrb[0].mxu0
      %v429 = vadd.f32 %v213, %v428
      %v430 = vpop.f32.mrb[0].mxu0
      %v431 = vpop.f32.mrb[0].mxu0
      %v432 = vadd.f32 %v213, %v431
      %v433 = vpop.f32.mrb[0].mxu0
      %434 = vmatprep.mubr.bf16.mxu0 0
      %435 = vmatmul.mubr.bf16.gmra.mrb[0].mxu0 %v323
      %v436 = vpop.f32.mrb[0].mxu0
      %v437 = vadd.f32 %v213, %v436
      %v438 = vpop.f32.mrb[0].mxu0
      %v439 = vpop.f32.mrb[0].mxu0
      %v440 = vadd.f32 %v213, %v439
      %v441 = vpop.f32.mrb[0].mxu0
      %442 = vmatprep.mubr.bf16.mxu0 0
      %443 = vmatmul.mubr.bf16.gmra.mrb[0].mxu0 %v326
      %v444 = vpop.f32.mrb[0].mxu0
      %v445 = vadd.f32 %v213, %v444
      %v446 = vpop.f32.mrb[0].mxu0
      %v447 = vpop.f32.mrb[0].mxu0
      %v448 = vadd.f32 %v213, %v447
      %v449 = vpop.f32.mrb[0].mxu0
      %450 = vmatprep.mubr.bf16.mxu0 0
      %451 = vmatmul.mubr.bf16.gmra.mrb[0].mxu0 %v329
      %v452 = vpop.f32.mrb[0].mxu0
      %v453 = vadd.f32 %v213, %v452
      %v454 = vpop.f32.mrb[0].mxu0
      %v455 = vpop.f32.mrb[0].mxu0
      %v456 = vadd.f32 %v213, %v455
      %v457 = vpop.f32.mrb[0].mxu0
      %458 = vmatprep.mubr.bf16.mxu0 0
      %459 = vmatmul.mubr.bf16.gmra.mrb[0].mxu0 %v332
      %v460 = vpop.f32.mrb[0].mxu0
      %v461 = vadd.f32 %v213, %v460
      %v462 = vpop.f32.mrb[0].mxu0
      %v463 = vpop.f32.mrb[0].mxu0
      %v464 = vadd.f32 %v213, %v463
      %v465 = vpop.f32.mrb[0].mxu0
      %466 = vmatprep.mubr.bf16.mxu0 0
      %467 = vmatmul.mubr.bf16.gmra.mrb[0].mxu0 %v335
      %v468 = vpop.f32.mrb[0].mxu0
      %v469 = vadd.f32 %v213, %v468
      %v470 = vpop.f32.mrb[0].mxu0
      %v471 = vpop.f32.mrb[0].mxu0
      %v472 = vadd.f32 %v213, %v471
      %v473 = vpop.f32.mrb[0].mxu0
      %474 = vmatprep.mubr.bf16.mxu0 0
      %475 = vmatmul.mubr.bf16.gmra.mrb[0].mxu0 %v338
      %v476 = vpop.f32.mrb[0].mxu0
      %v477 = vadd.f32 %v213, %v476
      %v478 = vpop.f32.mrb[0].mxu0
      %v479 = vpop.f32.mrb[0].mxu0
      %v480 = vadd.f32 %v213, %v479
      %v481 = vpop.f32.mrb[0].mxu0
      %482 = vmatprep.mubr.bf16.mxu0 0
      %483 = vmatmul.mubr.bf16.gmra.mrb[0].mxu0 %v341
      %v484 = vpop.f32.mrb[0].mxu0
      %v485 = vadd.f32 %v213, %v484
      %v486 = vpop.f32.mrb[0].mxu0
      %v487 = vpop.f32.mrb[0].mxu0
      %v488 = vadd.f32 %v213, %v487
      %v489 = vpop.f32.mrb[0].mxu0
      %490 = vmatprep.mubr.bf16.mxu0 0
      %491 = vmatmul.mubr.bf16.gmra.mrb[0].mxu0 %v344
      %v492 = vpop.f32.mrb[0].mxu0
      %v493 = vadd.f32 %v213, %v492
      %v494 = vpop.f32.mrb[0].mxu0
      %v495 = vpop.f32.mrb[0].mxu0
      %v496 = vadd.f32 %v213, %v495
      %v497 = vpop.f32.mrb[0].mxu0
      %498 = vmatprep.mubr.bf16.mxu0 0
      %499 = vmatmul.mubr.bf16.gmra.mrb[0].mxu0 %v347
      %v500 = vpop.f32.mrb[0].mxu0
      %v501 = vadd.f32 %v213, %v500
      %v502 = vpop.f32.mrb[0].mxu0
      %v503 = vpop.f32.mrb[0].mxu0
      %v504 = vadd.f32 %v213, %v503
      %v505 = vpop.f32.mrb[0].mxu0
      %506 = vmatprep.mubr.bf16.mxu0 0
      %507 = vmatmul.mubr.bf16.gmra.mrb[0].mxu0 %v350
      %v508 = vpop.f32.mrb[0].mxu0
      %v509 = vadd.f32 %v213, %v508
      %v510 = vpop.f32.mrb[0].mxu0
      %v511 = vpop.f32.mrb[0].mxu0
      %v512 = vadd.f32 %v213, %v511
      %v513 = vpop.f32.mrb[0].mxu0
      %514 = vmatprep.mubr.bf16.mxu0 0
      %515 = vmatmul.mubr.bf16.gmra.mrb[0].mxu0 %v353
      %v516 = vpop.f32.mrb[0].mxu0
      %v517 = vadd.f32 %v213, %v516
      %v518 = vpop.f32.mrb[0].mxu0
      %v519 = vpop.f32.mrb[0].mxu0
      %v520 = vadd.f32 %v213, %v519
      %v521 = vpop.f32.mrb[0].mxu0
      %522 = vdwg.mxu0
      %v523 = vmax.f32 %v397, 0.0
      %v524 = vmax.f32 %v400, 0.0
      %v525 = vmax.f32 %v405, 0.0
      %v526 = vmax.f32 %v408, 0.0
      %v527 = vmax.f32 %v413, 0.0
      %v528 = vmax.f32 %v416, 0.0
      %v529 = vmax.f32 %v421, 0.0
      %v530 = vmax.f32 %v424, 0.0
      %v531 = vmax.f32 %v429, 0.0
      %v532 = vmax.f32 %v432, 0.0
      %v533 = vmax.f32 %v437, 0.0
      %v534 = vmax.f32 %v440, 0.0
      %v535 = vmax.f32 %v445, 0.0
      %v536 = vmax.f32 %v448, 0.0
      %v537 = vmax.f32 %v453, 0.0
      %v538 = vmax.f32 %v456, 0.0
      %v539 = vmax.f32 %v461, 0.0
      %v540 = vmax.f32 %v464, 0.0
      %v541 = vmax.f32 %v469, 0.0
      %v542 = vmax.f32 %v472, 0.0
      %v543 = vmax.f32 %v477, 0.0
      %v544 = vmax.f32 %v480, 0.0
      %v545 = vmax.f32 %v485, 0.0
      %v546 = vmax.f32 %v488, 0.0
      %v547 = vmax.f32 %v493, 0.0
      %v548 = vmax.f32 %v496, 0.0
      %v549 = vmax.f32 %v501, 0.0
      %v550 = vmax.f32 %v504, 0.0
      %v551 = vmax.f32 %v509, 0.0
      %v552 = vmax.f32 %v512, 0.0
      %v553 = vmax.f32 %v517, 0.0
      %v554 = vmax.f32 %v520, 0.0
      %v555 = vpack.c.bf16 %v524, %v523
      %v556 = vpack.c.bf16 %v526, %v525
      %v557 = vpack.c.bf16 %v528, %v527
      %v558 = vpack.c.bf16 %v530, %v529
      %v559 = vpack.c.bf16 %v532, %v531
      %v560 = vpack.c.bf16 %v534, %v533
      %v561 = vpack.c.bf16 %v536, %v535
      %v562 = vpack.c.bf16 %v538, %v537
      %v563 = vpack.c.bf16 %v540, %v539
      %v564 = vpack.c.bf16 %v542, %v541
      %v565 = vpack.c.bf16 %v544, %v543
      %v566 = vpack.c.bf16 %v546, %v545
      %v567 = vpack.c.bf16 %v548, %v547
      %v568 = vpack.c.bf16 %v550, %v549
      %v569 = vpack.c.bf16 %v552, %v551
      %v570 = vpack.c.bf16 %v554, %v553
      %v587 = vunpack.c.l.b16 %v555
      %v588 = vunpack.c.h.b16 %v555
      %v589 = vunpack.c.l.b16 %v556
      %v590 = vunpack.c.h.b16 %v556
      %v591 = vunpack.c.l.b16 %v557
      %v592 = vunpack.c.h.b16 %v557
      %v593 = vunpack.c.l.b16 %v558
      %v594 = vunpack.c.h.b16 %v558
      %v595 = vunpack.c.l.b16 %v559
      %v596 = vunpack.c.h.b16 %v559
      %v597 = vunpack.c.l.b16 %v560
      %v598 = vunpack.c.h.b16 %v560
      %v599 = vunpack.c.l.b16 %v561
      %v600 = vunpack.c.h.b16 %v561
      %v601 = vunpack.c.l.b16 %v562
      %v602 = vunpack.c.h.b16 %v562
      %v603 = vunpack.c.l.b16 %v563
      %v604 = vunpack.c.h.b16 %v563
      %v605 = vunpack.c.l.b16 %v564
      %v606 = vunpack.c.h.b16 %v564
      %v607 = vunpack.c.l.b16 %v565
      %v608 = vunpack.c.h.b16 %v565
      %v609 = vunpack.c.l.b16 %v566
      %v610 = vunpack.c.h.b16 %v566
      %v611 = vunpack.c.l.b16 %v567
      %v612 = vunpack.c.h.b16 %v567
      %v613 = vunpack.c.l.b16 %v568
      %v614 = vunpack.c.h.b16 %v568
      %v615 = vunpack.c.l.b16 %v569
      %v616 = vunpack.c.h.b16 %v569
      %v617 = vunpack.c.l.b16 %v570
      %v618 = vunpack.c.h.b16 %v570
      %v619 = vpack.c.b16 %v587, %v587
      %v620 = vpack.c.b16 %v588, %v588
      %v621 = vpack.c.b16 %v589, %v589
      %v622 = vpack.c.b16 %v590, %v590
      %v623 = vpack.c.b16 %v591, %v591
      %v624 = vpack.c.b16 %v592, %v592
      %v625 = vpack.c.b16 %v593, %v593
      %v626 = vpack.c.b16 %v594, %v594
      %v627 = vpack.c.b16 %v595, %v595
      %v628 = vpack.c.b16 %v596, %v596
      %v629 = vpack.c.b16 %v597, %v597
      %v630 = vpack.c.b16 %v598, %v598
      %v631 = vpack.c.b16 %v599, %v599
      %v632 = vpack.c.b16 %v600, %v600
      %v633 = vpack.c.b16 %v601, %v601
      %v634 = vpack.c.b16 %v602, %v602
      %v635 = vpack.c.b16 %v603, %v603
      %v636 = vpack.c.b16 %v604, %v604
      %v637 = vpack.c.b16 %v605, %v605
      %v638 = vpack.c.b16 %v606, %v606
      %v639 = vpack.c.b16 %v607, %v607
      %v640 = vpack.c.b16 %v608, %v608
      %v641 = vpack.c.b16 %v609, %v609
      %v642 = vpack.c.b16 %v610, %v610
      %v643 = vpack.c.b16 %v611, %v611
      %v644 = vpack.c.b16 %v612, %v612
      %v645 = vpack.c.b16 %v613, %v613
      %v646 = vpack.c.b16 %v614, %v614
      %v647 = vpack.c.b16 %v615, %v615
      %v648 = vpack.c.b16 %v616, %v616
      %v649 = vpack.c.b16 %v617, %v617
      %v650 = vpack.c.b16 %v618, %v618
      %vm683 = vcmask 125952
      %684 = vst.msk [vmem:[%s170] sm:$0xf] %vm683, %v619
      %685 = vst.msk [vmem:[%s170 + $0x4] sm:$0xf] %vm683, %v620
      %686 = vst.msk [vmem:[%s170 + $0x8] sm:$0xf] %vm683, %v621
      %687 = vst.msk [vmem:[%s170 + $0xc] sm:$0xf] %vm683, %v622
      %688 = vst.msk [vmem:[%s170 + $0x10] sm:$0xf] %vm683, %v623
      %689 = vst.msk [vmem:[%s170 + $0x14] sm:$0xf] %vm683, %v624
      %690 = vst.msk [vmem:[%s170 + $0x18] sm:$0xf] %vm683, %v625
      %691 = vst.msk [vmem:[%s170 + $0x1c] sm:$0xf] %vm683, %v626
      %692 = vst.msk [vmem:[%s170 + $0x20] sm:$0xf] %vm683, %v627
      %693 = vst.msk [vmem:[%s170 + $0x24] sm:$0xf] %vm683, %v628
      %694 = vst.msk [vmem:[%s170 + $0x28] sm:$0xf] %vm683, %v629
      %695 = vst.msk [vmem:[%s170 + $0x2c] sm:$0xf] %vm683, %v630
      %696 = vst.msk [vmem:[%s170 + $0x30] sm:$0xf] %vm683, %v631
      %697 = vst.msk [vmem:[%s170 + $0x34] sm:$0xf] %vm683, %v632
      %698 = vst.msk [vmem:[%s170 + $0x38] sm:$0xf] %vm683, %v633
      %699 = vst.msk [vmem:[%s170 + $0x3c] sm:$0xf] %vm683, %v634
      %700 = vst.msk [vmem:[%s170 + $0x40] sm:$0xf] %vm683, %v635
      %701 = vst.msk [vmem:[%s170 + $0x44] sm:$0xf] %vm683, %v636
      %702 = vst.msk [vmem:[%s170 + $0x48] sm:$0xf] %vm683, %v637
      %703 = vst.msk [vmem:[%s170 + $0x4c] sm:$0xf] %vm683, %v638
      %704 = vst.msk [vmem:[%s170 + $0x50] sm:$0xf] %vm683, %v639
      %705 = vst.msk [vmem:[%s170 + $0x54] sm:$0xf] %vm683, %v640
      %706 = vst.msk [vmem:[%s170 + $0x58] sm:$0xf] %vm683, %v641
      %707 = vst.msk [vmem:[%s170 + $0x5c] sm:$0xf] %vm683, %v642
      %708 = vst.msk [vmem:[%s170 + $0x60] sm:$0xf] %vm683, %v643
      %709 = vst.msk [vmem:[%s170 + $0x64] sm:$0xf] %vm683, %v644
      %710 = vst.msk [vmem:[%s170 + $0x68] sm:$0xf] %vm683, %v645
      %711 = vst.msk [vmem:[%s170 + $0x6c] sm:$0xf] %vm683, %v646
      %712 = vst.msk [vmem:[%s170 + $0x70] sm:$0xf] %vm683, %v647
      %713 = vst.msk [vmem:[%s170 + $0x74] sm:$0xf] %vm683, %v648
      %714 = vst.msk [vmem:[%s170 + $0x78] sm:$0xf] %vm683, %v649
      %715 = vst.msk [vmem:[%s170 + $0x7c] sm:$0xf] %vm683, %v650
      %p716 = scmp.lt.s32.totalorder %s14, 1
      %s717 = scalar_select %p716, %s14, 1
      %s718 = smul.addr %s717, 32
      %s719 = smul.addr %s718, 4
      %s720 = scalar_lea.vmem %s3, %s719
      // Predicated region
      $region33: #{forward.8} parent=31 // pred_check
        %p721 = pneg %p100
      $region34: #{forward.8} parent=31 // pred_check_branch
        %723 = sbr.rel (%p721) target = $region36
      $region35: #{forward.8} parent=31 // pred_region
        _
      $region36: #{forward.8} parent=31 // pred_fallthru
        _
    $region32: #{forward.8} parent=5 // pred_fallthru
      _
    %p724 = scmp.le.s32.totalorder 2, %s9
    // Predicated region
    $region37: #{forward.8} parent=5 // pred_check
      %p725 = pneg %p724
    $region38: #{forward.8} parent=5 // pred_check_branch
      %727 = sbr.rel (%p725) target = $region40
    $region39: #{forward.8} parent=5 // pred_region
      %s728 = ssub.s32 %s9, 2
      // Predicated region
      $region41: #{forward.8} parent=39 // pred_check
        %p729 = pneg %p106
      $region42: #{forward.8} parent=39 // pred_check_branch
        %731 = sbr.rel (%p729) target = $region44
      $region43: #{forward.8} parent=39 // pred_region
        %p732 = scmp.lt.s32.totalorder %s15, 1
        %s733 = scalar_select %p732, %s15, 1
        %s734 = smul.addr %s733, 32
        %s735 = smul.addr %s734, 4
        %s736 = scalar_lea.vmem %s3, %s735
      $region44: #{forward.8} parent=39 // pred_fallthru
        _
    $region40: #{forward.8} parent=5 // pred_fallthru
      _
  $region6: #{forward.8} parent=0 // loop_footer
    %s13 = sadd.s32 1, %s9
  $region7: #{forward.8} parent=0 // loop_footer_branch
    %8 = sbr.rel target = $region3
  $region8: #{forward.8} parent=0 // loop_exit
    _

// kernel: forward.9
$region0: #{forward.9}
  #allocation0 [shape = 'u32[]', space=smem, size = 0x4, offset = 0x4, fixed_abs, tag = 'smem constant byte address 0x4 - core index']
  #allocation1 [shape = 'u32[144,128]{1,0:T(1,128)}', space=vmem, size = 0x12000, scoped, tag = 'internal scratch']
  %s0 = inlined_call_operand.vmem [shape: bf16[2,256,144], index: 0, kind: input, shape index: {}]
  %s1 = inlined_call_operand.vmem [shape: bf16[144,16], index: 1, kind: input, shape index: {}]
  %s2 = inlined_call_operand.vmem [shape: f32[1,16], index: 2, kind: input, shape index: {}]
  %s3 = inlined_call_operand.vmem [shape: bf16[2,256,16], index: 3, kind: output, shape index: {}]
  %s4 = sld [smem:[#allocation0]]
  $region45: #{forward.9} parent=0
    _
  %s6 = ssub.s32 1, %s4
  %s7 = scalar_select 0, %s6, %s4
  loop: start=0, step=1, limit=4
  $region2: #{forward.9} parent=0 // loop_pre_header
    _
  $region3: #{forward.9} parent=0 // loop_header
    %s9 = sphi 0, %s13
    %p10 = scmp.ge.s32.totalorder %s9, 4
    %s19 = sphi 0, %s21
    %s22 = sphi 0, %s19
    %s23 = sphi 0, %s22
    %s39 = sphi 0, %s23
    %s43 = sphi 0, %s43
    %s45 = sphi 0, %s43
    %s46 = sphi 0, %s45
    %s60 = sphi 0, %s46
    %s64 = sphi 0, %s64
    %s66 = sphi 0, %s64
    %s67 = sphi 0, %s66
    %s81 = sphi 0, %s67
    %s87 = sphi 0, %s89
    %s90 = sphi 0, %s87
    %s91 = sphi 0, %s90
    %s107 = sphi 0, %s91
  $region4: #{forward.9} parent=0 // loop_header_branch
    %12 = sbr.rel (%p10) target = $region8
  $region5: #{forward.9} parent=0 // loop_body
    %s14 = ssub.s32 %s9, 1
    %s15 = ssub.s32 %s9, 2
    %s16 = sadd.s32 %s9, 1
    %s17 = ssub.s32 %s9, %s16
    %p18 = scmp.eq.s32.totalorder %s17, 0
    %s20 = sadd.s32 %s19, 1
    %s21 = scalar_select %p18, %s19, %s20
    %p24 = pneg %p18
    %p25 = scmp.eq.s32.totalorder %s9, 1
    %p26 = por %p24, %p25
    %p27 = scmp.ne.s32.totalorder %s19, %s22
    %p28 = scmp.eq.s32.totalorder %s9, 0
    %p29 = por %p27, %p28
    %p30 = scmp.ne.s32.totalorder %s19, %s22
    %p31 = scmp.eq.s32.totalorder %s14, 1
    %p32 = por %p30, %p31
    %p33 = scmp.ne.s32.totalorder %s22, %s23
    %p34 = scmp.eq.s32.totalorder %s14, 0
    %p35 = por %p33, %p34
    %p36 = scmp.ne.s32.totalorder %s22, %s23
    %p37 = scmp.eq.s32.totalorder %s15, 1
    %p38 = por %p36, %p37
    %p40 = scmp.ne.s32.totalorder %s23, %s39
    %p41 = scmp.eq.s32.totalorder %s15, 0
    %p42 = por %p40, %p41
    %s44 = sadd.s32 %s43, 1
    %p47 = scmp.eq.s32.totalorder %s9, 1
    %p48 = scmp.ne.s32.totalorder %s43, %s45
    %p49 = scmp.eq.s32.totalorder %s9, 0
    %p50 = por %p48, %p49
    %p51 = scmp.ne.s32.totalorder %s43, %s45
    %p52 = scmp.eq.s32.totalorder %s14, 1
    %p53 = por %p51, %p52
    %p54 = scmp.ne.s32.totalorder %s45, %s46
    %p55 = scmp.eq.s32.totalorder %s14, 0
    %p56 = por %p54, %p55
    %p57 = scmp.ne.s32.totalorder %s45, %s46
    %p58 = scmp.eq.s32.totalorder %s15, 1
    %p59 = por %p57, %p58
    %p61 = scmp.ne.s32.totalorder %s46, %s60
    %p62 = scmp.eq.s32.totalorder %s15, 0
    %p63 = por %p61, %p62
    %s65 = sadd.s32 %s64, 1
    %p68 = scmp.eq.s32.totalorder %s9, 1
    %p69 = scmp.ne.s32.totalorder %s64, %s66
    %p70 = scmp.eq.s32.totalorder %s9, 0
    %p71 = por %p69, %p70
    %p72 = scmp.ne.s32.totalorder %s64, %s66
    %p73 = scmp.eq.s32.totalorder %s14, 1
    %p74 = por %p72, %p73
    %p75 = scmp.ne.s32.totalorder %s66, %s67
    %p76 = scmp.eq.s32.totalorder %s14, 0
    %p77 = por %p75, %p76
    %p78 = scmp.ne.s32.totalorder %s66, %s67
    %p79 = scmp.eq.s32.totalorder %s15, 1
    %p80 = por %p78, %p79
    %p82 = scmp.ne.s32.totalorder %s67, %s81
    %p83 = scmp.eq.s32.totalorder %s15, 0
    %p84 = por %p82, %p83
    %s85 = ssub.s32 %s9, %s16
    %p86 = scmp.eq.s32.totalorder %s85, 0
    %s88 = sadd.s32 %s87, 1
    %s89 = scalar_select %p86, %s87, %s88
    %p92 = pneg %p86
    %p93 = scmp.eq.s32.totalorder %s9, 1
    %p94 = por %p92, %p93
    %p95 = scmp.ne.s32.totalorder %s87, %s90
    %p96 = scmp.eq.s32.totalorder %s9, 0
    %p97 = por %p95, %p96
    %p98 = scmp.ne.s32.totalorder %s87, %s90
    %p99 = scmp.eq.s32.totalorder %s14, 1
    %p100 = por %p98, %p99
    %p101 = scmp.ne.s32.totalorder %s90, %s91
    %p102 = scmp.eq.s32.totalorder %s14, 0
    %p103 = por %p101, %p102
    %p104 = scmp.ne.s32.totalorder %s90, %s91
    %p105 = scmp.eq.s32.totalorder %s15, 1
    %p106 = por %p104, %p105
    %p108 = scmp.ne.s32.totalorder %s91, %s107
    %p109 = scmp.eq.s32.totalorder %s15, 0
    %p110 = por %p108, %p109
    %p111 = scmp.le.s32.totalorder 1, %s9
    %p112 = scmp.lt.s32.totalorder %s9, 3
    %p113 = pnand %p111, %p112
    %p114 = pneg %p113
    // Predicated region
    $region9: #{forward.9} parent=5 // pred_check
      _
    $region10: #{forward.9} parent=5 // pred_check_branch
      %116 = sbr.rel (%p113) target = $region12
    $region11: #{forward.9} parent=5 // pred_region
      %s117 = ssub.s32 %s9, 1
      // Predicated region
      $region13: #{forward.9} parent=11 // pred_check
        %p118 = pneg %p56
      $region14: #{forward.9} parent=11 // pred_check_branch
        %120 = sbr.rel (%p118) target = $region16
      $region15: #{forward.9} parent=11 // pred_region
        _
      $region16: #{forward.9} parent=11 // pred_fallthru
        _
      // Predicated region
      $region17: #{forward.9} parent=11 // pred_check
        %p121 = pneg %p77
      $region18: #{forward.9} parent=11 // pred_check_branch
        %123 = sbr.rel (%p121) target = $region20
      $region19: #{forward.9} parent=11 // pred_region
        _
      $region20: #{forward.9} parent=11 // pred_fallthru
        _
    $region12: #{forward.9} parent=5 // pred_fallthru
      _
    %p124 = scmp.lt.s32.totalorder %s9, 2
    // Predicated region
    $region21: #{forward.9} parent=5 // pred_check
      %p125 = pneg %p124
    $region22: #{forward.9} parent=5 // pred_check_branch
      %127 = sbr.rel (%p125) target = $region24
    $region23: #{forward.9} parent=5 // pred_region
      // Predicated region
      $region25: #{forward.9} parent=23 // pred_check
        %p128 = pneg %p29
      $region26: #{forward.9} parent=23 // pred_check_branch
        %130 = sbr.rel (%p128) target = $region28
      $region27: #{forward.9} parent=23 // pred_region
        %p131 = scmp.lt.s32.totalorder %s9, 1
        %s132 = scalar_select %p131, %s9, 1
        %s133 = smul.addr %s132, 64
        %s134 = smul.addr %s133, 4
        %s135 = scalar_lea.vmem %s0, %s134
      $region28: #{forward.9} parent=23 // pred_fallthru
        _
    $region24: #{forward.9} parent=5 // pred_fallthru
      _
    %p136 = scmp.le.s32.totalorder 1, %s9
    %p137 = scmp.lt.s32.totalorder %s9, 3
    %p138 = pnand %p136, %p137
    %p139 = pneg %p138
    // Predicated region
    $region29: #{forward.9} parent=5 // pred_check
      _
    $region30: #{forward.9} parent=5 // pred_check_branch
      %141 = sbr.rel (%p138) target = $region32
    $region31: #{forward.9} parent=5 // pred_region
      %s142 = ssub.s32 %s9, 1
      %p143 = scmp.lt.s32.totalorder %s14, 1
      %s144 = scalar_select %p143, %s14, 1
      %s145 = smul.addr %s144, 64
      %s146 = smul.addr %s145, 4
      %s147 = scalar_lea.vmem %s0, %s146
      %p148 = pneg %p35
      %p149 = pneg %p32
      %p150 = pneg %p56
      %p151 = pneg %p53
      %p152 = pneg %p77
      %p153 = pneg %p74
      %p154 = pneg %p103
      %p155 = pneg %p100
      %p156 = scmp.lt.s32.totalorder %s14, 1
      %s157 = scalar_select %p156, %s14, 1
      %s158 = smul.addr %s157, 32
      %s159 = smul.addr %s158, 4
      %s160 = scalar_lea.vmem %s3, %s159
      %p161 = scmp.lt.s32.totalorder %s14, 1
      %s162 = scalar_select %p161, %s14, 1
      %s163 = smul.addr %s162, 64
      %s164 = smul.addr %s163, 4
      %s165 = scalar_lea.vmem %s0, %s164
      %p166 = scmp.lt.s32.totalorder %s14, 1
      %s167 = scalar_select %p166, %s14, 1
      %s168 = smul.addr %s167, 32
      %s169 = smul.addr %s168, 4
      %s170 = scalar_lea.vmem %s3, %s169
      %v172 = vld [vmem:[%s165] sm:$0xff]
      %v173 = vld [vmem:[%s165 + $0x8] sm:$0xff]
      %v174 = vld [vmem:[%s165 + $0x10] sm:$0xff]
      %v175 = vld [vmem:[%s165 + $0x18] sm:$0xff]
      %v176 = vld [vmem:[%s165 + $0x20] sm:$0xff]
      %v177 = vld [vmem:[%s165 + $0x28] sm:$0xff]
      %v178 = vld [vmem:[%s165 + $0x30] sm:$0xff]
      %v179 = vld [vmem:[%s165 + $0x38] sm:$0xff]
      %v180 = vld [vmem:[%s165 + $0x40] sm:$0xff]
      %v181 = vld [vmem:[%s165 + $0x48] sm:$0xff]
      %v182 = vld [vmem:[%s165 + $0x50] sm:$0xff]
      %v183 = vld [vmem:[%s165 + $0x58] sm:$0xff]
      %v184 = vld [vmem:[%s165 + $0x60] sm:$0xff]
      %v185 = vld [vmem:[%s165 + $0x68] sm:$0xff]
      %v186 = vld [vmem:[%s165 + $0x70] sm:$0xff]
      %v187 = vld [vmem:[%s165 + $0x78] sm:$0xff]
      %v188 = vld [vmem:[%s165 + $0x80] sm:$0xff]
      %v189 = vld [vmem:[%s165 + $0x88] sm:$0xff]
      %v190 = vld [vmem:[%s165 + $0x90] sm:$0xff]
      %v191 = vld [vmem:[%s165 + $0x98] sm:$0xff]
      %v192 = vld [vmem:[%s165 + $0xa0] sm:$0xff]
      %v193 = vld [vmem:[%s165 + $0xa8] sm:$0xff]
      %v194 = vld [vmem:[%s165 + $0xb0] sm:$0xff]
      %v195 = vld [vmem:[%s165 + $0xb8] sm:$0xff]
      %v196 = vld [vmem:[%s165 + $0xc0] sm:$0xff]
      %v197 = vld [vmem:[%s165 + $0xc8] sm:$0xff]
      %v198 = vld [vmem:[%s165 + $0xd0] sm:$0xff]
      %v199 = vld [vmem:[%s165 + $0xd8] sm:$0xff]
      %v200 = vld [vmem:[%s165 + $0xe0] sm:$0xff]
      %v201 = vld [vmem:[%s165 + $0xe8] sm:$0xff]
      %v202 = vld [vmem:[%s165 + $0xf0] sm:$0xff]
      %v203 = vld [vmem:[%s165 + $0xf8] sm:$0xff]
      %v204 = vld [vmem:[%s1] sm:$0xf]
      %v205 = vld [vmem:[%s1 + $0x4] sm:$0xf]
      %v206 = vld [vmem:[%s1 + $0x8] sm:$0xf]
      %v207 = vld [vmem:[%s1 + $0xc] sm:$0xf]
      %v208 = vld [vmem:[%s1 + $0x10] sm:$0xf]
      %v209 = vld [vmem:[%s1 + $0x14] sm:$0xf]
      %v210 = vld [vmem:[%s1 + $0x18] sm:$0xf]
      %v211 = vld [vmem:[%s1 + $0x1c] sm:$0xf]
      %v212 = vld [vmem:[%s1 + $0x20] sm:$0xf]
      %v213 = vld [vmem:[%s1 + $0x24] sm:$0xf]
      %v214 = vld [vmem:[%s1 + $0x28] sm:$0xf]
      %v215 = vld [vmem:[%s1 + $0x2c] sm:$0xf]
      %v216 = vld [vmem:[%s1 + $0x30] sm:$0xf]
      %v217 = vld [vmem:[%s1 + $0x34] sm:$0xf]
      %v218 = vld [vmem:[%s1 + $0x38] sm:$0xf]
      %v219 = vld [vmem:[%s1 + $0x3c] sm:$0xf]
      %v220 = vld [vmem:[%s1 + $0x40] sm:$0xf]
      %v221 = vld [vmem:[%s1 + $0x44] sm:$0xf]
      %v222 = vld [vmem:[%s2] sm:$0x1]
      %v224 = vlaneseq
      %v225 = vshrl.u32 %v224, 7
      %v226 = vsub.s32 0, %v225
      %v227 = vrot.slane %v222, %v226
      %v261 = vunpack.c.l.b16 %v172
      %v262 = vunpack.c.h.b16 %v172
      %v263 = vunpack.c.l.b16 %v173
      %v264 = vunpack.c.h.b16 %v173
      %v265 = vunpack.c.l.b16 %v174
      %v266 = vunpack.c.h.b16 %v174
      %v267 = vunpack.c.l.b16 %v175
      %v268 = vunpack.c.h.b16 %v175
      %v269 = vunpack.c.l.b16 %v176
      %v270 = vunpack.c.h.b16 %v176
      %v271 = vunpack.c.l.b16 %v177
      %v272 = vunpack.c.h.b16 %v177
      %v273 = vunpack.c.l.b16 %v178
      %v274 = vunpack.c.h.b16 %v178
      %v275 = vunpack.c.l.b16 %v179
      %v276 = vunpack.c.h.b16 %v179
      %v277 = vunpack.c.l.b16 %v180
      %v278 = vunpack.c.h.b16 %v180
      %v279 = vunpack.c.l.b16 %v181
      %v280 = vunpack.c.h.b16 %v181
      %v281 = vunpack.c.l.b16 %v182
      %v282 = vunpack.c.h.b16 %v182
      %v283 = vunpack.c.l.b16 %v183
      %v284 = vunpack.c.h.b16 %v183
      %v285 = vunpack.c.l.b16 %v184
      %v286 = vunpack.c.h.b16 %v184
      %v287 = vunpack.c.l.b16 %v185
      %v288 = vunpack.c.h.b16 %v185
      %v289 = vunpack.c.l.b16 %v186
      %v290 = vunpack.c.h.b16 %v186
      %v291 = vunpack.c.l.b16 %v187
      %v292 = vunpack.c.h.b16 %v187
      %v293 = vunpack.c.l.b16 %v188
      %v294 = vunpack.c.h.b16 %v188
      %v295 = vunpack.c.l.b16 %v189
      %v296 = vunpack.c.h.b16 %v189
      %v297 = vunpack.c.l.b16 %v190
      %v298 = vunpack.c.h.b16 %v190
      %v299 = vunpack.c.l.b16 %v191
      %v300 = vunpack.c.h.b16 %v191
      %v301 = vunpack.c.l.b16 %v192
      %v302 = vunpack.c.h.b16 %v192
      %v303 = vunpack.c.l.b16 %v193
      %v304 = vunpack.c.h.b16 %v193
      %v305 = vunpack.c.l.b16 %v194
      %v306 = vunpack.c.h.b16 %v194
      %v307 = vunpack.c.l.b16 %v195
      %v308 = vunpack.c.h.b16 %v195
      %v309 = vunpack.c.l.b16 %v196
      %v310 = vunpack.c.h.b16 %v196
      %v311 = vunpack.c.l.b16 %v197
      %v312 = vunpack.c.h.b16 %v197
      %v313 = vunpack.c.l.b16 %v198
      %v314 = vunpack.c.h.b16 %v198
      %v315 = vunpack.c.l.b16 %v199
      %v316 = vunpack.c.h.b16 %v199
      %v317 = vunpack.c.l.b16 %v200
      %v318 = vunpack.c.h.b16 %v200
      %v319 = vunpack.c.l.b16 %v201
      %v320 = vunpack.c.h.b16 %v201
      %v321 = vunpack.c.l.b16 %v202
      %v322 = vunpack.c.h.b16 %v202
      %v323 = vunpack.c.l.b16 %v203
      %v324 = vunpack.c.h.b16 %v203
      %v325 = vpack.c.b16 %v263, %v261
      %v326 = vpack.c.b16 %v264, %v262
      %v327 = vpack.c.b16 %v267, %v265
      %v328 = vpack.c.b16 %v268, %v266
      %v329 = vpack.c.b16 %v271, %v269
      %v330 = vpack.c.b16 %v272, %v270
      %v331 = vpack.c.b16 %v275, %v273
      %v332 = vpack.c.b16 %v276, %v274
      %v333 = vpack.c.b16 %v279, %v277
      %v334 = vpack.c.b16 %v280, %v278
      %v335 = vpack.c.b16 %v283, %v281
      %v336 = vpack.c.b16 %v284, %v282
      %v337 = vpack.c.b16 %v287, %v285
      %v338 = vpack.c.b16 %v288, %v286
      %v339 = vpack.c.b16 %v291, %v289
      %v340 = vpack.c.b16 %v292, %v290
      %v341 = vpack.c.b16 %v295, %v293
      %v342 = vpack.c.b16 %v296, %v294
      %v343 = vpack.c.b16 %v299, %v297
      %v344 = vpack.c.b16 %v300, %v298
      %v345 = vpack.c.b16 %v303, %v301
      %v346 = vpack.c.b16 %v304, %v302
      %v347 = vpack.c.b16 %v307, %v305
      %v348 = vpack.c.b16 %v308, %v306
      %v349 = vpack.c.b16 %v311, %v309
      %v350 = vpack.c.b16 %v312, %v310
      %v351 = vpack.c.b16 %v315, %v313
      %v352 = vpack.c.b16 %v316, %v314
      %v353 = vpack.c.b16 %v319, %v317
      %v354 = vpack.c.b16 %v320, %v318
      %v355 = vpack.c.b16 %v323, %v321
      %v356 = vpack.c.b16 %v324, %v322
      %v391 = vunpack.c.l.b16 %v204
      %v392 = vunpack.c.l.b16 %v205
      %v393 = vunpack.c.l.b16 %v206
      %v394 = vunpack.c.l.b16 %v207
      %v395 = vunpack.c.l.b16 %v208
      %v396 = vunpack.c.l.b16 %v209
      %v397 = vunpack.c.l.b16 %v210
      %v398 = vunpack.c.l.b16 %v211
      %v399 = vunpack.c.l.b16 %v212
      %v400 = vunpack.c.l.b16 %v213
      %v401 = vunpack.c.l.b16 %v214
      %v402 = vunpack.c.l.b16 %v215
      %v403 = vunpack.c.l.b16 %v216
      %v404 = vunpack.c.l.b16 %v217
      %v405 = vunpack.c.l.b16 %v218
      %v406 = vunpack.c.l.b16 %v219
      %v407 = vunpack.c.l.b16 %v220
      %v408 = vunpack.c.l.b16 %v221
      %v409 = vpack.c.b16 %v392, %v391
      %v410 = vpack.c.b16 %v394, %v393
      %v411 = vpack.c.b16 %v396, %v395
      %v412 = vpack.c.b16 %v398, %v397
      %v413 = vpack.c.b16 %v400, %v399
      %v414 = vpack.c.b16 %v402, %v401
      %v415 = vpack.c.b16 %v404, %v403
      %v416 = vpack.c.b16 %v406, %v405
      %v417 = vpack.c.b16 %v408, %v407
      %vm427 = vcmask 130048
      %v429 = vsel %vm427, %v326, 0
      %v432 = vsel %vm427, %v328, 0
      %v435 = vsel %vm427, %v330, 0
      %v438 = vsel %vm427, %v332, 0
      %v441 = vsel %vm427, %v334, 0
      %v444 = vsel %vm427, %v336, 0
      %v447 = vsel %vm427, %v338, 0
      %v450 = vsel %vm427, %v340, 0
      %v453 = vsel %vm427, %v342, 0
      %v456 = vsel %vm427, %v344, 0
      %v459 = vsel %vm427, %v346, 0
      %v462 = vsel %vm427, %v348, 0
      %v465 = vsel %vm427, %v350, 0
      %v468 = vsel %vm427, %v352, 0
      %v471 = vsel %vm427, %v354, 0
      %v474 = vsel %vm427, %v356, 0
      %476 = vmatprep.subr.bf16.mxu0 0
      %477 = vmatpush1.bf16.msra.mxu0 %v409
      %478 = vmatprep.subr.bf16.mxu0 0
      %479 = vmatpush1.bf16.msra.mxu0 %v410
      %480 = vmatprep.subr.bf16.mxu0 0
      %481 = vmatpush1.bf16.msra.mxu0 %v411
      %482 = vmatprep.subr.bf16.mxu0 0
      %483 = vmatpush1.bf16.msra.mxu0 %v412
      %484 = vmatprep.subr.bf16.mxu0 0
      %485 = vmatpush1.bf16.msra.mxu0 %v413
      %486 = vmatprep.subr.bf16.mxu0 0
      %487 = vmatpush1.bf16.msra.mxu0 %v414
      %488 = vmatprep.subr.bf16.mxu0 0
      %489 = vmatpush1.bf16.msra.mxu0 %v415
      %490 = vmatprep.subr.bf16.mxu0 0
      %491 = vmatpush1.bf16.msra.mxu0 %v416
      %492 = vmatprep.subr.bf16.mxu0 0
      %493 = vmatpush1.bf16.msra.mxu0 %v417
      %494 = vmatprep.subr.bf16.mxu0 0
      %495 = vmatpush1.bf16.msra.mxu0 0
      %496 = vmatprep.subr.bf16.mxu0 0
      %497 = vmatpush1.bf16.msra.mxu0 0
      %498 = vmatprep.subr.bf16.mxu0 0
      %499 = vmatpush1.bf16.msra.mxu0 0
      %500 = vmatprep.subr.bf16.mxu0 0
      %501 = vmatpush1.bf16.msra.mxu0 0
      %502 = vmatprep.subr.bf16.mxu0 0
      %503 = vmatpush1.bf16.msra.mxu0 0
      %504 = vmatprep.subr.bf16.mxu0 0
      %505 = vmatpush1.bf16.msra.mxu0 0
      %506 = vmatprep.subr.bf16.mxu0 0
      %507 = vmatpush1.bf16.msra.mxu0 0
      %508 = vmatprep.mubr.bf16.mxu0 %v429
      %509 = vmatmul.mubr.bf16.gmra.mrb[0].mxu0 %v325
      %v510 = vpop.f32.mrb[0].mxu0
      %v511 = vadd.f32 %v227, %v510
      %v512 = vpop.f32.mrb[0].mxu0
      %v513 = vpop.f32.mrb[0].mxu0
      %v514 = vadd.f32 %v227, %v513
      %v515 = vpop.f32.mrb[0].mxu0
      %516 = vmatprep.mubr.bf16.mxu0 %v432
      %517 = vmatmul.mubr.bf16.gmra.mrb[0].mxu0 %v327
      %v518 = vpop.f32.mrb[0].mxu0
      %v519 = vadd.f32 %v227, %v518
      %v520 = vpop.f32.mrb[0].mxu0
      %v521 = vpop.f32.mrb[0].mxu0
      %v522 = vadd.f32 %v227, %v521
      %v523 = vpop.f32.mrb[0].mxu0
      %524 = vmatprep.mubr.bf16.mxu0 %v435
      %525 = vmatmul.mubr.bf16.gmra.mrb[0].mxu0 %v329
      %v526 = vpop.f32.mrb[0].mxu0
      %v527 = vadd.f32 %v227, %v526
      %v528 = vpop.f32.mrb[0].mxu0
      %v529 = vpop.f32.mrb[0].mxu0
      %v530 = vadd.f32 %v227, %v529
      %v531 = vpop.f32.mrb[0].mxu0
      %532 = vmatprep.mubr.bf16.mxu0 %v438
      %533 = vmatmul.mubr.bf16.gmra.mrb[0].mxu0 %v331
      %v534 = vpop.f32.mrb[0].mxu0
      %v535 = vadd.f32 %v227, %v534
      %v536 = vpop.f32.mrb[0].mxu0
      %v537 = vpop.f32.mrb[0].mxu0
      %v538 = vadd.f32 %v227, %v537
      %v539 = vpop.f32.mrb[0].mxu0
      %540 = vmatprep.mubr.bf16.mxu0 %v441
      %541 = vmatmul.mubr.bf16.gmra.mrb[0].mxu0 %v333
      %v542 = vpop.f32.mrb[0].mxu0
      %v543 = vadd.f32 %v227, %v542
      %v544 = vpop.f32.mrb[0].mxu0
      %v545 = vpop.f32.mrb[0].mxu0
      %v546 = vadd.f32 %v227, %v545
      %v547 = vpop.f32.mrb[0].mxu0
      %548 = vmatprep.mubr.bf16.mxu0 %v444
      %549 = vmatmul.mubr.bf16.gmra.mrb[0].mxu0 %v335
      %v550 = vpop.f32.mrb[0].mxu0
      %v551 = vadd.f32 %v227, %v550
      %v552 = vpop.f32.mrb[0].mxu0
      %v553 = vpop.f32.mrb[0].mxu0
      %v554 = vadd.f32 %v227, %v553
      %v555 = vpop.f32.mrb[0].mxu0
      %556 = vmatprep.mubr.bf16.mxu0 %v447
      %557 = vmatmul.mubr.bf16.gmra.mrb[0].mxu0 %v337
      %v558 = vpop.f32.mrb[0].mxu0
      %v559 = vadd.f32 %v227, %v558
      %v560 = vpop.f32.mrb[0].mxu0
      %v561 = vpop.f32.mrb[0].mxu0
      %v562 = vadd.f32 %v227, %v561
      %v563 = vpop.f32.mrb[0].mxu0
      %564 = vmatprep.mubr.bf16.mxu0 %v450
      %565 = vmatmul.mubr.bf16.gmra.mrb[0].mxu0 %v339
      %v566 = vpop.f32.mrb[0].mxu0
      %v567 = vadd.f32 %v227, %v566
      %v568 = vpop.f32.mrb[0].mxu0
      %v569 = vpop.f32.mrb[0].mxu0
      %v570 = vadd.f32 %v227, %v569
      %v571 = vpop.f32.mrb[0].mxu0
      %572 = vmatprep.mubr.bf16.mxu0 %v453
      %573 = vmatmul.mubr.bf16.gmra.mrb[0].mxu0 %v341
      %v574 = vpop.f32.mrb[0].mxu0
      %v575 = vadd.f32 %v227, %v574
      %v576 = vpop.f32.mrb[0].mxu0
      %v577 = vpop.f32.mrb[0].mxu0
      %v578 = vadd.f32 %v227, %v577
      %v579 = vpop.f32.mrb[0].mxu0
      %580 = vmatprep.mubr.bf16.mxu0 %v456
      %581 = vmatmul.mubr.bf16.gmra.mrb[0].mxu0 %v343
      %v582 = vpop.f32.mrb[0].mxu0
      %v583 = vadd.f32 %v227, %v582
      %v584 = vpop.f32.mrb[0].mxu0
      %v585 = vpop.f32.mrb[0].mxu0
      %v586 = vadd.f32 %v227, %v585
      %v587 = vpop.f32.mrb[0].mxu0
      %588 = vmatprep.mubr.bf16.mxu0 %v459
      %589 = vmatmul.mubr.bf16.gmra.mrb[0].mxu0 %v345
      %v590 = vpop.f32.mrb[0].mxu0
      %v591 = vadd.f32 %v227, %v590
      %v592 = vpop.f32.mrb[0].mxu0
      %v593 = vpop.f32.mrb[0].mxu0
      %v594 = vadd.f32 %v227, %v593
      %v595 = vpop.f32.mrb[0].mxu0
      %596 = vmatprep.mubr.bf16.mxu0 %v462
      %597 = vmatmul.mubr.bf16.gmra.mrb[0].mxu0 %v347
      %v598 = vpop.f32.mrb[0].mxu0
      %v599 = vadd.f32 %v227, %v598
      %v600 = vpop.f32.mrb[0].mxu0
      %v601 = vpop.f32.mrb[0].mxu0
      %v602 = vadd.f32 %v227, %v601
      %v603 = vpop.f32.mrb[0].mxu0
      %604 = vmatprep.mubr.bf16.mxu0 %v465
      %605 = vmatmul.mubr.bf16.gmra.mrb[0].mxu0 %v349
      %v606 = vpop.f32.mrb[0].mxu0
      %v607 = vadd.f32 %v227, %v606
      %v608 = vpop.f32.mrb[0].mxu0
      %v609 = vpop.f32.mrb[0].mxu0
      %v610 = vadd.f32 %v227, %v609
      %v611 = vpop.f32.mrb[0].mxu0
      %612 = vmatprep.mubr.bf16.mxu0 %v468
      %613 = vmatmul.mubr.bf16.gmra.mrb[0].mxu0 %v351
      %v614 = vpop.f32.mrb[0].mxu0
      %v615 = vadd.f32 %v227, %v614
      %v616 = vpop.f32.mrb[0].mxu0
      %v617 = vpop.f32.mrb[0].mxu0
      %v618 = vadd.f32 %v227, %v617
      %v619 = vpop.f32.mrb[0].mxu0
      %620 = vmatprep.mubr.bf16.mxu0 %v471
      %621 = vmatmul.mubr.bf16.gmra.mrb[0].mxu0 %v353
      %v622 = vpop.f32.mrb[0].mxu0
      %v623 = vadd.f32 %v227, %v622
      %v624 = vpop.f32.mrb[0].mxu0
      %v625 = vpop.f32.mrb[0].mxu0
      %v626 = vadd.f32 %v227, %v625
      %v627 = vpop.f32.mrb[0].mxu0
      %628 = vmatprep.mubr.bf16.mxu0 %v474
      %629 = vmatmul.mubr.bf16.gmra.mrb[0].mxu0 %v355
      %v630 = vpop.f32.mrb[0].mxu0
      %v631 = vadd.f32 %v227, %v630
      %v632 = vpop.f32.mrb[0].mxu0
      %v633 = vpop.f32.mrb[0].mxu0
      %v634 = vadd.f32 %v227, %v633
      %v635 = vpop.f32.mrb[0].mxu0
      %636 = vdwg.mxu0
      %v637 = vmax.f32 %v511, 0.0
      %v638 = vmax.f32 %v514, 0.0
      %v639 = vmax.f32 %v519, 0.0
      %v640 = vmax.f32 %v522, 0.0
      %v641 = vmax.f32 %v527, 0.0
      %v642 = vmax.f32 %v530, 0.0
      %v643 = vmax.f32 %v535, 0.0
      %v644 = vmax.f32 %v538, 0.0
      %v645 = vmax.f32 %v543, 0.0
      %v646 = vmax.f32 %v546, 0.0
      %v647 = vmax.f32 %v551, 0.0
      %v648 = vmax.f32 %v554, 0.0
      %v649 = vmax.f32 %v559, 0.0
      %v650 = vmax.f32 %v562, 0.0
      %v651 = vmax.f32 %v567, 0.0
      %v652 = vmax.f32 %v570, 0.0
      %v653 = vmax.f32 %v575, 0.0
      %v654 = vmax.f32 %v578, 0.0
      %v655 = vmax.f32 %v583, 0.0
      %v656 = vmax.f32 %v586, 0.0
      %v657 = vmax.f32 %v591, 0.0
      %v658 = vmax.f32 %v594, 0.0
      %v659 = vmax.f32 %v599, 0.0
      %v660 = vmax.f32 %v602, 0.0
      %v661 = vmax.f32 %v607, 0.0
      %v662 = vmax.f32 %v610, 0.0
      %v663 = vmax.f32 %v615, 0.0
      %v664 = vmax.f32 %v618, 0.0
      %v665 = vmax.f32 %v623, 0.0
      %v666 = vmax.f32 %v626, 0.0
      %v667 = vmax.f32 %v631, 0.0
      %v668 = vmax.f32 %v634, 0.0
      %v669 = vpack.c.bf16 %v638, %v637
      %v670 = vpack.c.bf16 %v640, %v639
      %v671 = vpack.c.bf16 %v642, %v641
      %v672 = vpack.c.bf16 %v644, %v643
      %v673 = vpack.c.bf16 %v646, %v645
      %v674 = vpack.c.bf16 %v648, %v647
      %v675 = vpack.c.bf16 %v650, %v649
      %v676 = vpack.c.bf16 %v652, %v651
      %v677 = vpack.c.bf16 %v654, %v653
      %v678 = vpack.c.bf16 %v656, %v655
      %v679 = vpack.c.bf16 %v658, %v657
      %v680 = vpack.c.bf16 %v660, %v659
      %v681 = vpack.c.bf16 %v662, %v661
      %v682 = vpack.c.bf16 %v664, %v663
      %v683 = vpack.c.bf16 %v666, %v665
      %v684 = vpack.c.bf16 %v668, %v667
      %v701 = vunpack.c.l.b16 %v669
      %v702 = vunpack.c.h.b16 %v669
      %v703 = vunpack.c.l.b16 %v670
      %v704 = vunpack.c.h.b16 %v670
      %v705 = vunpack.c.l.b16 %v671
      %v706 = vunpack.c.h.b16 %v671
      %v707 = vunpack.c.l.b16 %v672
      %v708 = vunpack.c.h.b16 %v672
      %v709 = vunpack.c.l.b16 %v673
      %v710 = vunpack.c.h.b16 %v673
      %v711 = vunpack.c.l.b16 %v674
      %v712 = vunpack.c.h.b16 %v674
      %v713 = vunpack.c.l.b16 %v675
      %v714 = vunpack.c.h.b16 %v675
      %v715 = vunpack.c.l.b16 %v676
      %v716 = vunpack.c.h.b16 %v676
      %v717 = vunpack.c.l.b16 %v677
      %v718 = vunpack.c.h.b16 %v677
      %v719 = vunpack.c.l.b16 %v678
      %v720 = vunpack.c.h.b16 %v678
      %v721 = vunpack.c.l.b16 %v679
      %v722 = vunpack.c.h.b16 %v679
      %v723 = vunpack.c.l.b16 %v680
      %v724 = vunpack.c.h.b16 %v680
      %v725 = vunpack.c.l.b16 %v681
      %v726 = vunpack.c.h.b16 %v681
      %v727 = vunpack.c.l.b16 %v682
      %v728 = vunpack.c.h.b16 %v682
      %v729 = vunpack.c.l.b16 %v683
      %v730 = vunpack.c.h.b16 %v683
      %v731 = vunpack.c.l.b16 %v684
      %v732 = vunpack.c.h.b16 %v684
      %v733 = vpack.c.b16 %v701, %v701
      %v734 = vpack.c.b16 %v702, %v702
      %v735 = vpack.c.b16 %v703, %v703
      %v736 = vpack.c.b16 %v704, %v704
      %v737 = vpack.c.b16 %v705, %v705
      %v738 = vpack.c.b16 %v706, %v706
      %v739 = vpack.c.b16 %v707, %v707
      %v740 = vpack.c.b16 %v708, %v708
      %v741 = vpack.c.b16 %v709, %v709
      %v742 = vpack.c.b16 %v710, %v710
      %v743 = vpack.c.b16 %v711, %v711
      %v744 = vpack.c.b16 %v712, %v712
      %v745 = vpack.c.b16 %v713, %v713
      %v746 = vpack.c.b16 %v714, %v714
      %v747 = vpack.c.b16 %v715, %v715
      %v748 = vpack.c.b16 %v716, %v716
      %v749 = vpack.c.b16 %v717, %v717
      %v750 = vpack.c.b16 %v718, %v718
      %v751 = vpack.c.b16 %v719, %v719
      %v752 = vpack.c.b16 %v720, %v720
      %v753 = vpack.c.b16 %v721, %v721
      %v754 = vpack.c.b16 %v722, %v722
      %v755 = vpack.c.b16 %v723, %v723
      %v756 = vpack.c.b16 %v724, %v724
      %v757 = vpack.c.b16 %v725, %v725
      %v758 = vpack.c.b16 %v726, %v726
      %v759 = vpack.c.b16 %v727, %v727
      %v760 = vpack.c.b16 %v728, %v728
      %v761 = vpack.c.b16 %v729, %v729
      %v762 = vpack.c.b16 %v730, %v730
      %v763 = vpack.c.b16 %v731, %v731
      %v764 = vpack.c.b16 %v732, %v732
      %vm797 = vcmask 125952
      %798 = vst.msk [vmem:[%s170] sm:$0xf] %vm797, %v733
      %799 = vst.msk [vmem:[%s170 + $0x4] sm:$0xf] %vm797, %v734
      %800 = vst.msk [vmem:[%s170 + $0x8] sm:$0xf] %vm797, %v735
      %801 = vst.msk [vmem:[%s170 + $0xc] sm:$0xf] %vm797, %v736
      %802 = vst.msk [vmem:[%s170 + $0x10] sm:$0xf] %vm797, %v737
      %803 = vst.msk [vmem:[%s170 + $0x14] sm:$0xf] %vm797, %v738
      %804 = vst.msk [vmem:[%s170 + $0x18] sm:$0xf] %vm797, %v739
      %805 = vst.msk [vmem:[%s170 + $0x1c] sm:$0xf] %vm797, %v740
      %806 = vst.msk [vmem:[%s170 + $0x20] sm:$0xf] %vm797, %v741
      %807 = vst.msk [vmem:[%s170 + $0x24] sm:$0xf] %vm797, %v742
      %808 = vst.msk [vmem:[%s170 + $0x28] sm:$0xf] %vm797, %v743
      %809 = vst.msk [vmem:[%s170 + $0x2c] sm:$0xf] %vm797, %v744
      %810 = vst.msk [vmem:[%s170 + $0x30] sm:$0xf] %vm797, %v745
      %811 = vst.msk [vmem:[%s170 + $0x34] sm:$0xf] %vm797, %v746
      %812 = vst.msk [vmem:[%s170 + $0x38] sm:$0xf] %vm797, %v747
      %813 = vst.msk [vmem:[%s170 + $0x3c] sm:$0xf] %vm797, %v748
      %814 = vst.msk [vmem:[%s170 + $0x40] sm:$0xf] %vm797, %v749
      %815 = vst.msk [vmem:[%s170 + $0x44] sm:$0xf] %vm797, %v750
      %816 = vst.msk [vmem:[%s170 + $0x48] sm:$0xf] %vm797, %v751
      %817 = vst.msk [vmem:[%s170 + $0x4c] sm:$0xf] %vm797, %v752
      %818 = vst.msk [vmem:[%s170 + $0x50] sm:$0xf] %vm797, %v753
      %819 = vst.msk [vmem:[%s170 + $0x54] sm:$0xf] %vm797, %v754
      %820 = vst.msk [vmem:[%s170 + $0x58] sm:$0xf] %vm797, %v755
      %821 = vst.msk [vmem:[%s170 + $0x5c] sm:$0xf] %vm797, %v756
      %822 = vst.msk [vmem:[%s170 + $0x60] sm:$0xf] %vm797, %v757
      %823 = vst.msk [vmem:[%s170 + $0x64] sm:$0xf] %vm797, %v758
      %824 = vst.msk [vmem:[%s170 + $0x68] sm:$0xf] %vm797, %v759
      %825 = vst.msk [vmem:[%s170 + $0x6c] sm:$0xf] %vm797, %v760
      %826 = vst.msk [vmem:[%s170 + $0x70] sm:$0xf] %vm797, %v761
      %827 = vst.msk [vmem:[%s170 + $0x74] sm:$0xf] %vm797, %v762
      %828 = vst.msk [vmem:[%s170 + $0x78] sm:$0xf] %vm797, %v763
      %829 = vst.msk [vmem:[%s170 + $0x7c] sm:$0xf] %vm797, %v764
      %p830 = scmp.lt.s32.totalorder %s14, 1
      %s831 = scalar_select %p830, %s14, 1
      %s832 = smul.addr %s831, 32
      %s833 = smul.addr %s832, 4
      %s834 = scalar_lea.vmem %s3, %s833
      // Predicated region
      $region33: #{forward.9} parent=31 // pred_check
        %p835 = pneg %p100
      $region34: #{forward.9} parent=31 // pred_check_branch
        %837 = sbr.rel (%p835) target = $region36
      $region35: #{forward.9} parent=31 // pred_region
        _
      $region36: #{forward.9} parent=31 // pred_fallthru
        _
    $region32: #{forward.9} parent=5 // pred_fallthru
      _
    %p838 = scmp.le.s32.totalorder 2, %s9
    // Predicated region
    $region37: #{forward.9} parent=5 // pred_check
      %p839 = pneg %p838
    $region38: #{forward.9} parent=5 // pred_check_branch
      %841 = sbr.rel (%p839) target = $region40
    $region39: #{forward.9} parent=5 // pred_region
      %s842 = ssub.s32 %s9, 2
      // Predicated region
      $region41: #{forward.9} parent=39 // pred_check
        %p843 = pneg %p106
      $region42: #{forward.9} parent=39 // pred_check_branch
        %845 = sbr.rel (%p843) target = $region44
      $region43: #{forward.9} parent=39 // pred_region
        %p846 = scmp.lt.s32.totalorder %s15, 1
        %s847 = scalar_select %p846, %s15, 1
        %s848 = smul.addr %s847, 32
        %s849 = smul.addr %s848, 4
        %s850 = scalar_lea.vmem %s3, %s849
      $region44: #{forward.9} parent=39 // pred_fallthru
        _
    $region40: #{forward.9} parent=5 // pred_fallthru
      _
  $region6: #{forward.9} parent=0 // loop_footer
    %s13 = sadd.s32 1, %s9
  $region7: #{forward.9} parent=0 // loop_footer_branch
    %8 = sbr.rel target = $region3
  $region8: #{forward.9} parent=0 // loop_exit
    _

// kernel: forward.10
$region0: #{forward.10}
  #allocation0 [shape = 'u32[]', space=smem, size = 0x4, offset = 0x4, fixed_abs, tag = 'smem constant byte address 0x4 - core index']
  #allocation1 [shape = 'u32[144,128]{1,0:T(1,128)}', space=vmem, size = 0x12000, scoped, tag = 'internal scratch']
  %s0 = inlined_call_operand.vmem [shape: bf16[2,256,144], index: 0, kind: input, shape index: {}]
  %s1 = inlined_call_operand.vmem [shape: bf16[144,16], index: 1, kind: input, shape index: {}]
  %s2 = inlined_call_operand.vmem [shape: f32[1,16], index: 2, kind: input, shape index: {}]
  %s3 = inlined_call_operand.vmem [shape: bf16[2,256,16], index: 3, kind: input, shape index: {}]
  %s4 = inlined_call_operand.vmem [shape: bf16[2,256,16], index: 4, kind: output, shape index: {}]
  %s5 = sld [smem:[#allocation0]]
  $region49: #{forward.10} parent=0
    _
  %s7 = ssub.s32 1, %s5
  %s8 = scalar_select 0, %s7, %s5
  loop: start=0, step=1, limit=4
  $region2: #{forward.10} parent=0 // loop_pre_header
    _
  $region3: #{forward.10} parent=0 // loop_header
    %s10 = sphi 0, %s14
    %p11 = scmp.ge.s32.totalorder %s10, 4
    %s20 = sphi 0, %s22
    %s23 = sphi 0, %s20
    %s24 = sphi 0, %s23
    %s40 = sphi 0, %s24
    %s44 = sphi 0, %s44
    %s46 = sphi 0, %s44
    %s47 = sphi 0, %s46
    %s61 = sphi 0, %s47
    %s65 = sphi 0, %s65
    %s67 = sphi 0, %s65
    %s68 = sphi 0, %s67
    %s82 = sphi 0, %s68
    %s88 = sphi 0, %s90
    %s91 = sphi 0, %s88
    %s92 = sphi 0, %s91
    %s108 = sphi 0, %s92
    %s114 = sphi 0, %s116
    %s117 = sphi 0, %s114
    %s118 = sphi 0, %s117
    %s134 = sphi 0, %s118
  $region4: #{forward.10} parent=0 // loop_header_branch
    %13 = sbr.rel (%p11) target = $region8
  $region5: #{forward.10} parent=0 // loop_body
    %s15 = ssub.s32 %s10, 1
    %s16 = ssub.s32 %s10, 2
    %s17 = sadd.s32 %s10, 1
    %s18 = ssub.s32 %s10, %s17
    %p19 = scmp.eq.s32.totalorder %s18, 0
    %s21 = sadd.s32 %s20, 1
    %s22 = scalar_select %p19, %s20, %s21
    %p25 = pneg %p19
    %p26 = scmp.eq.s32.totalorder %s10, 1
    %p27 = por %p25, %p26
    %p28 = scmp.ne.s32.totalorder %s20, %s23
    %p29 = scmp.eq.s32.totalorder %s10, 0
    %p30 = por %p28, %p29
    %p31 = scmp.ne.s32.totalorder %s20, %s23
    %p32 = scmp.eq.s32.totalorder %s15, 1
    %p33 = por %p31, %p32
    %p34 = scmp.ne.s32.totalorder %s23, %s24
    %p35 = scmp.eq.s32.totalorder %s15, 0
    %p36 = por %p34, %p35
    %p37 = scmp.ne.s32.totalorder %s23, %s24
    %p38 = scmp.eq.s32.totalorder %s16, 1
    %p39 = por %p37, %p38
    %p41 = scmp.ne.s32.totalorder %s24, %s40
    %p42 = scmp.eq.s32.totalorder %s16, 0
    %p43 = por %p41, %p42
    %s45 = sadd.s32 %s44, 1
    %p48 = scmp.eq.s32.totalorder %s10, 1
    %p49 = scmp.ne.s32.totalorder %s44, %s46
    %p50 = scmp.eq.s32.totalorder %s10, 0
    %p51 = por %p49, %p50
    %p52 = scmp.ne.s32.totalorder %s44, %s46
    %p53 = scmp.eq.s32.totalorder %s15, 1
    %p54 = por %p52, %p53
    %p55 = scmp.ne.s32.totalorder %s46, %s47
    %p56 = scmp.eq.s32.totalorder %s15, 0
    %p57 = por %p55, %p56
    %p58 = scmp.ne.s32.totalorder %s46, %s47
    %p59 = scmp.eq.s32.totalorder %s16, 1
    %p60 = por %p58, %p59
    %p62 = scmp.ne.s32.totalorder %s47, %s61
    %p63 = scmp.eq.s32.totalorder %s16, 0
    %p64 = por %p62, %p63
    %s66 = sadd.s32 %s65, 1
    %p69 = scmp.eq.s32.totalorder %s10, 1
    %p70 = scmp.ne.s32.totalorder %s65, %s67
    %p71 = scmp.eq.s32.totalorder %s10, 0
    %p72 = por %p70, %p71
    %p73 = scmp.ne.s32.totalorder %s65, %s67
    %p74 = scmp.eq.s32.totalorder %s15, 1
    %p75 = por %p73, %p74
    %p76 = scmp.ne.s32.totalorder %s67, %s68
    %p77 = scmp.eq.s32.totalorder %s15, 0
    %p78 = por %p76, %p77
    %p79 = scmp.ne.s32.totalorder %s67, %s68
    %p80 = scmp.eq.s32.totalorder %s16, 1
    %p81 = por %p79, %p80
    %p83 = scmp.ne.s32.totalorder %s68, %s82
    %p84 = scmp.eq.s32.totalorder %s16, 0
    %p85 = por %p83, %p84
    %s86 = ssub.s32 %s10, %s17
    %p87 = scmp.eq.s32.totalorder %s86, 0
    %s89 = sadd.s32 %s88, 1
    %s90 = scalar_select %p87, %s88, %s89
    %p93 = pneg %p87
    %p94 = scmp.eq.s32.totalorder %s10, 1
    %p95 = por %p93, %p94
    %p96 = scmp.ne.s32.totalorder %s88, %s91
    %p97 = scmp.eq.s32.totalorder %s10, 0
    %p98 = por %p96, %p97
    %p99 = scmp.ne.s32.totalorder %s88, %s91
    %p100 = scmp.eq.s32.totalorder %s15, 1
    %p101 = por %p99, %p100
    %p102 = scmp.ne.s32.totalorder %s91, %s92
    %p103 = scmp.eq.s32.totalorder %s15, 0
    %p104 = por %p102, %p103
    %p105 = scmp.ne.s32.totalorder %s91, %s92
    %p106 = scmp.eq.s32.totalorder %s16, 1
    %p107 = por %p105, %p106
    %p109 = scmp.ne.s32.totalorder %s92, %s108
    %p110 = scmp.eq.s32.totalorder %s16, 0
    %p111 = por %p109, %p110
    %s112 = ssub.s32 %s10, %s17
    %p113 = scmp.eq.s32.totalorder %s112, 0
    %s115 = sadd.s32 %s114, 1
    %s116 = scalar_select %p113, %s114, %s115
    %p119 = pneg %p113
    %p120 = scmp.eq.s32.totalorder %s10, 1
    %p121 = por %p119, %p120
    %p122 = scmp.ne.s32.totalorder %s114, %s117
    %p123 = scmp.eq.s32.totalorder %s10, 0
    %p124 = por %p122, %p123
    %p125 = scmp.ne.s32.totalorder %s114, %s117
    %p126 = scmp.eq.s32.totalorder %s15, 1
    %p127 = por %p125, %p126
    %p128 = scmp.ne.s32.totalorder %s117, %s118
    %p129 = scmp.eq.s32.totalorder %s15, 0
    %p130 = por %p128, %p129
    %p131 = scmp.ne.s32.totalorder %s117, %s118
    %p132 = scmp.eq.s32.totalorder %s16, 1
    %p133 = por %p131, %p132
    %p135 = scmp.ne.s32.totalorder %s118, %s134
    %p136 = scmp.eq.s32.totalorder %s16, 0
    %p137 = por %p135, %p136
    %p138 = scmp.le.s32.totalorder 1, %s10
    %p139 = scmp.lt.s32.totalorder %s10, 3
    %p140 = pnand %p138, %p139
    %p141 = pneg %p140
    // Predicated region
    $region9: #{forward.10} parent=5 // pred_check
      _
    $region10: #{forward.10} parent=5 // pred_check_branch
      %143 = sbr.rel (%p140) target = $region12
    $region11: #{forward.10} parent=5 // pred_region
      %s144 = ssub.s32 %s10, 1
      // Predicated region
      $region13: #{forward.10} parent=11 // pred_check
        %p145 = pneg %p57
      $region14: #{forward.10} parent=11 // pred_check_branch
        %147 = sbr.rel (%p145) target = $region16
      $region15: #{forward.10} parent=11 // pred_region
        _
      $region16: #{forward.10} parent=11 // pred_fallthru
        _
      // Predicated region
      $region17: #{forward.10} parent=11 // pred_check
        %p148 = pneg %p78
      $region18: #{forward.10} parent=11 // pred_check_branch
        %150 = sbr.rel (%p148) target = $region20
      $region19: #{forward.10} parent=11 // pred_region
        _
      $region20: #{forward.10} parent=11 // pred_fallthru
        _
    $region12: #{forward.10} parent=5 // pred_fallthru
      _
    %p151 = scmp.lt.s32.totalorder %s10, 2
    // Predicated region
    $region21: #{forward.10} parent=5 // pred_check
      %p152 = pneg %p151
    $region22: #{forward.10} parent=5 // pred_check_branch
      %154 = sbr.rel (%p152) target = $region24
    $region23: #{forward.10} parent=5 // pred_region
      // Predicated region
      $region25: #{forward.10} parent=23 // pred_check
        %p155 = pneg %p30
      $region26: #{forward.10} parent=23 // pred_check_branch
        %157 = sbr.rel (%p155) target = $region28
      $region27: #{forward.10} parent=23 // pred_region
        %p158 = scmp.lt.s32.totalorder %s10, 1
        %s159 = scalar_select %p158, %s10, 1
        %s160 = smul.addr %s159, 64
        %s161 = smul.addr %s160, 4
        %s162 = scalar_lea.vmem %s0, %s161
      $region28: #{forward.10} parent=23 // pred_fallthru
        _
      // Predicated region
      $region29: #{forward.10} parent=23 // pred_check
        %p163 = pneg %p98
      $region30: #{forward.10} parent=23 // pred_check_branch
        %165 = sbr.rel (%p163) target = $region32
      $region31: #{forward.10} parent=23 // pred_region
        %p166 = scmp.lt.s32.totalorder %s10, 1
        %s167 = scalar_select %p166, %s10, 1
        %s168 = smul.addr %s167, 32
        %s169 = smul.addr %s168, 4
        %s170 = scalar_lea.vmem %s3, %s169
      $region32: #{forward.10} parent=23 // pred_fallthru
        _
    $region24: #{forward.10} parent=5 // pred_fallthru
      _
    %p171 = scmp.le.s32.totalorder 1, %s10
    %p172 = scmp.lt.s32.totalorder %s10, 3
    %p173 = pnand %p171, %p172
    %p174 = pneg %p173
    // Predicated region
    $region33: #{forward.10} parent=5 // pred_check
      _
    $region34: #{forward.10} parent=5 // pred_check_branch
      %176 = sbr.rel (%p173) target = $region36
    $region35: #{forward.10} parent=5 // pred_region
      %s177 = ssub.s32 %s10, 1
      %p178 = scmp.lt.s32.totalorder %s15, 1
      %s179 = scalar_select %p178, %s15, 1
      %s180 = smul.addr %s179, 64
      %s181 = smul.addr %s180, 4
      %s182 = scalar_lea.vmem %s0, %s181
      %p183 = pneg %p36
      %p184 = pneg %p33
      %p185 = pneg %p57
      %p186 = pneg %p54
      %p187 = pneg %p78
      %p188 = pneg %p75
      %p189 = scmp.lt.s32.totalorder %s15, 1
      %s190 = scalar_select %p189, %s15, 1
      %s191 = smul.addr %s190, 32
      %s192 = smul.addr %s191, 4
      %s193 = scalar_lea.vmem %s3, %s192
      %p194 = pneg %p104
      %p195 = pneg %p101
      %p196 = pneg %p130
      %p197 = pneg %p127
      %p198 = scmp.lt.s32.totalorder %s15, 1
      %s199 = scalar_select %p198, %s15, 1
      %s200 = smul.addr %s199, 32
      %s201 = smul.addr %s200, 4
      %s202 = scalar_lea.vmem %s4, %s201
      %p203 = scmp.lt.s32.totalorder %s15, 1
      %s204 = scalar_select %p203, %s15, 1
      %s205 = smul.addr %s204, 64
      %s206 = smul.addr %s205, 4
      %s207 = scalar_lea.vmem %s0, %s206
      %p208 = scmp.lt.s32.totalorder %s15, 1
      %s209 = scalar_select %p208, %s15, 1
      %s210 = smul.addr %s209, 32
      %s211 = smul.addr %s210, 4
      %s212 = scalar_lea.vmem %s3, %s211
      %p213 = scmp.lt.s32.totalorder %s15, 1
      %s214 = scalar_select %p213, %s15, 1
      %s215 = smul.addr %s214, 32
      %s216 = smul.addr %s215, 4
      %s217 = scalar_lea.vmem %s4, %s216
      %v219 = vld [vmem:[%s207] sm:$0xff]
      %v220 = vld [vmem:[%s207 + $0x8] sm:$0xff]
      %v221 = vld [vmem:[%s207 + $0x10] sm:$0xff]
      %v222 = vld [vmem:[%s207 + $0x18] sm:$0xff]
      %v223 = vld [vmem:[%s207 + $0x20] sm:$0xff]
      %v224 = vld [vmem:[%s207 + $0x28] sm:$0xff]
      %v225 = vld [vmem:[%s207 + $0x30] sm:$0xff]
      %v226 = vld [vmem:[%s207 + $0x38] sm:$0xff]
      %v227 = vld [vmem:[%s207 + $0x40] sm:$0xff]
      %v228 = vld [vmem:[%s207 + $0x48] sm:$0xff]
      %v229 = vld [vmem:[%s207 + $0x50] sm:$0xff]
      %v230 = vld [vmem:[%s207 + $0x58] sm:$0xff]
      %v231 = vld [vmem:[%s207 + $0x60] sm:$0xff]
      %v232 = vld [vmem:[%s207 + $0x68] sm:$0xff]
      %v233 = vld [vmem:[%s207 + $0x70] sm:$0xff]
      %v234 = vld [vmem:[%s207 + $0x78] sm:$0xff]
      %v235 = vld [vmem:[%s207 + $0x80] sm:$0xff]
      %v236 = vld [vmem:[%s207 + $0x88] sm:$0xff]
      %v237 = vld [vmem:[%s207 + $0x90] sm:$0xff]
      %v238 = vld [vmem:[%s207 + $0x98] sm:$0xff]
      %v239 = vld [vmem:[%s207 + $0xa0] sm:$0xff]
      %v240 = vld [vmem:[%s207 + $0xa8] sm:$0xff]
      %v241 = vld [vmem:[%s207 + $0xb0] sm:$0xff]
      %v242 = vld [vmem:[%s207 + $0xb8] sm:$0xff]
      %v243 = vld [vmem:[%s207 + $0xc0] sm:$0xff]
      %v244 = vld [vmem:[%s207 + $0xc8] sm:$0xff]
      %v245 = vld [vmem:[%s207 + $0xd0] sm:$0xff]
      %v246 = vld [vmem:[%s207 + $0xd8] sm:$0xff]
      %v247 = vld [vmem:[%s207 + $0xe0] sm:$0xff]
      %v248 = vld [vmem:[%s207 + $0xe8] sm:$0xff]
      %v249 = vld [vmem:[%s207 + $0xf0] sm:$0xff]
      %v250 = vld [vmem:[%s207 + $0xf8] sm:$0xff]
      %v251 = vld [vmem:[%s1] sm:$0xf]
      %v252 = vld [vmem:[%s1 + $0x4] sm:$0xf]
      %v253 = vld [vmem:[%s1 + $0x8] sm:$0xf]
      %v254 = vld [vmem:[%s1 + $0xc] sm:$0xf]
      %v255 = vld [vmem:[%s1 + $0x10] sm:$0xf]
      %v256 = vld [vmem:[%s1 + $0x14] sm:$0xf]
      %v257 = vld [vmem:[%s1 + $0x18] sm:$0xf]
      %v258 = vld [vmem:[%s1 + $0x1c] sm:$0xf]
      %v259 = vld [vmem:[%s1 + $0x20] sm:$0xf]
      %v260 = vld [vmem:[%s1 + $0x24] sm:$0xf]
      %v261 = vld [vmem:[%s1 + $0x28] sm:$0xf]
      %v262 = vld [vmem:[%s1 + $0x2c] sm:$0xf]
      %v263 = vld [vmem:[%s1 + $0x30] sm:$0xf]
      %v264 = vld [vmem:[%s1 + $0x34] sm:$0xf]
      %v265 = vld [vmem:[%s1 + $0x38] sm:$0xf]
      %v266 = vld [vmem:[%s1 + $0x3c] sm:$0xf]
      %v267 = vld [vmem:[%s1 + $0x40] sm:$0xf]
      %v268 = vld [vmem:[%s1 + $0x44] sm:$0xf]
      %v269 = vld [vmem:[%s2] sm:$0x1]
      %v271 = vlaneseq
      %v272 = vshrl.u32 %v271, 7
      %v273 = vsub.s32 0, %v272
      %v274 = vrot.slane %v269, %v273
      %v308 = vunpack.c.l.b16 %v219
      %v309 = vunpack.c.h.b16 %v219
      %v310 = vunpack.c.l.b16 %v220
      %v311 = vunpack.c.h.b16 %v220
      %v312 = vunpack.c.l.b16 %v221
      %v313 = vunpack.c.h.b16 %v221
      %v314 = vunpack.c.l.b16 %v222
      %v315 = vunpack.c.h.b16 %v222
      %v316 = vunpack.c.l.b16 %v223
      %v317 = vunpack.c.h.b16 %v223
      %v318 = vunpack.c.l.b16 %v224
      %v319 = vunpack.c.h.b16 %v224
      %v320 = vunpack.c.l.b16 %v225
      %v321 = vunpack.c.h.b16 %v225
      %v322 = vunpack.c.l.b16 %v226
      %v323 = vunpack.c.h.b16 %v226
      %v324 = vunpack.c.l.b16 %v227
      %v325 = vunpack.c.h.b16 %v227
      %v326 = vunpack.c.l.b16 %v228
      %v327 = vunpack.c.h.b16 %v228
      %v328 = vunpack.c.l.b16 %v229
      %v329 = vunpack.c.h.b16 %v229
      %v330 = vunpack.c.l.b16 %v230
      %v331 = vunpack.c.h.b16 %v230
      %v332 = vunpack.c.l.b16 %v231
      %v333 = vunpack.c.h.b16 %v231
      %v334 = vunpack.c.l.b16 %v232
      %v335 = vunpack.c.h.b16 %v232
      %v336 = vunpack.c.l.b16 %v233
      %v337 = vunpack.c.h.b16 %v233
      %v338 = vunpack.c.l.b16 %v234
      %v339 = vunpack.c.h.b16 %v234
      %v340 = vunpack.c.l.b16 %v235
      %v341 = vunpack.c.h.b16 %v235
      %v342 = vunpack.c.l.b16 %v236
      %v343 = vunpack.c.h.b16 %v236
      %v344 = vunpack.c.l.b16 %v237
      %v345 = vunpack.c.h.b16 %v237
      %v346 = vunpack.c.l.b16 %v238
      %v347 = vunpack.c.h.b16 %v238
      %v348 = vunpack.c.l.b16 %v239
      %v349 = vunpack.c.h.b16 %v239
      %v350 = vunpack.c.l.b16 %v240
      %v351 = vunpack.c.h.b16 %v240
      %v352 = vunpack.c.l.b16 %v241
      %v353 = vunpack.c.h.b16 %v241
      %v354 = vunpack.c.l.b16 %v242
      %v355 = vunpack.c.h.b16 %v242
      %v356 = vunpack.c.l.b16 %v243
      %v357 = vunpack.c.h.b16 %v243
      %v358 = vunpack.c.l.b16 %v244
      %v359 = vunpack.c.h.b16 %v244
      %v360 = vunpack.c.l.b16 %v245
      %v361 = vunpack.c.h.b16 %v245
      %v362 = vunpack.c.l.b16 %v246
      %v363 = vunpack.c.h.b16 %v246
      %v364 = vunpack.c.l.b16 %v247
      %v365 = vunpack.c.h.b16 %v247
      %v366 = vunpack.c.l.b16 %v248
      %v367 = vunpack.c.h.b16 %v248
      %v368 = vunpack.c.l.b16 %v249
      %v369 = vunpack.c.h.b16 %v249
      %v370 = vunpack.c.l.b16 %v250
      %v371 = vunpack.c.h.b16 %v250
      %v372 = vpack.c.b16 %v310, %v308
      %v373 = vpack.c.b16 %v311, %v309
      %v374 = vpack.c.b16 %v314, %v312
      %v375 = vpack.c.b16 %v315, %v313
      %v376 = vpack.c.b16 %v318, %v316
      %v377 = vpack.c.b16 %v319, %v317
      %v378 = vpack.c.b16 %v322, %v320
      %v379 = vpack.c.b16 %v323, %v321
      %v380 = vpack.c.b16 %v326, %v324
      %v381 = vpack.c.b16 %v327, %v325
      %v382 = vpack.c.b16 %v330, %v328
      %v383 = vpack.c.b16 %v331, %v329
      %v384 = vpack.c.b16 %v334, %v332
      %v385 = vpack.c.b16 %v335, %v333
      %v386 = vpack.c.b16 %v338, %v336
      %v387 = vpack.c.b16 %v339, %v337
      %v388 = vpack.c.b16 %v342, %v340
      %v389 = vpack.c.b16 %v343, %v341
      %v390 = vpack.c.b16 %v346, %v344
      %v391 = vpack.c.b16 %v347, %v345
      %v392 = vpack.c.b16 %v350, %v348
      %v393 = vpack.c.b16 %v351, %v349
      %v394 = vpack.c.b16 %v354, %v352
      %v395 = vpack.c.b16 %v355, %v353
      %v396 = vpack.c.b16 %v358, %v356
      %v397 = vpack.c.b16 %v359, %v357
      %v398 = vpack.c.b16 %v362, %v360
      %v399 = vpack.c.b16 %v363, %v361
      %v400 = vpack.c.b16 %v366, %v364
      %v401 = vpack.c.b16 %v367, %v365
      %v402 = vpack.c.b16 %v370, %v368
      %v403 = vpack.c.b16 %v371, %v369
      %v438 = vunpack.c.l.b16 %v251
      %v439 = vunpack.c.l.b16 %v252
      %v440 = vunpack.c.l.b16 %v253
      %v441 = vunpack.c.l.b16 %v254
      %v442 = vunpack.c.l.b16 %v255
      %v443 = vunpack.c.l.b16 %v256
      %v444 = vunpack.c.l.b16 %v257
      %v445 = vunpack.c.l.b16 %v258
      %v446 = vunpack.c.l.b16 %v259
      %v447 = vunpack.c.l.b16 %v260
      %v448 = vunpack.c.l.b16 %v261
      %v449 = vunpack.c.l.b16 %v262
      %v450 = vunpack.c.l.b16 %v263
      %v451 = vunpack.c.l.b16 %v264
      %v452 = vunpack.c.l.b16 %v265
      %v453 = vunpack.c.l.b16 %v266
      %v454 = vunpack.c.l.b16 %v267
      %v455 = vunpack.c.l.b16 %v268
      %v456 = vpack.c.b16 %v439, %v438
      %v457 = vpack.c.b16 %v441, %v440
      %v458 = vpack.c.b16 %v443, %v442
      %v459 = vpack.c.b16 %v445, %v444
      %v460 = vpack.c.b16 %v447, %v446
      %v461 = vpack.c.b16 %v449, %v448
      %v462 = vpack.c.b16 %v451, %v450
      %v463 = vpack.c.b16 %v453, %v452
      %v464 = vpack.c.b16 %v455, %v454
      %vm474 = vcmask 130048
      %v476 = vsel %vm474, %v373, 0
      %v479 = vsel %vm474, %v375, 0
      %v482 = vsel %vm474, %v377, 0
      %v485 = vsel %vm474, %v379, 0
      %v488 = vsel %vm474, %v381, 0
      %v491 = vsel %vm474, %v383, 0
      %v494 = vsel %vm474, %v385, 0
      %v497 = vsel %vm474, %v387, 0
      %v500 = vsel %vm474, %v389, 0
      %v503 = vsel %vm474, %v391, 0
      %v506 = vsel %vm474, %v393, 0
      %v509 = vsel %vm474, %v395, 0
      %v512 = vsel %vm474, %v397, 0
      %v515 = vsel %vm474, %v399, 0
      %v518 = vsel %vm474, %v401, 0
      %v521 = vsel %vm474, %v403, 0
      %523 = vmatprep.subr.bf16.mxu0 0
      %524 = vmatpush1.bf16.msra.mxu0 %v456
      %525 = vmatprep.subr.bf16.mxu0 0
      %526 = vmatpush1.bf16.msra.mxu0 %v457
      %527 = vmatprep.subr.bf16.mxu0 0
      %528 = vmatpush1.bf16.msra.mxu0 %v458
      %529 = vmatprep.subr.bf16.mxu0 0
      %530 = vmatpush1.bf16.msra.mxu0 %v459
      %531 = vmatprep.subr.bf16.mxu0 0
      %532 = vmatpush1.bf16.msra.mxu0 %v460
      %533 = vmatprep.subr.bf16.mxu0 0
      %534 = vmatpush1.bf16.msra.mxu0 %v461
      %535 = vmatprep.subr.bf16.mxu0 0
      %536 = vmatpush1.bf16.msra.mxu0 %v462
      %537 = vmatprep.subr.bf16.mxu0 0
      %538 = vmatpush1.bf16.msra.mxu0 %v463
      %539 = vmatprep.subr.bf16.mxu0 0
      %540 = vmatpush1.bf16.msra.mxu0 %v464
      %541 = vmatprep.subr.bf16.mxu0 0
      %542 = vmatpush1.bf16.msra.mxu0 0
      %543 = vmatprep.subr.bf16.mxu0 0
      %544 = vmatpush1.bf16.msra.mxu0 0
      %545 = vmatprep.subr.bf16.mxu0 0
      %546 = vmatpush1.bf16.msra.mxu0 0
      %547 = vmatprep.subr.bf16.mxu0 0
      %548 = vmatpush1.bf16.msra.mxu0 0
      %549 = vmatprep.subr.bf16.mxu0 0
      %550 = vmatpush1.bf16.msra.mxu0 0
      %551 = vmatprep.subr.bf16.mxu0 0
      %552 = vmatpush1.bf16.msra.mxu0 0
      %553 = vmatprep.subr.bf16.mxu0 0
      %554 = vmatpush1.bf16.msra.mxu0 0
      %555 = vmatprep.mubr.bf16.mxu0 %v476
      %556 = vmatmul.mubr.bf16.gmra.mrb[0].mxu0 %v372
      %v557 = vpop.f32.mrb[0].mxu0
      %v558 = vadd.f32 %v274, %v557
      %v559 = vpop.f32.mrb[0].mxu0
      %v560 = vpop.f32.mrb[0].mxu0
      %v561 = vadd.f32 %v274, %v560
      %v562 = vpop.f32.mrb[0].mxu0
      %563 = vmatprep.mubr.bf16.mxu0 %v479
      %564 = vmatmul.mubr.bf16.gmra.mrb[0].mxu0 %v374
      %v565 = vpop.f32.mrb[0].mxu0
      %v566 = vadd.f32 %v274, %v565
      %v567 = vpop.f32.mrb[0].mxu0
      %v568 = vpop.f32.mrb[0].mxu0
      %v569 = vadd.f32 %v274, %v568
      %v570 = vpop.f32.mrb[0].mxu0
      %571 = vmatprep.mubr.bf16.mxu0 %v482
      %572 = vmatmul.mubr.bf16.gmra.mrb[0].mxu0 %v376
      %v573 = vpop.f32.mrb[0].mxu0
      %v574 = vadd.f32 %v274, %v573
      %v575 = vpop.f32.mrb[0].mxu0
      %v576 = vpop.f32.mrb[0].mxu0
      %v577 = vadd.f32 %v274, %v576
      %v578 = vpop.f32.mrb[0].mxu0
      %579 = vmatprep.mubr.bf16.mxu0 %v485
      %580 = vmatmul.mubr.bf16.gmra.mrb[0].mxu0 %v378
      %v581 = vpop.f32.mrb[0].mxu0
      %v582 = vadd.f32 %v274, %v581
      %v583 = vpop.f32.mrb[0].mxu0
      %v584 = vpop.f32.mrb[0].mxu0
      %v585 = vadd.f32 %v274, %v584
      %v586 = vpop.f32.mrb[0].mxu0
      %587 = vmatprep.mubr.bf16.mxu0 %v488
      %588 = vmatmul.mubr.bf16.gmra.mrb[0].mxu0 %v380
      %v589 = vpop.f32.mrb[0].mxu0
      %v590 = vadd.f32 %v274, %v589
      %v591 = vpop.f32.mrb[0].mxu0
      %v592 = vpop.f32.mrb[0].mxu0
      %v593 = vadd.f32 %v274, %v592
      %v594 = vpop.f32.mrb[0].mxu0
      %595 = vmatprep.mubr.bf16.mxu0 %v491
      %596 = vmatmul.mubr.bf16.gmra.mrb[0].mxu0 %v382
      %v597 = vpop.f32.mrb[0].mxu0
      %v598 = vadd.f32 %v274, %v597
      %v599 = vpop.f32.mrb[0].mxu0
      %v600 = vpop.f32.mrb[0].mxu0
      %v601 = vadd.f32 %v274, %v600
      %v602 = vpop.f32.mrb[0].mxu0
      %603 = vmatprep.mubr.bf16.mxu0 %v494
      %604 = vmatmul.mubr.bf16.gmra.mrb[0].mxu0 %v384
      %v605 = vpop.f32.mrb[0].mxu0
      %v606 = vadd.f32 %v274, %v605
      %v607 = vpop.f32.mrb[0].mxu0
      %v608 = vpop.f32.mrb[0].mxu0
      %v609 = vadd.f32 %v274, %v608
      %v610 = vpop.f32.mrb[0].mxu0
      %611 = vmatprep.mubr.bf16.mxu0 %v497
      %612 = vmatmul.mubr.bf16.gmra.mrb[0].mxu0 %v386
      %v613 = vpop.f32.mrb[0].mxu0
      %v614 = vadd.f32 %v274, %v613
      %v615 = vpop.f32.mrb[0].mxu0
      %v616 = vpop.f32.mrb[0].mxu0
      %v617 = vadd.f32 %v274, %v616
      %v618 = vpop.f32.mrb[0].mxu0
      %619 = vmatprep.mubr.bf16.mxu0 %v500
      %620 = vmatmul.mubr.bf16.gmra.mrb[0].mxu0 %v388
      %v621 = vpop.f32.mrb[0].mxu0
      %v622 = vadd.f32 %v274, %v621
      %v623 = vpop.f32.mrb[0].mxu0
      %v624 = vpop.f32.mrb[0].mxu0
      %v625 = vadd.f32 %v274, %v624
      %v626 = vpop.f32.mrb[0].mxu0
      %627 = vmatprep.mubr.bf16.mxu0 %v503
      %628 = vmatmul.mubr.bf16.gmra.mrb[0].mxu0 %v390
      %v629 = vpop.f32.mrb[0].mxu0
      %v630 = vadd.f32 %v274, %v629
      %v631 = vpop.f32.mrb[0].mxu0
      %v632 = vpop.f32.mrb[0].mxu0
      %v633 = vadd.f32 %v274, %v632
      %v634 = vpop.f32.mrb[0].mxu0
      %635 = vmatprep.mubr.bf16.mxu0 %v506
      %636 = vmatmul.mubr.bf16.gmra.mrb[0].mxu0 %v392
      %v637 = vpop.f32.mrb[0].mxu0
      %v638 = vadd.f32 %v274, %v637
      %v639 = vpop.f32.mrb[0].mxu0
      %v640 = vpop.f32.mrb[0].mxu0
      %v641 = vadd.f32 %v274, %v640
      %v642 = vpop.f32.mrb[0].mxu0
      %643 = vmatprep.mubr.bf16.mxu0 %v509
      %644 = vmatmul.mubr.bf16.gmra.mrb[0].mxu0 %v394
      %v645 = vpop.f32.mrb[0].mxu0
      %v646 = vadd.f32 %v274, %v645
      %v647 = vpop.f32.mrb[0].mxu0
      %v648 = vpop.f32.mrb[0].mxu0
      %v649 = vadd.f32 %v274, %v648
      %v650 = vpop.f32.mrb[0].mxu0
      %651 = vmatprep.mubr.bf16.mxu0 %v512
      %652 = vmatmul.mubr.bf16.gmra.mrb[0].mxu0 %v396
      %v653 = vpop.f32.mrb[0].mxu0
      %v654 = vadd.f32 %v274, %v653
      %v655 = vpop.f32.mrb[0].mxu0
      %v656 = vpop.f32.mrb[0].mxu0
      %v657 = vadd.f32 %v274, %v656
      %v658 = vpop.f32.mrb[0].mxu0
      %659 = vmatprep.mubr.bf16.mxu0 %v515
      %660 = vmatmul.mubr.bf16.gmra.mrb[0].mxu0 %v398
      %v661 = vpop.f32.mrb[0].mxu0
      %v662 = vadd.f32 %v274, %v661
      %v663 = vpop.f32.mrb[0].mxu0
      %v664 = vpop.f32.mrb[0].mxu0
      %v665 = vadd.f32 %v274, %v664
      %v666 = vpop.f32.mrb[0].mxu0
      %667 = vmatprep.mubr.bf16.mxu0 %v518
      %668 = vmatmul.mubr.bf16.gmra.mrb[0].mxu0 %v400
      %v669 = vpop.f32.mrb[0].mxu0
      %v670 = vadd.f32 %v274, %v669
      %v671 = vpop.f32.mrb[0].mxu0
      %v672 = vpop.f32.mrb[0].mxu0
      %v673 = vadd.f32 %v274, %v672
      %v674 = vpop.f32.mrb[0].mxu0
      %675 = vmatprep.mubr.bf16.mxu0 %v521
      %676 = vmatmul.mubr.bf16.gmra.mrb[0].mxu0 %v402
      %v677 = vpop.f32.mrb[0].mxu0
      %v678 = vadd.f32 %v274, %v677
      %v679 = vpop.f32.mrb[0].mxu0
      %v680 = vpop.f32.mrb[0].mxu0
      %v681 = vadd.f32 %v274, %v680
      %v682 = vpop.f32.mrb[0].mxu0
      %683 = vdwg.mxu0
      %v684 = vld [vmem:[%s212] sm:$0xf]
      %v685 = vld [vmem:[%s212 + $0x4] sm:$0xf]
      %v686 = vld [vmem:[%s212 + $0x8] sm:$0xf]
      %v687 = vld [vmem:[%s212 + $0xc] sm:$0xf]
      %v688 = vld [vmem:[%s212 + $0x10] sm:$0xf]
      %v689 = vld [vmem:[%s212 + $0x14] sm:$0xf]
      %v690 = vld [vmem:[%s212 + $0x18] sm:$0xf]
      %v691 = vld [vmem:[%s212 + $0x1c] sm:$0xf]
      %v692 = vld [vmem:[%s212 + $0x20] sm:$0xf]
      %v693 = vld [vmem:[%s212 + $0x24] sm:$0xf]
      %v694 = vld [vmem:[%s212 + $0x28] sm:$0xf]
      %v695 = vld [vmem:[%s212 + $0x2c] sm:$0xf]
      %v696 = vld [vmem:[%s212 + $0x30] sm:$0xf]
      %v697 = vld [vmem:[%s212 + $0x34] sm:$0xf]
      %v698 = vld [vmem:[%s212 + $0x38] sm:$0xf]
      %v699 = vld [vmem:[%s212 + $0x3c] sm:$0xf]
      %v700 = vld [vmem:[%s212 + $0x40] sm:$0xf]
      %v701 = vld [vmem:[%s212 + $0x44] sm:$0xf]
      %v702 = vld [vmem:[%s212 + $0x48] sm:$0xf]
      %v703 = vld [vmem:[%s212 + $0x4c] sm:$0xf]
      %v704 = vld [vmem:[%s212 + $0x50] sm:$0xf]
      %v705 = vld [vmem:[%s212 + $0x54] sm:$0xf]
      %v706 = vld [vmem:[%s212 + $0x58] sm:$0xf]
      %v707 = vld [vmem:[%s212 + $0x5c] sm:$0xf]
      %v708 = vld [vmem:[%s212 + $0x60] sm:$0xf]
      %v709 = vld [vmem:[%s212 + $0x64] sm:$0xf]
      %v710 = vld [vmem:[%s212 + $0x68] sm:$0xf]
      %v711 = vld [vmem:[%s212 + $0x6c] sm:$0xf]
      %v712 = vld [vmem:[%s212 + $0x70] sm:$0xf]
      %v713 = vld [vmem:[%s212 + $0x74] sm:$0xf]
      %v714 = vld [vmem:[%s212 + $0x78] sm:$0xf]
      %v715 = vld [vmem:[%s212 + $0x7c] sm:$0xf]
      %v716 = vunpack.c.l.bf16 %v684
      %v717 = vunpack.c.l.bf16 %v685
      %v718 = vunpack.c.l.bf16 %v686
      %v719 = vunpack.c.l.bf16 %v687
      %v720 = vunpack.c.l.bf16 %v688
      %v721 = vunpack.c.l.bf16 %v689
      %v722 = vunpack.c.l.bf16 %v690
      %v723 = vunpack.c.l.bf16 %v691
      %v724 = vunpack.c.l.bf16 %v692
      %v725 = vunpack.c.l.bf16 %v693
      %v726 = vunpack.c.l.bf16 %v694
      %v727 = vunpack.c.l.bf16 %v695
      %v728 = vunpack.c.l.bf16 %v696
      %v729 = vunpack.c.l.bf16 %v697
      %v730 = vunpack.c.l.bf16 %v698
      %v731 = vunpack.c.l.bf16 %v699
      %v732 = vunpack.c.l.bf16 %v700
      %v733 = vunpack.c.l.bf16 %v701
      %v734 = vunpack.c.l.bf16 %v702
      %v735 = vunpack.c.l.bf16 %v703
      %v736 = vunpack.c.l.bf16 %v704
      %v737 = vunpack.c.l.bf16 %v705
      %v738 = vunpack.c.l.bf16 %v706
      %v739 = vunpack.c.l.bf16 %v707
      %v740 = vunpack.c.l.bf16 %v708
      %v741 = vunpack.c.l.bf16 %v709
      %v742 = vunpack.c.l.bf16 %v710
      %v743 = vunpack.c.l.bf16 %v711
      %v744 = vunpack.c.l.bf16 %v712
      %v745 = vunpack.c.l.bf16 %v713
      %v746 = vunpack.c.l.bf16 %v714
      %v747 = vunpack.c.l.bf16 %v715
      %v748 = vadd.f32 %v558, %v716
      %v749 = vadd.f32 %v561, %v717
      %v750 = vadd.f32 %v566, %v718
      %v751 = vadd.f32 %v569, %v719
      %v752 = vadd.f32 %v574, %v720
      %v753 = vadd.f32 %v577, %v721
      %v754 = vadd.f32 %v582, %v722
      %v755 = vadd.f32 %v585, %v723
      %v756 = vadd.f32 %v590, %v724
      %v757 = vadd.f32 %v593, %v725
      %v758 = vadd.f32 %v598, %v726
      %v759 = vadd.f32 %v601, %v727
      %v760 = vadd.f32 %v606, %v728
      %v761 = vadd.f32 %v609, %v729
      %v762 = vadd.f32 %v614, %v730
      %v763 = vadd.f32 %v617, %v731
      %v764 = vadd.f32 %v622, %v732
      %v765 = vadd.f32 %v625, %v733
      %v766 = vadd.f32 %v630, %v734
      %v767 = vadd.f32 %v633, %v735
      %v768 = vadd.f32 %v638, %v736
      %v769 = vadd.f32 %v641, %v737
      %v770 = vadd.f32 %v646, %v738
      %v771 = vadd.f32 %v649, %v739
      %v772 = vadd.f32 %v654, %v740
      %v773 = vadd.f32 %v657, %v741
      %v774 = vadd.f32 %v662, %v742
      %v775 = vadd.f32 %v665, %v743
      %v776 = vadd.f32 %v670, %v744
      %v777 = vadd.f32 %v673, %v745
      %v778 = vadd.f32 %v678, %v746
      %v779 = vadd.f32 %v681, %v747
      %v780 = vmax.f32 %v748, 0.0
      %v781 = vmax.f32 %v749, 0.0
      %v782 = vmax.f32 %v750, 0.0
      %v783 = vmax.f32 %v751, 0.0
      %v784 = vmax.f32 %v752, 0.0
      %v785 = vmax.f32 %v753, 0.0
      %v786 = vmax.f32 %v754, 0.0
      %v787 = vmax.f32 %v755, 0.0
      %v788 = vmax.f32 %v756, 0.0
      %v789 = vmax.f32 %v757, 0.0
      %v790 = vmax.f32 %v758, 0.0
      %v791 = vmax.f32 %v759, 0.0
      %v792 = vmax.f32 %v760, 0.0
      %v793 = vmax.f32 %v761, 0.0
      %v794 = vmax.f32 %v762, 0.0
      %v795 = vmax.f32 %v763, 0.0
      %v796 = vmax.f32 %v764, 0.0
      %v797 = vmax.f32 %v765, 0.0
      %v798 = vmax.f32 %v766, 0.0
      %v799 = vmax.f32 %v767, 0.0
      %v800 = vmax.f32 %v768, 0.0
      %v801 = vmax.f32 %v769, 0.0
      %v802 = vmax.f32 %v770, 0.0
      %v803 = vmax.f32 %v771, 0.0
      %v804 = vmax.f32 %v772, 0.0
      %v805 = vmax.f32 %v773, 0.0
      %v806 = vmax.f32 %v774, 0.0
      %v807 = vmax.f32 %v775, 0.0
      %v808 = vmax.f32 %v776, 0.0
      %v809 = vmax.f32 %v777, 0.0
      %v810 = vmax.f32 %v778, 0.0
      %v811 = vmax.f32 %v779, 0.0
      %v812 = vpack.c.bf16 %v781, %v780
      %v813 = vpack.c.bf16 %v783, %v782
      %v814 = vpack.c.bf16 %v785, %v784
      %v815 = vpack.c.bf16 %v787, %v786
      %v816 = vpack.c.bf16 %v789, %v788
      %v817 = vpack.c.bf16 %v791, %v790
      %v818 = vpack.c.bf16 %v793, %v792
      %v819 = vpack.c.bf16 %v795, %v794
      %v820 = vpack.c.bf16 %v797, %v796
      %v821 = vpack.c.bf16 %v799, %v798
      %v822 = vpack.c.bf16 %v801, %v800
      %v823 = vpack.c.bf16 %v803, %v802
      %v824 = vpack.c.bf16 %v805, %v804
      %v825 = vpack.c.bf16 %v807, %v806
      %v826 = vpack.c.bf16 %v809, %v808
      %v827 = vpack.c.bf16 %v811, %v810
      %v844 = vunpack.c.l.b16 %v812
      %v845 = vunpack.c.h.b16 %v812
      %v846 = vunpack.c.l.b16 %v813
      %v847 = vunpack.c.h.b16 %v813
      %v848 = vunpack.c.l.b16 %v814
      %v849 = vunpack.c.h.b16 %v814
      %v850 = vunpack.c.l.b16 %v815
      %v851 = vunpack.c.h.b16 %v815
      %v852 = vunpack.c.l.b16 %v816
      %v853 = vunpack.c.h.b16 %v816
      %v854 = vunpack.c.l.b16 %v817
      %v855 = vunpack.c.h.b16 %v817
      %v856 = vunpack.c.l.b16 %v818
      %v857 = vunpack.c.h.b16 %v818
      %v858 = vunpack.c.l.b16 %v819
      %v859 = vunpack.c.h.b16 %v819
      %v860 = vunpack.c.l.b16 %v820
      %v861 = vunpack.c.h.b16 %v820
      %v862 = vunpack.c.l.b16 %v821
      %v863 = vunpack.c.h.b16 %v821
      %v864 = vunpack.c.l.b16 %v822
      %v865 = vunpack.c.h.b16 %v822
      %v866 = vunpack.c.l.b16 %v823
      %v867 = vunpack.c.h.b16 %v823
      %v868 = vunpack.c.l.b16 %v824
      %v869 = vunpack.c.h.b16 %v824
      %v870 = vunpack.c.l.b16 %v825
      %v871 = vunpack.c.h.b16 %v825
      %v872 = vunpack.c.l.b16 %v826
      %v873 = vunpack.c.h.b16 %v826
      %v874 = vunpack.c.l.b16 %v827
      %v875 = vunpack.c.h.b16 %v827
      %v876 = vpack.c.b16 %v844, %v844
      %v877 = vpack.c.b16 %v845, %v845
      %v878 = vpack.c.b16 %v846, %v846
      %v879 = vpack.c.b16 %v847, %v847
      %v880 = vpack.c.b16 %v848, %v848
      %v881 = vpack.c.b16 %v849, %v849
      %v882 = vpack.c.b16 %v850, %v850
      %v883 = vpack.c.b16 %v851, %v851
      %v884 = vpack.c.b16 %v852, %v852
      %v885 = vpack.c.b16 %v853, %v853
      %v886 = vpack.c.b16 %v854, %v854
      %v887 = vpack.c.b16 %v855, %v855
      %v888 = vpack.c.b16 %v856, %v856
      %v889 = vpack.c.b16 %v857, %v857
      %v890 = vpack.c.b16 %v858, %v858
      %v891 = vpack.c.b16 %v859, %v859
      %v892 = vpack.c.b16 %v860, %v860
      %v893 = vpack.c.b16 %v861, %v861
      %v894 = vpack.c.b16 %v862, %v862
      %v895 = vpack.c.b16 %v863, %v863
      %v896 = vpack.c.b16 %v864, %v864
      %v897 = vpack.c.b16 %v865, %v865
      %v898 = vpack.c.b16 %v866, %v866
      %v899 = vpack.c.b16 %v867, %v867
      %v900 = vpack.c.b16 %v868, %v868
      %v901 = vpack.c.b16 %v869, %v869
      %v902 = vpack.c.b16 %v870, %v870
      %v903 = vpack.c.b16 %v871, %v871
      %v904 = vpack.c.b16 %v872, %v872
      %v905 = vpack.c.b16 %v873, %v873
      %v906 = vpack.c.b16 %v874, %v874
      %v907 = vpack.c.b16 %v875, %v875
      %vm940 = vcmask 125952
      %941 = vst.msk [vmem:[%s217] sm:$0xf] %vm940, %v876
      %942 = vst.msk [vmem:[%s217 + $0x4] sm:$0xf] %vm940, %v877
      %943 = vst.msk [vmem:[%s217 + $0x8] sm:$0xf] %vm940, %v878
      %944 = vst.msk [vmem:[%s217 + $0xc] sm:$0xf] %vm940, %v879
      %945 = vst.msk [vmem:[%s217 + $0x10] sm:$0xf] %vm940, %v880
      %946 = vst.msk [vmem:[%s217 + $0x14] sm:$0xf] %vm940, %v881
      %947 = vst.msk [vmem:[%s217 + $0x18] sm:$0xf] %vm940, %v882
      %948 = vst.msk [vmem:[%s217 + $0x1c] sm:$0xf] %vm940, %v883
      %949 = vst.msk [vmem:[%s217 + $0x20] sm:$0xf] %vm940, %v884
      %950 = vst.msk [vmem:[%s217 + $0x24] sm:$0xf] %vm940, %v885
      %951 = vst.msk [vmem:[%s217 + $0x28] sm:$0xf] %vm940, %v886
      %952 = vst.msk [vmem:[%s217 + $0x2c] sm:$0xf] %vm940, %v887
      %953 = vst.msk [vmem:[%s217 + $0x30] sm:$0xf] %vm940, %v888
      %954 = vst.msk [vmem:[%s217 + $0x34] sm:$0xf] %vm940, %v889
      %955 = vst.msk [vmem:[%s217 + $0x38] sm:$0xf] %vm940, %v890
      %956 = vst.msk [vmem:[%s217 + $0x3c] sm:$0xf] %vm940, %v891
      %957 = vst.msk [vmem:[%s217 + $0x40] sm:$0xf] %vm940, %v892
      %958 = vst.msk [vmem:[%s217 + $0x44] sm:$0xf] %vm940, %v893
      %959 = vst.msk [vmem:[%s217 + $0x48] sm:$0xf] %vm940, %v894
      %960 = vst.msk [vmem:[%s217 + $0x4c] sm:$0xf] %vm940, %v895
      %961 = vst.msk [vmem:[%s217 + $0x50] sm:$0xf] %vm940, %v896
      %962 = vst.msk [vmem:[%s217 + $0x54] sm:$0xf] %vm940, %v897
      %963 = vst.msk [vmem:[%s217 + $0x58] sm:$0xf] %vm940, %v898
      %964 = vst.msk [vmem:[%s217 + $0x5c] sm:$0xf] %vm940, %v899
      %965 = vst.msk [vmem:[%s217 + $0x60] sm:$0xf] %vm940, %v900
      %966 = vst.msk [vmem:[%s217 + $0x64] sm:$0xf] %vm940, %v901
      %967 = vst.msk [vmem:[%s217 + $0x68] sm:$0xf] %vm940, %v902
      %968 = vst.msk [vmem:[%s217 + $0x6c] sm:$0xf] %vm940, %v903
      %969 = vst.msk [vmem:[%s217 + $0x70] sm:$0xf] %vm940, %v904
      %970 = vst.msk [vmem:[%s217 + $0x74] sm:$0xf] %vm940, %v905
      %971 = vst.msk [vmem:[%s217 + $0x78] sm:$0xf] %vm940, %v906
      %972 = vst.msk [vmem:[%s217 + $0x7c] sm:$0xf] %vm940, %v907
      %p973 = scmp.lt.s32.totalorder %s15, 1
      %s974 = scalar_select %p973, %s15, 1
      %s975 = smul.addr %s974, 32
      %s976 = smul.addr %s975, 4
      %s977 = scalar_lea.vmem %s4, %s976
      // Predicated region
      $region37: #{forward.10} parent=35 // pred_check
        %p978 = pneg %p127
      $region38: #{forward.10} parent=35 // pred_check_branch
        %980 = sbr.rel (%p978) target = $region40
      $region39: #{forward.10} parent=35 // pred_region
        _
      $region40: #{forward.10} parent=35 // pred_fallthru
        _
    $region36: #{forward.10} parent=5 // pred_fallthru
      _
    %p981 = scmp.le.s32.totalorder 2, %s10
    // Predicated region
    $region41: #{forward.10} parent=5 // pred_check
      %p982 = pneg %p981
    $region42: #{forward.10} parent=5 // pred_check_branch
      %984 = sbr.rel (%p982) target = $region44
    $region43: #{forward.10} parent=5 // pred_region
      %s985 = ssub.s32 %s10, 2
      // Predicated region
      $region45: #{forward.10} parent=43 // pred_check
        %p986 = pneg %p133
      $region46: #{forward.10} parent=43 // pred_check_branch
        %988 = sbr.rel (%p986) target = $region48
      $region47: #{forward.10} parent=43 // pred_region
        %p989 = scmp.lt.s32.totalorder %s16, 1
        %s990 = scalar_select %p989, %s16, 1
        %s991 = smul.addr %s990, 32
        %s992 = smul.addr %s991, 4
        %s993 = scalar_lea.vmem %s4, %s992
      $region48: #{forward.10} parent=43 // pred_fallthru
        _
    $region44: #{forward.10} parent=5 // pred_fallthru
      _
  $region6: #{forward.10} parent=0 // loop_footer
    %s14 = sadd.s32 1, %s10
  $region7: #{forward.10} parent=0 // loop_footer_branch
    %9 = sbr.rel target = $region3
  $region8: #{forward.10} parent=0 // loop_exit
    _

// kernel: forward.11
$region0: #{forward.11}
  #allocation0 [shape = 'u32[]', space=smem, size = 0x4, offset = 0x4, fixed_abs, tag = 'smem constant byte address 0x4 - core index']
  #allocation1 [shape = 'u32[144,128]{1,0:T(1,128)}', space=vmem, size = 0x12000, scoped, tag = 'internal scratch']
  %s0 = inlined_call_operand.vmem [shape: bf16[2,64,144], index: 0, kind: input, shape index: {}]
  %s1 = inlined_call_operand.vmem [shape: bf16[144,32], index: 1, kind: input, shape index: {}]
  %s2 = inlined_call_operand.vmem [shape: f32[1,32], index: 2, kind: input, shape index: {}]
  %s3 = inlined_call_operand.vmem [shape: bf16[2,64,32], index: 3, kind: output, shape index: {}]
  %s4 = sld [smem:[#allocation0]]
  $region45: #{forward.11} parent=0
    _
  %s6 = ssub.s32 1, %s4
  %s7 = scalar_select 0, %s6, %s4
  loop: start=0, step=1, limit=4
  $region2: #{forward.11} parent=0 // loop_pre_header
    _
  $region3: #{forward.11} parent=0 // loop_header
    %s9 = sphi 0, %s13
    %p10 = scmp.ge.s32.totalorder %s9, 4
    %s19 = sphi 0, %s21
    %s22 = sphi 0, %s19
    %s23 = sphi 0, %s22
    %s39 = sphi 0, %s23
    %s43 = sphi 0, %s43
    %s45 = sphi 0, %s43
    %s46 = sphi 0, %s45
    %s60 = sphi 0, %s46
    %s64 = sphi 0, %s64
    %s66 = sphi 0, %s64
    %s67 = sphi 0, %s66
    %s81 = sphi 0, %s67
    %s87 = sphi 0, %s89
    %s90 = sphi 0, %s87
    %s91 = sphi 0, %s90
    %s107 = sphi 0, %s91
  $region4: #{forward.11} parent=0 // loop_header_branch
    %12 = sbr.rel (%p10) target = $region8
  $region5: #{forward.11} parent=0 // loop_body
    %s14 = ssub.s32 %s9, 1
    %s15 = ssub.s32 %s9, 2
    %s16 = sadd.s32 %s9, 1
    %s17 = ssub.s32 %s9, %s16
    %p18 = scmp.eq.s32.totalorder %s17, 0
    %s20 = sadd.s32 %s19, 1
    %s21 = scalar_select %p18, %s19, %s20
    %p24 = pneg %p18
    %p25 = scmp.eq.s32.totalorder %s9, 1
    %p26 = por %p24, %p25
    %p27 = scmp.ne.s32.totalorder %s19, %s22
    %p28 = scmp.eq.s32.totalorder %s9, 0
    %p29 = por %p27, %p28
    %p30 = scmp.ne.s32.totalorder %s19, %s22
    %p31 = scmp.eq.s32.totalorder %s14, 1
    %p32 = por %p30, %p31
    %p33 = scmp.ne.s32.totalorder %s22, %s23
    %p34 = scmp.eq.s32.totalorder %s14, 0
    %p35 = por %p33, %p34
    %p36 = scmp.ne.s32.totalorder %s22, %s23
    %p37 = scmp.eq.s32.totalorder %s15, 1
    %p38 = por %p36, %p37
    %p40 = scmp.ne.s32.totalorder %s23, %s39
    %p41 = scmp.eq.s32.totalorder %s15, 0
    %p42 = por %p40, %p41
    %s44 = sadd.s32 %s43, 1
    %p47 = scmp.eq.s32.totalorder %s9, 1
    %p48 = scmp.ne.s32.totalorder %s43, %s45
    %p49 = scmp.eq.s32.totalorder %s9, 0
    %p50 = por %p48, %p49
    %p51 = scmp.ne.s32.totalorder %s43, %s45
    %p52 = scmp.eq.s32.totalorder %s14, 1
    %p53 = por %p51, %p52
    %p54 = scmp.ne.s32.totalorder %s45, %s46
    %p55 = scmp.eq.s32.totalorder %s14, 0
    %p56 = por %p54, %p55
    %p57 = scmp.ne.s32.totalorder %s45, %s46
    %p58 = scmp.eq.s32.totalorder %s15, 1
    %p59 = por %p57, %p58
    %p61 = scmp.ne.s32.totalorder %s46, %s60
    %p62 = scmp.eq.s32.totalorder %s15, 0
    %p63 = por %p61, %p62
    %s65 = sadd.s32 %s64, 1
    %p68 = scmp.eq.s32.totalorder %s9, 1
    %p69 = scmp.ne.s32.totalorder %s64, %s66
    %p70 = scmp.eq.s32.totalorder %s9, 0
    %p71 = por %p69, %p70
    %p72 = scmp.ne.s32.totalorder %s64, %s66
    %p73 = scmp.eq.s32.totalorder %s14, 1
    %p74 = por %p72, %p73
    %p75 = scmp.ne.s32.totalorder %s66, %s67
    %p76 = scmp.eq.s32.totalorder %s14, 0
    %p77 = por %p75, %p76
    %p78 = scmp.ne.s32.totalorder %s66, %s67
    %p79 = scmp.eq.s32.totalorder %s15, 1
    %p80 = por %p78, %p79
    %p82 = scmp.ne.s32.totalorder %s67, %s81
    %p83 = scmp.eq.s32.totalorder %s15, 0
    %p84 = por %p82, %p83
    %s85 = ssub.s32 %s9, %s16
    %p86 = scmp.eq.s32.totalorder %s85, 0
    %s88 = sadd.s32 %s87, 1
    %s89 = scalar_select %p86, %s87, %s88
    %p92 = pneg %p86
    %p93 = scmp.eq.s32.totalorder %s9, 1
    %p94 = por %p92, %p93
    %p95 = scmp.ne.s32.totalorder %s87, %s90
    %p96 = scmp.eq.s32.totalorder %s9, 0
    %p97 = por %p95, %p96
    %p98 = scmp.ne.s32.totalorder %s87, %s90
    %p99 = scmp.eq.s32.totalorder %s14, 1
    %p100 = por %p98, %p99
    %p101 = scmp.ne.s32.totalorder %s90, %s91
    %p102 = scmp.eq.s32.totalorder %s14, 0
    %p103 = por %p101, %p102
    %p104 = scmp.ne.s32.totalorder %s90, %s91
    %p105 = scmp.eq.s32.totalorder %s15, 1
    %p106 = por %p104, %p105
    %p108 = scmp.ne.s32.totalorder %s91, %s107
    %p109 = scmp.eq.s32.totalorder %s15, 0
    %p110 = por %p108, %p109
    %p111 = scmp.le.s32.totalorder 1, %s9
    %p112 = scmp.lt.s32.totalorder %s9, 3
    %p113 = pnand %p111, %p112
    %p114 = pneg %p113
    // Predicated region
    $region9: #{forward.11} parent=5 // pred_check
      _
    $region10: #{forward.11} parent=5 // pred_check_branch
      %116 = sbr.rel (%p113) target = $region12
    $region11: #{forward.11} parent=5 // pred_region
      %s117 = ssub.s32 %s9, 1
      // Predicated region
      $region13: #{forward.11} parent=11 // pred_check
        %p118 = pneg %p56
      $region14: #{forward.11} parent=11 // pred_check_branch
        %120 = sbr.rel (%p118) target = $region16
      $region15: #{forward.11} parent=11 // pred_region
        _
      $region16: #{forward.11} parent=11 // pred_fallthru
        _
      // Predicated region
      $region17: #{forward.11} parent=11 // pred_check
        %p121 = pneg %p77
      $region18: #{forward.11} parent=11 // pred_check_branch
        %123 = sbr.rel (%p121) target = $region20
      $region19: #{forward.11} parent=11 // pred_region
        _
      $region20: #{forward.11} parent=11 // pred_fallthru
        _
    $region12: #{forward.11} parent=5 // pred_fallthru
      _
    %p124 = scmp.lt.s32.totalorder %s9, 2
    // Predicated region
    $region21: #{forward.11} parent=5 // pred_check
      %p125 = pneg %p124
    $region22: #{forward.11} parent=5 // pred_check_branch
      %127 = sbr.rel (%p125) target = $region24
    $region23: #{forward.11} parent=5 // pred_region
      // Predicated region
      $region25: #{forward.11} parent=23 // pred_check
        %p128 = pneg %p29
      $region26: #{forward.11} parent=23 // pred_check_branch
        %130 = sbr.rel (%p128) target = $region28
      $region27: #{forward.11} parent=23 // pred_region
        %p131 = scmp.lt.s32.totalorder %s9, 1
        %s132 = scalar_select %p131, %s9, 1
        %s133 = smul.addr %s132, 16
        %s134 = smul.addr %s133, 4
        %s135 = scalar_lea.vmem %s0, %s134
      $region28: #{forward.11} parent=23 // pred_fallthru
        _
    $region24: #{forward.11} parent=5 // pred_fallthru
      _
    %p136 = scmp.le.s32.totalorder 1, %s9
    %p137 = scmp.lt.s32.totalorder %s9, 3
    %p138 = pnand %p136, %p137
    %p139 = pneg %p138
    // Predicated region
    $region29: #{forward.11} parent=5 // pred_check
      _
    $region30: #{forward.11} parent=5 // pred_check_branch
      %141 = sbr.rel (%p138) target = $region32
    $region31: #{forward.11} parent=5 // pred_region
      %s142 = ssub.s32 %s9, 1
      %p143 = scmp.lt.s32.totalorder %s14, 1
      %s144 = scalar_select %p143, %s14, 1
      %s145 = smul.addr %s144, 16
      %s146 = smul.addr %s145, 4
      %s147 = scalar_lea.vmem %s0, %s146
      %p148 = pneg %p35
      %p149 = pneg %p32
      %p150 = pneg %p56
      %p151 = pneg %p53
      %p152 = pneg %p77
      %p153 = pneg %p74
      %p154 = pneg %p103
      %p155 = pneg %p100
      %p156 = scmp.lt.s32.totalorder %s14, 1
      %s157 = scalar_select %p156, %s14, 1
      %s158 = smul.addr %s157, 8
      %s159 = smul.addr %s158, 4
      %s160 = scalar_lea.vmem %s3, %s159
      %p161 = scmp.lt.s32.totalorder %s14, 1
      %s162 = scalar_select %p161, %s14, 1
      %s163 = smul.addr %s162, 16
      %s164 = smul.addr %s163, 4
      %s165 = scalar_lea.vmem %s0, %s164
      %p166 = scmp.lt.s32.totalorder %s14, 1
      %s167 = scalar_select %p166, %s14, 1
      %s168 = smul.addr %s167, 8
      %s169 = smul.addr %s168, 4
      %s170 = scalar_lea.vmem %s3, %s169
      %v172 = vld [vmem:[%s165] sm:$0xff]
      %v173 = vld [vmem:[%s165 + $0x8] sm:$0xff]
      %v174 = vld [vmem:[%s165 + $0x10] sm:$0xff]
      %v175 = vld [vmem:[%s165 + $0x18] sm:$0xff]
      %v176 = vld [vmem:[%s165 + $0x20] sm:$0xff]
      %v177 = vld [vmem:[%s165 + $0x28] sm:$0xff]
      %v178 = vld [vmem:[%s165 + $0x30] sm:$0xff]
      %v179 = vld [vmem:[%s165 + $0x38] sm:$0xff]
      %v180 = vld [vmem:[%s1] sm:$0xf]
      %v181 = vld [vmem:[%s1 + $0x4] sm:$0xf]
      %v182 = vld [vmem:[%s1 + $0x8] sm:$0xf]
      %v183 = vld [vmem:[%s1 + $0xc] sm:$0xf]
      %v184 = vld [vmem:[%s1 + $0x10] sm:$0xf]
      %v185 = vld [vmem:[%s1 + $0x14] sm:$0xf]
      %v186 = vld [vmem:[%s1 + $0x18] sm:$0xf]
      %v187 = vld [vmem:[%s1 + $0x1c] sm:$0xf]
      %v188 = vld [vmem:[%s1 + $0x20] sm:$0xf]
      %v189 = vld [vmem:[%s1 + $0x24] sm:$0xf]
      %v190 = vld [vmem:[%s1 + $0x28] sm:$0xf]
      %v191 = vld [vmem:[%s1 + $0x2c] sm:$0xf]
      %v192 = vld [vmem:[%s1 + $0x30] sm:$0xf]
      %v193 = vld [vmem:[%s1 + $0x34] sm:$0xf]
      %v194 = vld [vmem:[%s1 + $0x38] sm:$0xf]
      %v195 = vld [vmem:[%s1 + $0x3c] sm:$0xf]
      %v196 = vld [vmem:[%s1 + $0x40] sm:$0xf]
      %v197 = vld [vmem:[%s1 + $0x44] sm:$0xf]
      %v198 = vld [vmem:[%s2] sm:$0x1]
      %v200 = vlaneseq
      %v201 = vshrl.u32 %v200, 7
      %v202 = vsub.s32 0, %v201
      %v203 = vrot.slane %v198, %v202
      %v213 = vunpack.c.l.b16 %v172
      %v214 = vunpack.c.h.b16 %v172
      %v215 = vunpack.c.l.b16 %v173
      %v216 = vunpack.c.h.b16 %v173
      %v217 = vunpack.c.l.b16 %v174
      %v218 = vunpack.c.h.b16 %v174
      %v219 = vunpack.c.l.b16 %v175
      %v220 = vunpack.c.h.b16 %v175
      %v221 = vunpack.c.l.b16 %v176
      %v222 = vunpack.c.h.b16 %v176
      %v223 = vunpack.c.l.b16 %v177
      %v224 = vunpack.c.h.b16 %v177
      %v225 = vunpack.c.l.b16 %v178
      %v226 = vunpack.c.h.b16 %v178
      %v227 = vunpack.c.l.b16 %v179
      %v228 = vunpack.c.h.b16 %v179
      %v229 = vpack.c.b16 %v215, %v213
      %v230 = vpack.c.b16 %v216, %v214
      %v231 = vpack.c.b16 %v219, %v217
      %v232 = vpack.c.b16 %v220, %v218
      %v233 = vpack.c.b16 %v223, %v221
      %v234 = vpack.c.b16 %v224, %v222
      %v235 = vpack.c.b16 %v227, %v225
      %v236 = vpack.c.b16 %v228, %v226
      %v259 = vunpack.c.l.b16 %v180
      %v260 = vunpack.c.l.b16 %v181
      %v261 = vunpack.c.l.b16 %v182
      %v262 = vunpack.c.l.b16 %v183
      %v263 = vunpack.c.l.b16 %v184
      %v264 = vunpack.c.l.b16 %v185
      %v265 = vunpack.c.l.b16 %v186
      %v266 = vunpack.c.l.b16 %v187
      %v267 = vunpack.c.l.b16 %v188
      %v268 = vunpack.c.l.b16 %v189
      %v269 = vunpack.c.l.b16 %v190
      %v270 = vunpack.c.l.b16 %v191
      %v271 = vunpack.c.l.b16 %v192
      %v272 = vunpack.c.l.b16 %v193
      %v273 = vunpack.c.l.b16 %v194
      %v274 = vunpack.c.l.b16 %v195
      %v275 = vunpack.c.l.b16 %v196
      %v276 = vunpack.c.l.b16 %v197
      %v277 = vpack.c.b16 %v260, %v259
      %v278 = vpack.c.b16 %v262, %v261
      %v279 = vpack.c.b16 %v264, %v263
      %v280 = vpack.c.b16 %v266, %v265
      %v281 = vpack.c.b16 %v268, %v267
      %v282 = vpack.c.b16 %v270, %v269
      %v283 = vpack.c.b16 %v272, %v271
      %v284 = vpack.c.b16 %v274, %v273
      %v285 = vpack.c.b16 %v276, %v275
      %vm295 = vcmask 130048
      %v297 = vsel %vm295, %v230, 0
      %v300 = vsel %vm295, %v232, 0
      %v303 = vsel %vm295, %v234, 0
      %v306 = vsel %vm295, %v236, 0
      %308 = vmatprep.subr.bf16.mxu0 0
      %309 = vmatpush1.bf16.msra.mxu0 %v277
      %310 = vmatprep.subr.bf16.mxu0 0
      %311 = vmatpush1.bf16.msra.mxu0 %v278
      %312 = vmatprep.subr.bf16.mxu0 0
      %313 = vmatpush1.bf16.msra.mxu0 %v279
      %314 = vmatprep.subr.bf16.mxu0 0
      %315 = vmatpush1.bf16.msra.mxu0 %v280
      %316 = vmatprep.subr.bf16.mxu0 0
      %317 = vmatpush1.bf16.msra.mxu0 %v281
      %318 = vmatprep.subr.bf16.mxu0 0
      %319 = vmatpush1.bf16.msra.mxu0 %v282
      %320 = vmatprep.subr.bf16.mxu0 0
      %321 = vmatpush1.bf16.msra.mxu0 %v283
      %322 = vmatprep.subr.bf16.mxu0 0
      %323 = vmatpush1.bf16.msra.mxu0 %v284
      %324 = vmatprep.subr.bf16.mxu0 0
      %325 = vmatpush1.bf16.msra.mxu0 %v285
      %326 = vmatprep.subr.bf16.mxu0 0
      %327 = vmatpush1.bf16.msra.mxu0 0
      %328 = vmatprep.subr.bf16.mxu0 0
      %329 = vmatpush1.bf16.msra.mxu0 0
      %330 = vmatprep.subr.bf16.mxu0 0
      %331 = vmatpush1.bf16.msra.mxu0 0
      %332 = vmatprep.subr.bf16.mxu0 0
      %333 = vmatpush1.bf16.msra.mxu0 0
      %334 = vmatprep.subr.bf16.mxu0 0
      %335 = vmatpush1.bf16.msra.mxu0 0
      %336 = vmatprep.subr.bf16.mxu0 0
      %337 = vmatpush1.bf16.msra.mxu0 0
      %338 = vmatprep.subr.bf16.mxu0 0
      %339 = vmatpush1.bf16.msra.mxu0 0
      %340 = vmatprep.mubr.bf16.mxu0 %v297
      %341 = vmatmul.mubr.bf16.gmra.mrb[0].mxu0 %v229
      %v342 = vpop.f32.mrb[0].mxu0
      %v343 = vadd.f32 %v203, %v342
      %v344 = vpop.f32.mrb[0].mxu0
      %v345 = vpop.f32.mrb[0].mxu0
      %v346 = vadd.f32 %v203, %v345
      %v347 = vpop.f32.mrb[0].mxu0
      %348 = vmatprep.mubr.bf16.mxu0 %v300
      %349 = vmatmul.mubr.bf16.gmra.mrb[0].mxu0 %v231
      %v350 = vpop.f32.mrb[0].mxu0
      %v351 = vadd.f32 %v203, %v350
      %v352 = vpop.f32.mrb[0].mxu0
      %v353 = vpop.f32.mrb[0].mxu0
      %v354 = vadd.f32 %v203, %v353
      %v355 = vpop.f32.mrb[0].mxu0
      %356 = vmatprep.mubr.bf16.mxu0 %v303
      %357 = vmatmul.mubr.bf16.gmra.mrb[0].mxu0 %v233
      %v358 = vpop.f32.mrb[0].mxu0
      %v359 = vadd.f32 %v203, %v358
      %v360 = vpop.f32.mrb[0].mxu0
      %v361 = vpop.f32.mrb[0].mxu0
      %v362 = vadd.f32 %v203, %v361
      %v363 = vpop.f32.mrb[0].mxu0
      %364 = vmatprep.mubr.bf16.mxu0 %v306
      %365 = vmatmul.mubr.bf16.gmra.mrb[0].mxu0 %v235
      %v366 = vpop.f32.mrb[0].mxu0
      %v367 = vadd.f32 %v203, %v366
      %v368 = vpop.f32.mrb[0].mxu0
      %v369 = vpop.f32.mrb[0].mxu0
      %v370 = vadd.f32 %v203, %v369
      %v371 = vpop.f32.mrb[0].mxu0
      %372 = vdwg.mxu0
      %v373 = vmax.f32 %v343, 0.0
      %v374 = vmax.f32 %v346, 0.0
      %v375 = vmax.f32 %v351, 0.0
      %v376 = vmax.f32 %v354, 0.0
      %v377 = vmax.f32 %v359, 0.0
      %v378 = vmax.f32 %v362, 0.0
      %v379 = vmax.f32 %v367, 0.0
      %v380 = vmax.f32 %v370, 0.0
      %v381 = vpack.c.bf16 %v374, %v373
      %v382 = vpack.c.bf16 %v376, %v375
      %v383 = vpack.c.bf16 %v378, %v377
      %v384 = vpack.c.bf16 %v380, %v379
      %v389 = vunpack.c.l.b16 %v381
      %v390 = vunpack.c.h.b16 %v381
      %v391 = vunpack.c.l.b16 %v382
      %v392 = vunpack.c.h.b16 %v382
      %v393 = vunpack.c.l.b16 %v383
      %v394 = vunpack.c.h.b16 %v383
      %v395 = vunpack.c.l.b16 %v384
      %v396 = vunpack.c.h.b16 %v384
      %v397 = vpack.c.b16 %v389, %v389
      %v398 = vpack.c.b16 %v390, %v390
      %v399 = vpack.c.b16 %v391, %v391
      %v400 = vpack.c.b16 %v392, %v392
      %v401 = vpack.c.b16 %v393, %v393
      %v402 = vpack.c.b16 %v394, %v394
      %v403 = vpack.c.b16 %v395, %v395
      %v404 = vpack.c.b16 %v396, %v396
      %vm413 = vcmask 257024
      %414 = vst.msk [vmem:[%s170] sm:$0xf] %vm413, %v397
      %415 = vst.msk [vmem:[%s170 + $0x4] sm:$0xf] %vm413, %v398
      %416 = vst.msk [vmem:[%s170 + $0x8] sm:$0xf] %vm413, %v399
      %417 = vst.msk [vmem:[%s170 + $0xc] sm:$0xf] %vm413, %v400
      %418 = vst.msk [vmem:[%s170 + $0x10] sm:$0xf] %vm413, %v401
      %419 = vst.msk [vmem:[%s170 + $0x14] sm:$0xf] %vm413, %v402
      %420 = vst.msk [vmem:[%s170 + $0x18] sm:$0xf] %vm413, %v403
      %421 = vst.msk [vmem:[%s170 + $0x1c] sm:$0xf] %vm413, %v404
      %p422 = scmp.lt.s32.totalorder %s14, 1
      %s423 = scalar_select %p422, %s14, 1
      %s424 = smul.addr %s423, 8
      %s425 = smul.addr %s424, 4
      %s426 = scalar_lea.vmem %s3, %s425
      // Predicated region
      $region33: #{forward.11} parent=31 // pred_check
        %p427 = pneg %p100
      $region34: #{forward.11} parent=31 // pred_check_branch
        %429 = sbr.rel (%p427) target = $region36
      $region35: #{forward.11} parent=31 // pred_region
        _
      $region36: #{forward.11} parent=31 // pred_fallthru
        _
    $region32: #{forward.11} parent=5 // pred_fallthru
      _
    %p430 = scmp.le.s32.totalorder 2, %s9
    // Predicated region
    $region37: #{forward.11} parent=5 // pred_check
      %p431 = pneg %p430
    $region38: #{forward.11} parent=5 // pred_check_branch
      %433 = sbr.rel (%p431) target = $region40
    $region39: #{forward.11} parent=5 // pred_region
      %s434 = ssub.s32 %s9, 2
      // Predicated region
      $region41: #{forward.11} parent=39 // pred_check
        %p435 = pneg %p106
      $region42: #{forward.11} parent=39 // pred_check_branch
        %437 = sbr.rel (%p435) target = $region44
      $region43: #{forward.11} parent=39 // pred_region
        %p438 = scmp.lt.s32.totalorder %s15, 1
        %s439 = scalar_select %p438, %s15, 1
        %s440 = smul.addr %s439, 8
        %s441 = smul.addr %s440, 4
        %s442 = scalar_lea.vmem %s3, %s441
      $region44: #{forward.11} parent=39 // pred_fallthru
        _
    $region40: #{forward.11} parent=5 // pred_fallthru
      _
  $region6: #{forward.11} parent=0 // loop_footer
    %s13 = sadd.s32 1, %s9
  $region7: #{forward.11} parent=0 // loop_footer_branch
    %8 = sbr.rel target = $region3
  $region8: #{forward.11} parent=0 // loop_exit
    _

// kernel: forward.12
$region0: #{forward.12}
  #allocation0 [shape = 'u32[]', space=smem, size = 0x4, offset = 0x4, fixed_abs, tag = 'smem constant byte address 0x4 - core index']
  #allocation1 [shape = 'u32[144,128]{1,0:T(1,128)}', space=vmem, size = 0x12000, scoped, tag = 'internal scratch']
  %s0 = inlined_call_operand.vmem [shape: bf16[2,64,288], index: 0, kind: input, shape index: {}]
  %s1 = inlined_call_operand.vmem [shape: bf16[288,32], index: 1, kind: input, shape index: {}]
  %s2 = inlined_call_operand.vmem [shape: f32[1,32], index: 2, kind: input, shape index: {}]
  %s3 = inlined_call_operand.vmem [shape: bf16[2,64,16], index: 3, kind: input, shape index: {}]
  %s4 = inlined_call_operand.vmem [shape: bf16[16,32], index: 4, kind: input, shape index: {}]
  %s5 = inlined_call_operand.vmem [shape: f32[1,32], index: 5, kind: input, shape index: {}]
  %s6 = inlined_call_operand.vmem [shape: bf16[2,64,32], index: 6, kind: output, shape index: {}]
  %s7 = sld [smem:[#allocation0]]
  $region57: #{forward.12} parent=0
    _
  %s9 = ssub.s32 1, %s7
  %s10 = scalar_select 0, %s9, %s7
  loop: start=0, step=1, limit=4
  $region2: #{forward.12} parent=0 // loop_pre_header
    _
  $region3: #{forward.12} parent=0 // loop_header
    %s12 = sphi 0, %s16
    %p13 = scmp.ge.s32.totalorder %s12, 4
    %s22 = sphi 0, %s24
    %s25 = sphi 0, %s22
    %s26 = sphi 0, %s25
    %s42 = sphi 0, %s26
    %s46 = sphi 0, %s46
    %s48 = sphi 0, %s46
    %s49 = sphi 0, %s48
    %s63 = sphi 0, %s49
    %s67 = sphi 0, %s67
    %s69 = sphi 0, %s67
    %s70 = sphi 0, %s69
    %s84 = sphi 0, %s70
    %s90 = sphi 0, %s92
    %s93 = sphi 0, %s90
    %s94 = sphi 0, %s93
    %s110 = sphi 0, %s94
    %s114 = sphi 0, %s114
    %s116 = sphi 0, %s114
    %s117 = sphi 0, %s116
    %s131 = sphi 0, %s117
    %s135 = sphi 0, %s135
    %s137 = sphi 0, %s135
    %s138 = sphi 0, %s137
    %s152 = sphi 0, %s138
    %s158 = sphi 0, %s160
    %s161 = sphi 0, %s158
    %s162 = sphi 0, %s161
    %s178 = sphi 0, %s162
  $region4: #{forward.12} parent=0 // loop_header_branch
    %15 = sbr.rel (%p13) target = $region8
  $region5: #{forward.12} parent=0 // loop_body
    %s17 = ssub.s32 %s12, 1
    %s18 = ssub.s32 %s12, 2
    %s19 = sadd.s32 %s12, 1
    %s20 = ssub.s32 %s12, %s19
    %p21 = scmp.eq.s32.totalorder %s20, 0
    %s23 = sadd.s32 %s22, 1
    %s24 = scalar_select %p21, %s22, %s23
    %p27 = pneg %p21
    %p28 = scmp.eq.s32.totalorder %s12, 1
    %p29 = por %p27, %p28
    %p30 = scmp.ne.s32.totalorder %s22, %s25
    %p31 = scmp.eq.s32.totalorder %s12, 0
    %p32 = por %p30, %p31
    %p33 = scmp.ne.s32.totalorder %s22, %s25
    %p34 = scmp.eq.s32.totalorder %s17, 1
    %p35 = por %p33, %p34
    %p36 = scmp.ne.s32.totalorder %s25, %s26
    %p37 = scmp.eq.s32.totalorder %s17, 0
    %p38 = por %p36, %p37
    %p39 = scmp.ne.s32.totalorder %s25, %s26
    %p40 = scmp.eq.s32.totalorder %s18, 1
    %p41 = por %p39, %p40
    %p43 = scmp.ne.s32.totalorder %s26, %s42
    %p44 = scmp.eq.s32.totalorder %s18, 0
    %p45 = por %p43, %p44
    %s47 = sadd.s32 %s46, 1
    %p50 = scmp.eq.s32.totalorder %s12, 1
    %p51 = scmp.ne.s32.totalorder %s46, %s48
    %p52 = scmp.eq.s32.totalorder %s12, 0
    %p53 = por %p51, %p52
    %p54 = scmp.ne.s32.totalorder %s46, %s48
    %p55 = scmp.eq.s32.totalorder %s17, 1
    %p56 = por %p54, %p55
    %p57 = scmp.ne.s32.totalorder %s48, %s49
    %p58 = scmp.eq.s32.totalorder %s17, 0
    %p59 = por %p57, %p58
    %p60 = scmp.ne.s32.totalorder %s48, %s49
    %p61 = scmp.eq.s32.totalorder %s18, 1
    %p62 = por %p60, %p61
    %p64 = scmp.ne.s32.totalorder %s49, %s63
    %p65 = scmp.eq.s32.totalorder %s18, 0
    %p66 = por %p64, %p65
    %s68 = sadd.s32 %s67, 1
    %p71 = scmp.eq.s32.totalorder %s12, 1
    %p72 = scmp.ne.s32.totalorder %s67, %s69
    %p73 = scmp.eq.s32.totalorder %s12, 0
    %p74 = por %p72, %p73
    %p75 = scmp.ne.s32.totalorder %s67, %s69
    %p76 = scmp.eq.s32.totalorder %s17, 1
    %p77 = por %p75, %p76
    %p78 = scmp.ne.s32.totalorder %s69, %s70
    %p79 = scmp.eq.s32.totalorder %s17, 0
    %p80 = por %p78, %p79
    %p81 = scmp.ne.s32.totalorder %s69, %s70
    %p82 = scmp.eq.s32.totalorder %s18, 1
    %p83 = por %p81, %p82
    %p85 = scmp.ne.s32.totalorder %s70, %s84
    %p86 = scmp.eq.s32.totalorder %s18, 0
    %p87 = por %p85, %p86
    %s88 = ssub.s32 %s12, %s19
    %p89 = scmp.eq.s32.totalorder %s88, 0
    %s91 = sadd.s32 %s90, 1
    %s92 = scalar_select %p89, %s90, %s91
    %p95 = pneg %p89
    %p96 = scmp.eq.s32.totalorder %s12, 1
    %p97 = por %p95, %p96
    %p98 = scmp.ne.s32.totalorder %s90, %s93
    %p99 = scmp.eq.s32.totalorder %s12, 0
    %p100 = por %p98, %p99
    %p101 = scmp.ne.s32.totalorder %s90, %s93
    %p102 = scmp.eq.s32.totalorder %s17, 1
    %p103 = por %p101, %p102
    %p104 = scmp.ne.s32.totalorder %s93, %s94
    %p105 = scmp.eq.s32.totalorder %s17, 0
    %p106 = por %p104, %p105
    %p107 = scmp.ne.s32.totalorder %s93, %s94
    %p108 = scmp.eq.s32.totalorder %s18, 1
    %p109 = por %p107, %p108
    %p111 = scmp.ne.s32.totalorder %s94, %s110
    %p112 = scmp.eq.s32.totalorder %s18, 0
    %p113 = por %p111, %p112
    %s115 = sadd.s32 %s114, 1
    %p118 = scmp.eq.s32.totalorder %s12, 1
    %p119 = scmp.ne.s32.totalorder %s114, %s116
    %p120 = scmp.eq.s32.totalorder %s12, 0
    %p121 = por %p119, %p120
    %p122 = scmp.ne.s32.totalorder %s114, %s116
    %p123 = scmp.eq.s32.totalorder %s17, 1
    %p124 = por %p122, %p123
    %p125 = scmp.ne.s32.totalorder %s116, %s117
    %p126 = scmp.eq.s32.totalorder %s17, 0
    %p127 = por %p125, %p126
    %p128 = scmp.ne.s32.totalorder %s116, %s117
    %p129 = scmp.eq.s32.totalorder %s18, 1
    %p130 = por %p128, %p129
    %p132 = scmp.ne.s32.totalorder %s117, %s131
    %p133 = scmp.eq.s32.totalorder %s18, 0
    %p134 = por %p132, %p133
    %s136 = sadd.s32 %s135, 1
    %p139 = scmp.eq.s32.totalorder %s12, 1
    %p140 = scmp.ne.s32.totalorder %s135, %s137
    %p141 = scmp.eq.s32.totalorder %s12, 0
    %p142 = por %p140, %p141
    %p143 = scmp.ne.s32.totalorder %s135, %s137
    %p144 = scmp.eq.s32.totalorder %s17, 1
    %p145 = por %p143, %p144
    %p146 = scmp.ne.s32.totalorder %s137, %s138
    %p147 = scmp.eq.s32.totalorder %s17, 0
    %p148 = por %p146, %p147
    %p149 = scmp.ne.s32.totalorder %s137, %s138
    %p150 = scmp.eq.s32.totalorder %s18, 1
    %p151 = por %p149, %p150
    %p153 = scmp.ne.s32.totalorder %s138, %s152
    %p154 = scmp.eq.s32.totalorder %s18, 0
    %p155 = por %p153, %p154
    %s156 = ssub.s32 %s12, %s19
    %p157 = scmp.eq.s32.totalorder %s156, 0
    %s159 = sadd.s32 %s158, 1
    %s160 = scalar_select %p157, %s158, %s159
    %p163 = pneg %p157
    %p164 = scmp.eq.s32.totalorder %s12, 1
    %p165 = por %p163, %p164
    %p166 = scmp.ne.s32.totalorder %s158, %s161
    %p167 = scmp.eq.s32.totalorder %s12, 0
    %p168 = por %p166, %p167
    %p169 = scmp.ne.s32.totalorder %s158, %s161
    %p170 = scmp.eq.s32.totalorder %s17, 1
    %p171 = por %p169, %p170
    %p172 = scmp.ne.s32.totalorder %s161, %s162
    %p173 = scmp.eq.s32.totalorder %s17, 0
    %p174 = por %p172, %p173
    %p175 = scmp.ne.s32.totalorder %s161, %s162
    %p176 = scmp.eq.s32.totalorder %s18, 1
    %p177 = por %p175, %p176
    %p179 = scmp.ne.s32.totalorder %s162, %s178
    %p180 = scmp.eq.s32.totalorder %s18, 0
    %p181 = por %p179, %p180
    %p182 = scmp.le.s32.totalorder 1, %s12
    %p183 = scmp.lt.s32.totalorder %s12, 3
    %p184 = pnand %p182, %p183
    %p185 = pneg %p184
    // Predicated region
    $region9: #{forward.12} parent=5 // pred_check
      _
    $region10: #{forward.12} parent=5 // pred_check_branch
      %187 = sbr.rel (%p184) target = $region12
    $region11: #{forward.12} parent=5 // pred_region
      %s188 = ssub.s32 %s12, 1
      // Predicated region
      $region13: #{forward.12} parent=11 // pred_check
        %p189 = pneg %p59
      $region14: #{forward.12} parent=11 // pred_check_branch
        %191 = sbr.rel (%p189) target = $region16
      $region15: #{forward.12} parent=11 // pred_region
        _
      $region16: #{forward.12} parent=11 // pred_fallthru
        _
      // Predicated region
      $region17: #{forward.12} parent=11 // pred_check
        %p192 = pneg %p80
      $region18: #{forward.12} parent=11 // pred_check_branch
        %194 = sbr.rel (%p192) target = $region20
      $region19: #{forward.12} parent=11 // pred_region
        _
      $region20: #{forward.12} parent=11 // pred_fallthru
        _
      // Predicated region
      $region21: #{forward.12} parent=11 // pred_check
        %p195 = pneg %p127
      $region22: #{forward.12} parent=11 // pred_check_branch
        %197 = sbr.rel (%p195) target = $region24
      $region23: #{forward.12} parent=11 // pred_region
        _
      $region24: #{forward.12} parent=11 // pred_fallthru
        _
      // Predicated region
      $region25: #{forward.12} parent=11 // pred_check
        %p198 = pneg %p148
      $region26: #{forward.12} parent=11 // pred_check_branch
        %200 = sbr.rel (%p198) target = $region28
      $region27: #{forward.12} parent=11 // pred_region
        _
      $region28: #{forward.12} parent=11 // pred_fallthru
        _
    $region12: #{forward.12} parent=5 // pred_fallthru
      _
    %p201 = scmp.lt.s32.totalorder %s12, 2
    // Predicated region
    $region29: #{forward.12} parent=5 // pred_check
      %p202 = pneg %p201
    $region30: #{forward.12} parent=5 // pred_check_branch
      %204 = sbr.rel (%p202) target = $region32
    $region31: #{forward.12} parent=5 // pred_region
      // Predicated region
      $region33: #{forward.12} parent=31 // pred_check
        %p205 = pneg %p32
      $region34: #{forward.12} parent=31 // pred_check_branch
        %207 = sbr.rel (%p205) target = $region36
      $region35: #{forward.12} parent=31 // pred_region
        %p208 = scmp.lt.s32.totalorder %s12, 1
        %s209 = scalar_select %p208, %s12, 1
        %s210 = smul.addr %s209, 24
        %s211 = smul.addr %s210, 4
        %s212 = scalar_lea.vmem %s0, %s211
      $region36: #{forward.12} parent=31 // pred_fallthru
        _
      // Predicated region
      $region37: #{forward.12} parent=31 // pred_check
        %p213 = pneg %p100
      $region38: #{forward.12} parent=31 // pred_check_branch
        %215 = sbr.rel (%p213) target = $region40
      $region39: #{forward.12} parent=31 // pred_region
        %p216 = scmp.lt.s32.totalorder %s12, 1
        %s217 = scalar_select %p216, %s12, 1
        %s218 = smul.addr %s217, 8
        %s219 = smul.addr %s218, 4
        %s220 = scalar_lea.vmem %s3, %s219
      $region40: #{forward.12} parent=31 // pred_fallthru
        _
    $region32: #{forward.12} parent=5 // pred_fallthru
      _
    %p221 = scmp.le.s32.totalorder 1, %s12
    %p222 = scmp.lt.s32.totalorder %s12, 3
    %p223 = pnand %p221, %p222
    %p224 = pneg %p223
    // Predicated region
    $region41: #{forward.12} parent=5 // pred_check
      _
    $region42: #{forward.12} parent=5 // pred_check_branch
      %226 = sbr.rel (%p223) target = $region44
    $region43: #{forward.12} parent=5 // pred_region
      %s227 = ssub.s32 %s12, 1
      %p228 = scmp.lt.s32.totalorder %s17, 1
      %s229 = scalar_select %p228, %s17, 1
      %s230 = smul.addr %s229, 24
      %s231 = smul.addr %s230, 4
      %s232 = scalar_lea.vmem %s0, %s231
      %p233 = pneg %p38
      %p234 = pneg %p35
      %p235 = pneg %p59
      %p236 = pneg %p56
      %p237 = pneg %p80
      %p238 = pneg %p77
      %p239 = scmp.lt.s32.totalorder %s17, 1
      %s240 = scalar_select %p239, %s17, 1
      %s241 = smul.addr %s240, 8
      %s242 = smul.addr %s241, 4
      %s243 = scalar_lea.vmem %s3, %s242
      %p244 = pneg %p106
      %p245 = pneg %p103
      %p246 = pneg %p127
      %p247 = pneg %p124
      %p248 = pneg %p148
      %p249 = pneg %p145
      %p250 = pneg %p174
      %p251 = pneg %p171
      %p252 = scmp.lt.s32.totalorder %s17, 1
      %s253 = scalar_select %p252, %s17, 1
      %s254 = smul.addr %s253, 8
      %s255 = smul.addr %s254, 4
      %s256 = scalar_lea.vmem %s6, %s255
      %p257 = scmp.lt.s32.totalorder %s17, 1
      %s258 = scalar_select %p257, %s17, 1
      %s259 = smul.addr %s258, 24
      %s260 = smul.addr %s259, 4
      %s261 = scalar_lea.vmem %s0, %s260
      %p262 = scmp.lt.s32.totalorder %s17, 1
      %s263 = scalar_select %p262, %s17, 1
      %s264 = smul.addr %s263, 8
      %s265 = smul.addr %s264, 4
      %s266 = scalar_lea.vmem %s3, %s265
      %p267 = scmp.lt.s32.totalorder %s17, 1
      %s268 = scalar_select %p267, %s17, 1
      %s269 = smul.addr %s268, 8
      %s270 = smul.addr %s269, 4
      %s271 = scalar_lea.vmem %s6, %s270
      %v273 = vld [vmem:[%s261] sm:$0xff]
      %v274 = vld [vmem:[%s261 + $0x8] sm:$0xf]
      %v275 = vld [vmem:[%s261 + $0xc] sm:$0xff]
      %v276 = vld [vmem:[%s261 + $0x14] sm:$0xf]
      %v277 = vld [vmem:[%s261 + $0x18] sm:$0xff]
      %v278 = vld [vmem:[%s261 + $0x20] sm:$0xf]
      %v279 = vld [vmem:[%s261 + $0x24] sm:$0xff]
      %v280 = vld [vmem:[%s261 + $0x2c] sm:$0xf]
      %v281 = vld [vmem:[%s261 + $0x30] sm:$0xff]
      %v282 = vld [vmem:[%s261 + $0x38] sm:$0xf]
      %v283 = vld [vmem:[%s261 + $0x3c] sm:$0xff]
      %v284 = vld [vmem:[%s261 + $0x44] sm:$0xf]
      %v285 = vld [vmem:[%s261 + $0x48] sm:$0xff]
      %v286 = vld [vmem:[%s261 + $0x50] sm:$0xf]
      %v287 = vld [vmem:[%s261 + $0x54] sm:$0xff]
      %v288 = vld [vmem:[%s261 + $0x5c] sm:$0xf]
      %v289 = vld [vmem:[%s1] sm:$0xf]
      %v290 = vld [vmem:[%s1 + $0x4] sm:$0xf]
      %v291 = vld [vmem:[%s1 + $0x8] sm:$0xf]
      %v292 = vld [vmem:[%s1 + $0xc] sm:$0xf]
      %v293 = vld [vmem:[%s1 + $0x10] sm:$0xf]
      %v294 = vld [vmem:[%s1 + $0x14] sm:$0xf]
      %v295 = vld [vmem:[%s1 + $0x18] sm:$0xf]
      %v296 = vld [vmem:[%s1 + $0x1c] sm:$0xf]
      %v297 = vld [vmem:[%s1 + $0x20] sm:$0xf]
      %v298 = vld [vmem:[%s1 + $0x24] sm:$0xf]
      %v299 = vld [vmem:[%s1 + $0x28] sm:$0xf]
      %v300 = vld [vmem:[%s1 + $0x2c] sm:$0xf]
      %v301 = vld [vmem:[%s1 + $0x30] sm:$0xf]
      %v302 = vld [vmem:[%s1 + $0x34] sm:$0xf]
      %v303 = vld [vmem:[%s1 + $0x38] sm:$0xf]
      %v304 = vld [vmem:[%s1 + $0x3c] sm:$0xf]
      %v305 = vld [vmem:[%s1 + $0x40] sm:$0xf]
      %v306 = vld [vmem:[%s1 + $0x44] sm:$0xf]
      %v307 = vld [vmem:[%s1 + $0x48] sm:$0xf]
      %v308 = vld [vmem:[%s1 + $0x4c] sm:$0xf]
      %v309 = vld [vmem:[%s1 + $0x50] sm:$0xf]
      %v310 = vld [vmem:[%s1 + $0x54] sm:$0xf]
      %v311 = vld [vmem:[%s1 + $0x58] sm:$0xf]
      %v312 = vld [vmem:[%s1 + $0x5c] sm:$0xf]
      %v313 = vld [vmem:[%s1 + $0x60] sm:$0xf]
      %v314 = vld [vmem:[%s1 + $0x64] sm:$0xf]
      %v315 = vld [vmem:[%s1 + $0x68] sm:$0xf]
      %v316 = vld [vmem:[%s1 + $0x6c] sm:$0xf]
      %v317 = vld [vmem:[%s1 + $0x70] sm:$0xf]
      %v318 = vld [vmem:[%s1 + $0x74] sm:$0xf]
      %v319 = vld [vmem:[%s1 + $0x78] sm:$0xf]
      %v320 = vld [vmem:[%s1 + $0x7c] sm:$0xf]
      %v321 = vld [vmem:[%s1 + $0x80] sm:$0xf]
      %v322 = vld [vmem:[%s1 + $0x84] sm:$0xf]
      %v323 = vld [vmem:[%s1 + $0x88] sm:$0xf]
      %v324 = vld [vmem:[%s1 + $0x8c] sm:$0xf]
      %v325 = vld [vmem:[%s266] sm:$0xf]
      %v326 = vld [vmem:[%s266 + $0x4] sm:$0xf]
      %v327 = vld [vmem:[%s266 + $0x8] sm:$0xf]
      %v328 = vld [vmem:[%s266 + $0xc] sm:$0xf]
      %v329 = vld [vmem:[%s266 + $0x10] sm:$0xf]
      %v330 = vld [vmem:[%s266 + $0x14] sm:$0xf]
      %v331 = vld [vmem:[%s266 + $0x18] sm:$0xf]
      %v332 = vld [vmem:[%s266 + $0x1c] sm:$0xf]
      %v333 = vld [vmem:[%s4] sm:$0xf]
      %v334 = vld [vmem:[%s4 + $0x4] sm:$0xf]
      %v343 = vunpack.c.l.b16 %v325
      %v344 = vunpack.c.l.b16 %v326
      %v345 = vunpack.c.l.b16 %v327
      %v346 = vunpack.c.l.b16 %v328
      %v347 = vunpack.c.l.b16 %v329
      %v348 = vunpack.c.l.b16 %v330
      %v349 = vunpack.c.l.b16 %v331
      %v350 = vunpack.c.l.b16 %v332
      %v351 = vpack.c.b16 %v344, %v343
      %v352 = vpack.c.b16 %v346, %v345
      %v353 = vpack.c.b16 %v348, %v347
      %v354 = vpack.c.b16 %v350, %v349
      %v357 = vunpack.c.l.b16 %v333
      %v358 = vunpack.c.l.b16 %v334
      %v359 = vpack.c.b16 %v358, %v357
      %vm361 = vcmask 130048
      %v363 = vsel %vm361, %v351, 0
      %v366 = vsel %vm361, %v352, 0
      %v369 = vsel %vm361, %v353, 0
      %v372 = vsel %vm361, %v354, 0
      %374 = vmatprep.subr.bf16.mxu0 0
      %375 = vmatpush1.bf16.msra.mxu0 %v359
      %376 = vmatprep.subr.bf16.mxu0 0
      %377 = vmatpush1.bf16.msra.mxu0 0
      %378 = vmatprep.subr.bf16.mxu0 0
      %379 = vmatpush1.bf16.msra.mxu0 0
      %380 = vmatprep.subr.bf16.mxu0 0
      %381 = vmatpush1.bf16.msra.mxu0 0
      %382 = vmatprep.subr.bf16.mxu0 0
      %383 = vmatpush1.bf16.msra.mxu0 0
      %384 = vmatprep.subr.bf16.mxu0 0
      %385 = vmatpush1.bf16.msra.mxu0 0
      %386 = vmatprep.subr.bf16.mxu0 0
      %387 = vmatpush1.bf16.msra.mxu0 0
      %388 = vmatprep.subr.bf16.mxu0 0
      %389 = vmatpush1.bf16.msra.mxu0 0
      %390 = vmatprep.subr.bf16.mxu0 0
      %391 = vmatpush1.bf16.msra.mxu0 0
      %392 = vmatprep.subr.bf16.mxu0 0
      %393 = vmatpush1.bf16.msra.mxu0 0
      %394 = vmatprep.subr.bf16.mxu0 0
      %395 = vmatpush1.bf16.msra.mxu0 0
      %396 = vmatprep.subr.bf16.mxu0 0
      %397 = vmatpush1.bf16.msra.mxu0 0
      %398 = vmatprep.subr.bf16.mxu0 0
      %399 = vmatpush1.bf16.msra.mxu0 0
      %400 = vmatprep.subr.bf16.mxu0 0
      %401 = vmatpush1.bf16.msra.mxu0 0
      %402 = vmatprep.subr.bf16.mxu0 0
      %403 = vmatpush1.bf16.msra.mxu0 0
      %404 = vmatprep.subr.bf16.mxu0 0
      %405 = vmatpush1.bf16.msra.mxu0 0
      %406 = vmatprep.mubr.bf16.mxu0 0
      %407 = vmatmul.mubr.bf16.gmra.mrb[0].mxu0 %v363
      %v408 = vpop.f32.mrb[0].mxu0
      %v409 = vadd.f32 0.0, %v408
      %v410 = vpop.f32.mrb[0].mxu0
      %v411 = vpop.f32.mrb[0].mxu0
      %v412 = vadd.f32 0.0, %v411
      %v413 = vpop.f32.mrb[0].mxu0
      %414 = vmatprep.mubr.bf16.mxu0 0
      %415 = vmatmul.mubr.bf16.gmra.mrb[0].mxu0 %v366
      %v416 = vpop.f32.mrb[0].mxu0
      %v417 = vadd.f32 0.0, %v416
      %v418 = vpop.f32.mrb[0].mxu0
      %v419 = vpop.f32.mrb[0].mxu0
      %v420 = vadd.f32 0.0, %v419
      %v421 = vpop.f32.mrb[0].mxu0
      %422 = vmatprep.mubr.bf16.mxu0 0
      %423 = vmatmul.mubr.bf16.gmra.mrb[0].mxu0 %v369
      %v424 = vpop.f32.mrb[0].mxu0
      %v425 = vadd.f32 0.0, %v424
      %v426 = vpop.f32.mrb[0].mxu0
      %v427 = vpop.f32.mrb[0].mxu0
      %v428 = vadd.f32 0.0, %v427
      %v429 = vpop.f32.mrb[0].mxu0
      %430 = vmatprep.mubr.bf16.mxu0 0
      %431 = vmatmul.mubr.bf16.gmra.mrb[0].mxu0 %v372
      %v432 = vpop.f32.mrb[0].mxu0
      %v433 = vadd.f32 0.0, %v432
      %v434 = vpop.f32.mrb[0].mxu0
      %v435 = vpop.f32.mrb[0].mxu0
      %v436 = vadd.f32 0.0, %v435
      %v437 = vpop.f32.mrb[0].mxu0
      %438 = vdwg.mxu0
      %v439 = vld [vmem:[%s2] sm:$0x1]
      %v441 = vlaneseq
      %v442 = vshrl.u32 %v441, 7
      %v443 = vsub.s32 0, %v442
      %v444 = vrot.slane %v439, %v443
      %v462 = vunpack.c.l.b16 %v273
      %v463 = vunpack.c.h.b16 %v273
      %v464 = vunpack.c.l.b16 %v274
      %v465 = vunpack.c.l.b16 %v275
      %v466 = vunpack.c.h.b16 %v275
      %v467 = vunpack.c.l.b16 %v276
      %v468 = vunpack.c.l.b16 %v277
      %v469 = vunpack.c.h.b16 %v277
      %v470 = vunpack.c.l.b16 %v278
      %v471 = vunpack.c.l.b16 %v279
      %v472 = vunpack.c.h.b16 %v279
      %v473 = vunpack.c.l.b16 %v280
      %v474 = vunpack.c.l.b16 %v281
      %v475 = vunpack.c.h.b16 %v281
      %v476 = vunpack.c.l.b16 %v282
      %v477 = vunpack.c.l.b16 %v283
      %v478 = vunpack.c.h.b16 %v283
      %v479 = vunpack.c.l.b16 %v284
      %v480 = vunpack.c.l.b16 %v285
      %v481 = vunpack.c.h.b16 %v285
      %v482 = vunpack.c.l.b16 %v286
      %v483 = vunpack.c.l.b16 %v287
      %v484 = vunpack.c.h.b16 %v287
      %v485 = vunpack.c.l.b16 %v288
      %v486 = vpack.c.b16 %v465, %v462
      %v487 = vpack.c.b16 %v466, %v463
      %v488 = vpack.c.b16 %v467, %v464
      %v489 = vpack.c.b16 %v471, %v468
      %v490 = vpack.c.b16 %v472, %v469
      %v491 = vpack.c.b16 %v473, %v470
      %v492 = vpack.c.b16 %v477, %v474
      %v493 = vpack.c.b16 %v478, %v475
      %v494 = vpack.c.b16 %v479, %v476
      %v495 = vpack.c.b16 %v483, %v480
      %v496 = vpack.c.b16 %v484, %v481
      %v497 = vpack.c.b16 %v485, %v482
      %v542 = vunpack.c.l.b16 %v289
      %v543 = vunpack.c.l.b16 %v290
      %v544 = vunpack.c.l.b16 %v291
      %v545 = vunpack.c.l.b16 %v292
      %v546 = vunpack.c.l.b16 %v293
      %v547 = vunpack.c.l.b16 %v294
      %v548 = vunpack.c.l.b16 %v295
      %v549 = vunpack.c.l.b16 %v296
      %v550 = vunpack.c.l.b16 %v297
      %v551 = vunpack.c.l.b16 %v298
      %v552 = vunpack.c.l.b16 %v299
      %v553 = vunpack.c.l.b16 %v300
      %v554 = vunpack.c.l.b16 %v301
      %v555 = vunpack.c.l.b16 %v302
      %v556 = vunpack.c.l.b16 %v303
      %v557 = vunpack.c.l.b16 %v304
      %v558 = vunpack.c.l.b16 %v305
      %v559 = vunpack.c.l.b16 %v306
      %v560 = vunpack.c.l.b16 %v307
      %v561 = vunpack.c.l.b16 %v308
      %v562 = vunpack.c.l.b16 %v309
      %v563 = vunpack.c.l.b16 %v310
      %v564 = vunpack.c.l.b16 %v311
      %v565 = vunpack.c.l.b16 %v312
      %v566 = vunpack.c.l.b16 %v313
      %v567 = vunpack.c.l.b16 %v314
      %v568 = vunpack.c.l.b16 %v315
      %v569 = vunpack.c.l.b16 %v316
      %v570 = vunpack.c.l.b16 %v317
      %v571 = vunpack.c.l.b16 %v318
      %v572 = vunpack.c.l.b16 %v319
      %v573 = vunpack.c.l.b16 %v320
      %v574 = vunpack.c.l.b16 %v321
      %v575 = vunpack.c.l.b16 %v322
      %v576 = vunpack.c.l.b16 %v323
      %v577 = vunpack.c.l.b16 %v324
      %v578 = vpack.c.b16 %v543, %v542
      %v579 = vpack.c.b16 %v545, %v544
      %v580 = vpack.c.b16 %v547, %v546
      %v581 = vpack.c.b16 %v549, %v548
      %v582 = vpack.c.b16 %v551, %v550
      %v583 = vpack.c.b16 %v553, %v552
      %v584 = vpack.c.b16 %v555, %v554
      %v585 = vpack.c.b16 %v557, %v556
      %v586 = vpack.c.b16 %v559, %v558
      %v587 = vpack.c.b16 %v561, %v560
      %v588 = vpack.c.b16 %v563, %v562
      %v589 = vpack.c.b16 %v565, %v564
      %v590 = vpack.c.b16 %v567, %v566
      %v591 = vpack.c.b16 %v569, %v568
      %v592 = vpack.c.b16 %v571, %v570
      %v593 = vpack.c.b16 %v573, %v572
      %v594 = vpack.c.b16 %v575, %v574
      %v595 = vpack.c.b16 %v577, %v576
      %vm614 = vcmask 261120
      %v616 = vsel %vm614, %v488, 0
      %v619 = vsel %vm614, %v491, 0
      %v622 = vsel %vm614, %v494, 0
      %v625 = vsel %vm614, %v497, 0
      %627 = vmatprep.subr.bf16.mxu0 0
      %628 = vmatpush1.bf16.msra.mxu0 %v578
      %629 = vmatprep.subr.bf16.mxu0 0
      %630 = vmatpush1.bf16.msra.mxu0 %v579
      %631 = vmatprep.subr.bf16.mxu0 0
      %632 = vmatpush1.bf16.msra.mxu0 %v580
      %633 = vmatprep.subr.bf16.mxu0 0
      %634 = vmatpush1.bf16.msra.mxu0 %v581
      %635 = vmatprep.subr.bf16.mxu0 0
      %636 = vmatpush1.bf16.msra.mxu0 %v582
      %637 = vmatprep.subr.bf16.mxu0 0
      %638 = vmatpush1.bf16.msra.mxu0 %v583
      %639 = vmatprep.subr.bf16.mxu0 0
      %640 = vmatpush1.bf16.msra.mxu0 %v584
      %641 = vmatprep.subr.bf16.mxu0 0
      %642 = vmatpush1.bf16.msra.mxu0 %v585
      %643 = vmatprep.subr.bf16.mxu0 0
      %644 = vmatpush1.bf16.msra.mxu0 %v586
      %645 = vmatprep.subr.bf16.mxu0 0
      %646 = vmatpush1.bf16.msra.mxu0 %v587
      %647 = vmatprep.subr.bf16.mxu0 0
      %648 = vmatpush1.bf16.msra.mxu0 %v588
      %649 = vmatprep.subr.bf16.mxu0 0
      %650 = vmatpush1.bf16.msra.mxu0 %v589
      %651 = vmatprep.subr.bf16.mxu0 0
      %652 = vmatpush1.bf16.msra.mxu0 %v590
      %653 = vmatprep.subr.bf16.mxu0 0
      %654 = vmatpush1.bf16.msra.mxu0 %v591
      %655 = vmatprep.subr.bf16.mxu0 0
      %656 = vmatpush1.bf16.msra.mxu0 %v592
      %657 = vmatprep.subr.bf16.mxu0 0
      %658 = vmatpush1.bf16.msra.mxu0 %v593
      %659 = vmatprep.mubr.bf16.mxu0 %v487
      %660 = vmatmul.mubr.bf16.gmra.mrb[0].mxu0 %v486
      %v661 = vpop.f32.mrb[0].mxu0
      %v662 = vadd.f32 %v444, %v661
      %v663 = vpop.f32.mrb[0].mxu0
      %v664 = vpop.f32.mrb[0].mxu0
      %v665 = vadd.f32 %v444, %v664
      %v666 = vpop.f32.mrb[0].mxu0
      %667 = vmatprep.mubr.bf16.mxu0 %v490
      %668 = vmatmul.mubr.bf16.gmra.mrb[0].mxu0 %v489
      %v669 = vpop.f32.mrb[0].mxu0
      %v670 = vadd.f32 %v444, %v669
      %v671 = vpop.f32.mrb[0].mxu0
      %v672 = vpop.f32.mrb[0].mxu0
      %v673 = vadd.f32 %v444, %v672
      %v674 = vpop.f32.mrb[0].mxu0
      %675 = vmatprep.mubr.bf16.mxu0 %v493
      %676 = vmatmul.mubr.bf16.gmra.mrb[0].mxu0 %v492
      %v677 = vpop.f32.mrb[0].mxu0
      %v678 = vadd.f32 %v444, %v677
      %v679 = vpop.f32.mrb[0].mxu0
      %v680 = vpop.f32.mrb[0].mxu0
      %v681 = vadd.f32 %v444, %v680
      %v682 = vpop.f32.mrb[0].mxu0
      %683 = vmatprep.mubr.bf16.mxu0 %v496
      %684 = vmatmul.mubr.bf16.gmra.mrb[0].mxu0 %v495
      %v685 = vpop.f32.mrb[0].mxu0
      %v686 = vadd.f32 %v444, %v685
      %v687 = vpop.f32.mrb[0].mxu0
      %v688 = vpop.f32.mrb[0].mxu0
      %v689 = vadd.f32 %v444, %v688
      %v690 = vpop.f32.mrb[0].mxu0
      %691 = vdwg.mxu0
      %692 = vmatprep.subr.bf16.mxu0 0
      %693 = vmatpush1.bf16.msra.mxu0 %v594
      %694 = vmatprep.subr.bf16.mxu0 0
      %695 = vmatpush1.bf16.msra.mxu0 %v595
      %696 = vmatprep.subr.bf16.mxu0 0
      %697 = vmatpush1.bf16.msra.mxu0 0
      %698 = vmatprep.subr.bf16.mxu0 0
      %699 = vmatpush1.bf16.msra.mxu0 0
      %700 = vmatprep.subr.bf16.mxu0 0
      %701 = vmatpush1.bf16.msra.mxu0 0
      %702 = vmatprep.subr.bf16.mxu0 0
      %703 = vmatpush1.bf16.msra.mxu0 0
      %704 = vmatprep.subr.bf16.mxu0 0
      %705 = vmatpush1.bf16.msra.mxu0 0
      %706 = vmatprep.subr.bf16.mxu0 0
      %707 = vmatpush1.bf16.msra.mxu0 0
      %708 = vmatprep.subr.bf16.mxu0 0
      %709 = vmatpush1.bf16.msra.mxu0 0
      %710 = vmatprep.subr.bf16.mxu0 0
      %711 = vmatpush1.bf16.msra.mxu0 0
      %712 = vmatprep.subr.bf16.mxu0 0
      %713 = vmatpush1.bf16.msra.mxu0 0
      %714 = vmatprep.subr.bf16.mxu0 0
      %715 = vmatpush1.bf16.msra.mxu0 0
      %716 = vmatprep.subr.bf16.mxu0 0
      %717 = vmatpush1.bf16.msra.mxu0 0
      %718 = vmatprep.subr.bf16.mxu0 0
      %719 = vmatpush1.bf16.msra.mxu0 0
      %720 = vmatprep.subr.bf16.mxu0 0
      %721 = vmatpush1.bf16.msra.mxu0 0
      %722 = vmatprep.subr.bf16.mxu0 0
      %723 = vmatpush1.bf16.msra.mxu0 0
      %724 = vmatprep.mubr.bf16.mxu0 0
      %725 = vmatmul.mubr.bf16.gmra.mrb[0].mxu0 %v616
      %v726 = vpop.f32.mrb[0].mxu0
      %v727 = vadd.f32 %v662, %v726
      %v728 = vpop.f32.mrb[0].mxu0
      %v729 = vpop.f32.mrb[0].mxu0
      %v730 = vadd.f32 %v665, %v729
      %v731 = vpop.f32.mrb[0].mxu0
      %732 = vmatprep.mubr.bf16.mxu0 0
      %733 = vmatmul.mubr.bf16.gmra.mrb[0].mxu0 %v619
      %v734 = vpop.f32.mrb[0].mxu0
      %v735 = vadd.f32 %v670, %v734
      %v736 = vpop.f32.mrb[0].mxu0
      %v737 = vpop.f32.mrb[0].mxu0
      %v738 = vadd.f32 %v673, %v737
      %v739 = vpop.f32.mrb[0].mxu0
      %740 = vmatprep.mubr.bf16.mxu0 0
      %741 = vmatmul.mubr.bf16.gmra.mrb[0].mxu0 %v622
      %v742 = vpop.f32.mrb[0].mxu0
      %v743 = vadd.f32 %v678, %v742
      %v744 = vpop.f32.mrb[0].mxu0
      %v745 = vpop.f32.mrb[0].mxu0
      %v746 = vadd.f32 %v681, %v745
      %v747 = vpop.f32.mrb[0].mxu0
      %748 = vmatprep.mubr.bf16.mxu0 0
      %749 = vmatmul.mubr.bf16.gmra.mrb[0].mxu0 %v625
      %v750 = vpop.f32.mrb[0].mxu0
      %v751 = vadd.f32 %v686, %v750
      %v752 = vpop.f32.mrb[0].mxu0
      %v753 = vpop.f32.mrb[0].mxu0
      %v754 = vadd.f32 %v689, %v753
      %v755 = vpop.f32.mrb[0].mxu0
      %756 = vdwg.mxu0
      %v757 = vadd.f32 %v727, %v409
      %v758 = vadd.f32 %v730, %v412
      %v759 = vadd.f32 %v735, %v417
      %v760 = vadd.f32 %v738, %v420
      %v761 = vadd.f32 %v743, %v425
      %v762 = vadd.f32 %v746, %v428
      %v763 = vadd.f32 %v751, %v433
      %v764 = vadd.f32 %v754, %v436
      %v765 = vld [vmem:[%s5] sm:$0x1]
      %v767 = vlaneseq
      %v768 = vshrl.u32 %v767, 7
      %v769 = vsub.s32 0, %v768
      %v770 = vrot.slane %v765, %v769
      %v772 = vadd.f32 %v757, %v770
      %v773 = vadd.f32 %v758, %v770
      %v774 = vadd.f32 %v759, %v770
      %v775 = vadd.f32 %v760, %v770
      %v776 = vadd.f32 %v761, %v770
      %v777 = vadd.f32 %v762, %v770
      %v778 = vadd.f32 %v763, %v770
      %v779 = vadd.f32 %v764, %v770
      %v780 = vmax.f32 %v772, 0.0
      %v781 = vmax.f32 %v773, 0.0
      %v782 = vmax.f32 %v774, 0.0
      %v783 = vmax.f32 %v775, 0.0
      %v784 = vmax.f32 %v776, 0.0
      %v785 = vmax.f32 %v777, 0.0
      %v786 = vmax.f32 %v778, 0.0
      %v787 = vmax.f32 %v779, 0.0
      %v788 = vpack.c.bf16 %v781, %v780
      %v789 = vpack.c.bf16 %v783, %v782
      %v790 = vpack.c.bf16 %v785, %v784
      %v791 = vpack.c.bf16 %v787, %v786
      %v796 = vunpack.c.l.b16 %v788
      %v797 = vunpack.c.h.b16 %v788
      %v798 = vunpack.c.l.b16 %v789
      %v799 = vunpack.c.h.b16 %v789
      %v800 = vunpack.c.l.b16 %v790
      %v801 = vunpack.c.h.b16 %v790
      %v802 = vunpack.c.l.b16 %v791
      %v803 = vunpack.c.h.b16 %v791
      %v804 = vpack.c.b16 %v796, %v796
      %v805 = vpack.c.b16 %v797, %v797
      %v806 = vpack.c.b16 %v798, %v798
      %v807 = vpack.c.b16 %v799, %v799
      %v808 = vpack.c.b16 %v800, %v800
      %v809 = vpack.c.b16 %v801, %v801
      %v810 = vpack.c.b16 %v802, %v802
      %v811 = vpack.c.b16 %v803, %v803
      %vm820 = vcmask 257024
      %821 = vst.msk [vmem:[%s271] sm:$0xf] %vm820, %v804
      %822 = vst.msk [vmem:[%s271 + $0x4] sm:$0xf] %vm820, %v805
      %823 = vst.msk [vmem:[%s271 + $0x8] sm:$0xf] %vm820, %v806
      %824 = vst.msk [vmem:[%s271 + $0xc] sm:$0xf] %vm820, %v807
      %825 = vst.msk [vmem:[%s271 + $0x10] sm:$0xf] %vm820, %v808
      %826 = vst.msk [vmem:[%s271 + $0x14] sm:$0xf] %vm820, %v809
      %827 = vst.msk [vmem:[%s271 + $0x18] sm:$0xf] %vm820, %v810
      %828 = vst.msk [vmem:[%s271 + $0x1c] sm:$0xf] %vm820, %v811
      %p829 = scmp.lt.s32.totalorder %s17, 1
      %s830 = scalar_select %p829, %s17, 1
      %s831 = smul.addr %s830, 8
      %s832 = smul.addr %s831, 4
      %s833 = scalar_lea.vmem %s6, %s832
      // Predicated region
      $region45: #{forward.12} parent=43 // pred_check
        %p834 = pneg %p171
      $region46: #{forward.12} parent=43 // pred_check_branch
        %836 = sbr.rel (%p834) target = $region48
      $region47: #{forward.12} parent=43 // pred_region
        _
      $region48: #{forward.12} parent=43 // pred_fallthru
        _
    $region44: #{forward.12} parent=5 // pred_fallthru
      _
    %p837 = scmp.le.s32.totalorder 2, %s12
    // Predicated region
    $region49: #{forward.12} parent=5 // pred_check
      %p838 = pneg %p837
    $region50: #{forward.12} parent=5 // pred_check_branch
      %840 = sbr.rel (%p838) target = $region52
    $region51: #{forward.12} parent=5 // pred_region
      %s841 = ssub.s32 %s12, 2
      // Predicated region
      $region53: #{forward.12} parent=51 // pred_check
        %p842 = pneg %p177
      $region54: #{forward.12} parent=51 // pred_check_branch
        %844 = sbr.rel (%p842) target = $region56
      $region55: #{forward.12} parent=51 // pred_region
        %p845 = scmp.lt.s32.totalorder %s18, 1
        %s846 = scalar_select %p845, %s18, 1
        %s847 = smul.addr %s846, 8
        %s848 = smul.addr %s847, 4
        %s849 = scalar_lea.vmem %s6, %s848
      $region56: #{forward.12} parent=51 // pred_fallthru
        _
    $region52: #{forward.12} parent=5 // pred_fallthru
      _
  $region6: #{forward.12} parent=0 // loop_footer
    %s16 = sadd.s32 1, %s12
  $region7: #{forward.12} parent=0 // loop_footer_branch
    %11 = sbr.rel target = $region3
  $region8: #{forward.12} parent=0 // loop_exit
    _

// kernel: forward.13
$region0: #{forward.13}
  #allocation0 [shape = 'u32[]', space=smem, size = 0x4, offset = 0x4, fixed_abs, tag = 'smem constant byte address 0x4 - core index']
  #allocation1 [shape = 'u32[144,128]{1,0:T(1,128)}', space=vmem, size = 0x12000, scoped, tag = 'internal scratch']
  %s0 = inlined_call_operand.vmem [shape: bf16[2,16,288], index: 0, kind: input, shape index: {}]
  %s1 = inlined_call_operand.vmem [shape: bf16[288,64], index: 1, kind: input, shape index: {}]
  %s2 = inlined_call_operand.vmem [shape: f32[1,64], index: 2, kind: input, shape index: {}]
  %s3 = inlined_call_operand.vmem [shape: bf16[2,16,64], index: 3, kind: output, shape index: {}]
  %s4 = sld [smem:[#allocation0]]
  $region45: #{forward.13} parent=0
    _
  %s6 = ssub.s32 1, %s4
  %s7 = scalar_select 0, %s6, %s4
  loop: start=0, step=1, limit=4
  $region2: #{forward.13} parent=0 // loop_pre_header
    _
  $region3: #{forward.13} parent=0 // loop_header
    %s9 = sphi 0, %s13
    %p10 = scmp.ge.s32.totalorder %s9, 4
    %s19 = sphi 0, %s21
    %s22 = sphi 0, %s19
    %s23 = sphi 0, %s22
    %s39 = sphi 0, %s23
    %s43 = sphi 0, %s43
    %s45 = sphi 0, %s43
    %s46 = sphi 0, %s45
    %s60 = sphi 0, %s46
    %s64 = sphi 0, %s64
    %s66 = sphi 0, %s64
    %s67 = sphi 0, %s66
    %s81 = sphi 0, %s67
    %s87 = sphi 0, %s89
    %s90 = sphi 0, %s87
    %s91 = sphi 0, %s90
    %s107 = sphi 0, %s91
  $region4: #{forward.13} parent=0 // loop_header_branch
    %12 = sbr.rel (%p10) target = $region8
  $region5: #{forward.13} parent=0 // loop_body
    %s14 = ssub.s32 %s9, 1
    %s15 = ssub.s32 %s9, 2
    %s16 = sadd.s32 %s9, 1
    %s17 = ssub.s32 %s9, %s16
    %p18 = scmp.eq.s32.totalorder %s17, 0
    %s20 = sadd.s32 %s19, 1
    %s21 = scalar_select %p18, %s19, %s20
    %p24 = pneg %p18
    %p25 = scmp.eq.s32.totalorder %s9, 1
    %p26 = por %p24, %p25
    %p27 = scmp.ne.s32.totalorder %s19, %s22
    %p28 = scmp.eq.s32.totalorder %s9, 0
    %p29 = por %p27, %p28
    %p30 = scmp.ne.s32.totalorder %s19, %s22
    %p31 = scmp.eq.s32.totalorder %s14, 1
    %p32 = por %p30, %p31
    %p33 = scmp.ne.s32.totalorder %s22, %s23
    %p34 = scmp.eq.s32.totalorder %s14, 0
    %p35 = por %p33, %p34
    %p36 = scmp.ne.s32.totalorder %s22, %s23
    %p37 = scmp.eq.s32.totalorder %s15, 1
    %p38 = por %p36, %p37
    %p40 = scmp.ne.s32.totalorder %s23, %s39
    %p41 = scmp.eq.s32.totalorder %s15, 0
    %p42 = por %p40, %p41
    %s44 = sadd.s32 %s43, 1
    %p47 = scmp.eq.s32.totalorder %s9, 1
    %p48 = scmp.ne.s32.totalorder %s43, %s45
    %p49 = scmp.eq.s32.totalorder %s9, 0
    %p50 = por %p48, %p49
    %p51 = scmp.ne.s32.totalorder %s43, %s45
    %p52 = scmp.eq.s32.totalorder %s14, 1
    %p53 = por %p51, %p52
    %p54 = scmp.ne.s32.totalorder %s45, %s46
    %p55 = scmp.eq.s32.totalorder %s14, 0
    %p56 = por %p54, %p55
    %p57 = scmp.ne.s32.totalorder %s45, %s46
    %p58 = scmp.eq.s32.totalorder %s15, 1
    %p59 = por %p57, %p58
    %p61 = scmp.ne.s32.totalorder %s46, %s60
    %p62 = scmp.eq.s32.totalorder %s15, 0
    %p63 = por %p61, %p62
    %s65 = sadd.s32 %s64, 1
    %p68 = scmp.eq.s32.totalorder %s9, 1
    %p69 = scmp.ne.s32.totalorder %s64, %s66
    %p70 = scmp.eq.s32.totalorder %s9, 0
    %p71 = por %p69, %p70
    %p72 = scmp.ne.s32.totalorder %s64, %s66
    %p73 = scmp.eq.s32.totalorder %s14, 1
    %p74 = por %p72, %p73
    %p75 = scmp.ne.s32.totalorder %s66, %s67
    %p76 = scmp.eq.s32.totalorder %s14, 0
    %p77 = por %p75, %p76
    %p78 = scmp.ne.s32.totalorder %s66, %s67
    %p79 = scmp.eq.s32.totalorder %s15, 1
    %p80 = por %p78, %p79
    %p82 = scmp.ne.s32.totalorder %s67, %s81
    %p83 = scmp.eq.s32.totalorder %s15, 0
    %p84 = por %p82, %p83
    %s85 = ssub.s32 %s9, %s16
    %p86 = scmp.eq.s32.totalorder %s85, 0
    %s88 = sadd.s32 %s87, 1
    %s89 = scalar_select %p86, %s87, %s88
    %p92 = pneg %p86
    %p93 = scmp.eq.s32.totalorder %s9, 1
    %p94 = por %p92, %p93
    %p95 = scmp.ne.s32.totalorder %s87, %s90
    %p96 = scmp.eq.s32.totalorder %s9, 0
    %p97 = por %p95, %p96
    %p98 = scmp.ne.s32.totalorder %s87, %s90
    %p99 = scmp.eq.s32.totalorder %s14, 1
    %p100 = por %p98, %p99
    %p101 = scmp.ne.s32.totalorder %s90, %s91
    %p102 = scmp.eq.s32.totalorder %s14, 0
    %p103 = por %p101, %p102
    %p104 = scmp.ne.s32.totalorder %s90, %s91
    %p105 = scmp.eq.s32.totalorder %s15, 1
    %p106 = por %p104, %p105
    %p108 = scmp.ne.s32.totalorder %s91, %s107
    %p109 = scmp.eq.s32.totalorder %s15, 0
    %p110 = por %p108, %p109
    %p111 = scmp.le.s32.totalorder 1, %s9
    %p112 = scmp.lt.s32.totalorder %s9, 3
    %p113 = pnand %p111, %p112
    %p114 = pneg %p113
    // Predicated region
    $region9: #{forward.13} parent=5 // pred_check
      _
    $region10: #{forward.13} parent=5 // pred_check_branch
      %116 = sbr.rel (%p113) target = $region12
    $region11: #{forward.13} parent=5 // pred_region
      %s117 = ssub.s32 %s9, 1
      // Predicated region
      $region13: #{forward.13} parent=11 // pred_check
        %p118 = pneg %p56
      $region14: #{forward.13} parent=11 // pred_check_branch
        %120 = sbr.rel (%p118) target = $region16
      $region15: #{forward.13} parent=11 // pred_region
        _
      $region16: #{forward.13} parent=11 // pred_fallthru
        _
      // Predicated region
      $region17: #{forward.13} parent=11 // pred_check
        %p121 = pneg %p77
      $region18: #{forward.13} parent=11 // pred_check_branch
        %123 = sbr.rel (%p121) target = $region20
      $region19: #{forward.13} parent=11 // pred_region
        _
      $region20: #{forward.13} parent=11 // pred_fallthru
        _
    $region12: #{forward.13} parent=5 // pred_fallthru
      _
    %p124 = scmp.lt.s32.totalorder %s9, 2
    // Predicated region
    $region21: #{forward.13} parent=5 // pred_check
      %p125 = pneg %p124
    $region22: #{forward.13} parent=5 // pred_check_branch
      %127 = sbr.rel (%p125) target = $region24
    $region23: #{forward.13} parent=5 // pred_region
      // Predicated region
      $region25: #{forward.13} parent=23 // pred_check
        %p128 = pneg %p29
      $region26: #{forward.13} parent=23 // pred_check_branch
        %130 = sbr.rel (%p128) target = $region28
      $region27: #{forward.13} parent=23 // pred_region
        %p131 = scmp.lt.s32.totalorder %s9, 1
        %s132 = scalar_select %p131, %s9, 1
        %s133 = smul.addr %s132, 6
        %s134 = smul.addr %s133, 4
        %s135 = scalar_lea.vmem %s0, %s134
      $region28: #{forward.13} parent=23 // pred_fallthru
        _
    $region24: #{forward.13} parent=5 // pred_fallthru
      _
    %p136 = scmp.le.s32.totalorder 1, %s9
    %p137 = scmp.lt.s32.totalorder %s9, 3
    %p138 = pnand %p136, %p137
    %p139 = pneg %p138
    // Predicated region
    $region29: #{forward.13} parent=5 // pred_check
      _
    $region30: #{forward.13} parent=5 // pred_check_branch
      %141 = sbr.rel (%p138) target = $region32
    $region31: #{forward.13} parent=5 // pred_region
      %s142 = ssub.s32 %s9, 1
      %p143 = scmp.lt.s32.totalorder %s14, 1
      %s144 = scalar_select %p143, %s14, 1
      %s145 = smul.addr %s144, 6
      %s146 = smul.addr %s145, 4
      %s147 = scalar_lea.vmem %s0, %s146
      %p148 = pneg %p35
      %p149 = pneg %p32
      %p150 = pneg %p56
      %p151 = pneg %p53
      %p152 = pneg %p77
      %p153 = pneg %p74
      %p154 = pneg %p103
      %p155 = pneg %p100
      %p156 = scmp.lt.s32.totalorder %s14, 1
      %s157 = scalar_select %p156, %s14, 1
      %s158 = smul.addr %s157, 2
      %s159 = smul.addr %s158, 4
      %s160 = scalar_lea.vmem %s3, %s159
      %p161 = scmp.lt.s32.totalorder %s14, 1
      %s162 = scalar_select %p161, %s14, 1
      %s163 = smul.addr %s162, 6
      %s164 = smul.addr %s163, 4
      %s165 = scalar_lea.vmem %s0, %s164
      %p166 = scmp.lt.s32.totalorder %s14, 1
      %s167 = scalar_select %p166, %s14, 1
      %s168 = smul.addr %s167, 2
      %s169 = smul.addr %s168, 4
      %s170 = scalar_lea.vmem %s3, %s169
      %v172 = vld [vmem:[%s165] sm:$0xff]
      %v173 = vld [vmem:[%s165 + $0x8] sm:$0xf]
      %v174 = vld [vmem:[%s165 + $0xc] sm:$0xff]
      %v175 = vld [vmem:[%s165 + $0x14] sm:$0xf]
      %v176 = vld [vmem:[%s1] sm:$0xf]
      %v177 = vld [vmem:[%s1 + $0x4] sm:$0xf]
      %v178 = vld [vmem:[%s1 + $0x8] sm:$0xf]
      %v179 = vld [vmem:[%s1 + $0xc] sm:$0xf]
      %v180 = vld [vmem:[%s1 + $0x10] sm:$0xf]
      %v181 = vld [vmem:[%s1 + $0x14] sm:$0xf]
      %v182 = vld [vmem:[%s1 + $0x18] sm:$0xf]
      %v183 = vld [vmem:[%s1 + $0x1c] sm:$0xf]
      %v184 = vld [vmem:[%s1 + $0x20] sm:$0xf]
      %v185 = vld [vmem:[%s1 + $0x24] sm:$0xf]
      %v186 = vld [vmem:[%s1 + $0x28] sm:$0xf]
      %v187 = vld [vmem:[%s1 + $0x2c] sm:$0xf]
      %v188 = vld [vmem:[%s1 + $0x30] sm:$0xf]
      %v189 = vld [vmem:[%s1 + $0x34] sm:$0xf]
      %v190 = vld [vmem:[%s1 + $0x38] sm:$0xf]
      %v191 = vld [vmem:[%s1 + $0x3c] sm:$0xf]
      %v192 = vld [vmem:[%s1 + $0x40] sm:$0xf]
      %v193 = vld [vmem:[%s1 + $0x44] sm:$0xf]
      %v194 = vld [vmem:[%s1 + $0x48] sm:$0xf]
      %v195 = vld [vmem:[%s1 + $0x4c] sm:$0xf]
      %v196 = vld [vmem:[%s1 + $0x50] sm:$0xf]
      %v197 = vld [vmem:[%s1 + $0x54] sm:$0xf]
      %v198 = vld [vmem:[%s1 + $0x58] sm:$0xf]
      %v199 = vld [vmem:[%s1 + $0x5c] sm:$0xf]
      %v200 = vld [vmem:[%s1 + $0x60] sm:$0xf]
      %v201 = vld [vmem:[%s1 + $0x64] sm:$0xf]
      %v202 = vld [vmem:[%s1 + $0x68] sm:$0xf]
      %v203 = vld [vmem:[%s1 + $0x6c] sm:$0xf]
      %v204 = vld [vmem:[%s1 + $0x70] sm:$0xf]
      %v205 = vld [vmem:[%s1 + $0x74] sm:$0xf]
      %v206 = vld [vmem:[%s1 + $0x78] sm:$0xf]
      %v207 = vld [vmem:[%s1 + $0x7c] sm:$0xf]
      %v208 = vld [vmem:[%s1 + $0x80] sm:$0xf]
      %v209 = vld [vmem:[%s1 + $0x84] sm:$0xf]
      %v210 = vld [vmem:[%s1 + $0x88] sm:$0xf]
      %v211 = vld [vmem:[%s1 + $0x8c] sm:$0xf]
      %v212 = vld [vmem:[%s2] sm:$0x1]
      %v214 = vlaneseq
      %v215 = vshrl.u32 %v214, 7
      %v216 = vsub.s32 0, %v215
      %v217 = vrot.slane %v212, %v216
      %v223 = vunpack.c.l.b16 %v172
      %v224 = vunpack.c.h.b16 %v172
      %v225 = vunpack.c.l.b16 %v173
      %v226 = vunpack.c.l.b16 %v174
      %v227 = vunpack.c.h.b16 %v174
      %v228 = vunpack.c.l.b16 %v175
      %v229 = vpack.c.b16 %v226, %v223
      %v230 = vpack.c.b16 %v227, %v224
      %v231 = vpack.c.b16 %v228, %v225
      %v270 = vunpack.c.l.b16 %v176
      %v271 = vunpack.c.l.b16 %v177
      %v272 = vunpack.c.l.b16 %v178
      %v273 = vunpack.c.l.b16 %v179
      %v274 = vunpack.c.l.b16 %v180
      %v275 = vunpack.c.l.b16 %v181
      %v276 = vunpack.c.l.b16 %v182
      %v277 = vunpack.c.l.b16 %v183
      %v278 = vunpack.c.l.b16 %v184
      %v279 = vunpack.c.l.b16 %v185
      %v280 = vunpack.c.l.b16 %v186
      %v281 = vunpack.c.l.b16 %v187
      %v282 = vunpack.c.l.b16 %v188
      %v283 = vunpack.c.l.b16 %v189
      %v284 = vunpack.c.l.b16 %v190
      %v285 = vunpack.c.l.b16 %v191
      %v286 = vunpack.c.l.b16 %v192
      %v287 = vunpack.c.l.b16 %v193
      %v288 = vunpack.c.l.b16 %v194
      %v289 = vunpack.c.l.b16 %v195
      %v290 = vunpack.c.l.b16 %v196
      %v291 = vunpack.c.l.b16 %v197
      %v292 = vunpack.c.l.b16 %v198
      %v293 = vunpack.c.l.b16 %v199
      %v294 = vunpack.c.l.b16 %v200
      %v295 = vunpack.c.l.b16 %v201
      %v296 = vunpack.c.l.b16 %v202
      %v297 = vunpack.c.l.b16 %v203
      %v298 = vunpack.c.l.b16 %v204
      %v299 = vunpack.c.l.b16 %v205
      %v300 = vunpack.c.l.b16 %v206
      %v301 = vunpack.c.l.b16 %v207
      %v302 = vunpack.c.l.b16 %v208
      %v303 = vunpack.c.l.b16 %v209
      %v304 = vunpack.c.l.b16 %v210
      %v305 = vunpack.c.l.b16 %v211
      %v306 = vpack.c.b16 %v271, %v270
      %v307 = vpack.c.b16 %v273, %v272
      %v308 = vpack.c.b16 %v275, %v274
      %v309 = vpack.c.b16 %v277, %v276
      %v310 = vpack.c.b16 %v279, %v278
      %v311 = vpack.c.b16 %v281, %v280
      %v312 = vpack.c.b16 %v283, %v282
      %v313 = vpack.c.b16 %v285, %v284
      %v314 = vpack.c.b16 %v287, %v286
      %v315 = vpack.c.b16 %v289, %v288
      %v316 = vpack.c.b16 %v291, %v290
      %v317 = vpack.c.b16 %v293, %v292
      %v318 = vpack.c.b16 %v295, %v294
      %v319 = vpack.c.b16 %v297, %v296
      %v320 = vpack.c.b16 %v299, %v298
      %v321 = vpack.c.b16 %v301, %v300
      %v322 = vpack.c.b16 %v303, %v302
      %v323 = vpack.c.b16 %v305, %v304
      %vm342 = vcmask 261120
      %v344 = vsel %vm342, %v231, 0
      %346 = vmatprep.subr.bf16.mxu0 0
      %347 = vmatpush1.bf16.msra.mxu0 %v306
      %348 = vmatprep.subr.bf16.mxu0 0
      %349 = vmatpush1.bf16.msra.mxu0 %v307
      %350 = vmatprep.subr.bf16.mxu0 0
      %351 = vmatpush1.bf16.msra.mxu0 %v308
      %352 = vmatprep.subr.bf16.mxu0 0
      %353 = vmatpush1.bf16.msra.mxu0 %v309
      %354 = vmatprep.subr.bf16.mxu0 0
      %355 = vmatpush1.bf16.msra.mxu0 %v310
      %356 = vmatprep.subr.bf16.mxu0 0
      %357 = vmatpush1.bf16.msra.mxu0 %v311
      %358 = vmatprep.subr.bf16.mxu0 0
      %359 = vmatpush1.bf16.msra.mxu0 %v312
      %360 = vmatprep.subr.bf16.mxu0 0
      %361 = vmatpush1.bf16.msra.mxu0 %v313
      %362 = vmatprep.subr.bf16.mxu0 0
      %363 = vmatpush1.bf16.msra.mxu0 %v314
      %364 = vmatprep.subr.bf16.mxu0 0
      %365 = vmatpush1.bf16.msra.mxu0 %v315
      %366 = vmatprep.subr.bf16.mxu0 0
      %367 = vmatpush1.bf16.msra.mxu0 %v316
      %368 = vmatprep.subr.bf16.mxu0 0
      %369 = vmatpush1.bf16.msra.mxu0 %v317
      %370 = vmatprep.subr.bf16.mxu0 0
      %371 = vmatpush1.bf16.msra.mxu0 %v318
      %372 = vmatprep.subr.bf16.mxu0 0
      %373 = vmatpush1.bf16.msra.mxu0 %v319
      %374 = vmatprep.subr.bf16.mxu0 0
      %375 = vmatpush1.bf16.msra.mxu0 %v320
      %376 = vmatprep.subr.bf16.mxu0 0
      %377 = vmatpush1.bf16.msra.mxu0 %v321
      %378 = vmatprep.mubr.bf16.mxu0 %v230
      %379 = vmatmul.mubr.bf16.gmra.mrb[0].mxu0 %v229
      %v380 = vpop.f32.mrb[0].mxu0
      %v381 = vadd.f32 %v217, %v380
      %v382 = vpop.f32.mrb[0].mxu0
      %v383 = vpop.f32.mrb[0].mxu0
      %v384 = vadd.f32 %v217, %v383
      %v385 = vpop.f32.mrb[0].mxu0
      %386 = vdwg.mxu0
      %387 = vmatprep.subr.bf16.mxu0 0
      %388 = vmatpush1.bf16.msra.mxu0 %v322
      %389 = vmatprep.subr.bf16.mxu0 0
      %390 = vmatpush1.bf16.msra.mxu0 %v323
      %391 = vmatprep.subr.bf16.mxu0 0
      %392 = vmatpush1.bf16.msra.mxu0 0
      %393 = vmatprep.subr.bf16.mxu0 0
      %394 = vmatpush1.bf16.msra.mxu0 0
      %395 = vmatprep.subr.bf16.mxu0 0
      %396 = vmatpush1.bf16.msra.mxu0 0
      %397 = vmatprep.subr.bf16.mxu0 0
      %398 = vmatpush1.bf16.msra.mxu0 0
      %399 = vmatprep.subr.bf16.mxu0 0
      %400 = vmatpush1.bf16.msra.mxu0 0
      %401 = vmatprep.subr.bf16.mxu0 0
      %402 = vmatpush1.bf16.msra.mxu0 0
      %403 = vmatprep.subr.bf16.mxu0 0
      %404 = vmatpush1.bf16.msra.mxu0 0
      %405 = vmatprep.subr.bf16.mxu0 0
      %406 = vmatpush1.bf16.msra.mxu0 0
      %407 = vmatprep.subr.bf16.mxu0 0
      %408 = vmatpush1.bf16.msra.mxu0 0
      %409 = vmatprep.subr.bf16.mxu0 0
      %410 = vmatpush1.bf16.msra.mxu0 0
      %411 = vmatprep.subr.bf16.mxu0 0
      %412 = vmatpush1.bf16.msra.mxu0 0
      %413 = vmatprep.subr.bf16.mxu0 0
      %414 = vmatpush1.bf16.msra.mxu0 0
      %415 = vmatprep.subr.bf16.mxu0 0
      %416 = vmatpush1.bf16.msra.mxu0 0
      %417 = vmatprep.subr.bf16.mxu0 0
      %418 = vmatpush1.bf16.msra.mxu0 0
      %419 = vmatprep.mubr.bf16.mxu0 0
      %420 = vmatmul.mubr.bf16.gmra.mrb[0].mxu0 %v344
      %v421 = vpop.f32.mrb[0].mxu0
      %v422 = vadd.f32 %v381, %v421
      %v423 = vpop.f32.mrb[0].mxu0
      %v424 = vpop.f32.mrb[0].mxu0
      %v425 = vadd.f32 %v384, %v424
      %v426 = vpop.f32.mrb[0].mxu0
      %427 = vdwg.mxu0
      %v428 = vmax.f32 %v422, 0.0
      %v429 = vmax.f32 %v425, 0.0
      %v430 = vpack.c.bf16 %v429, %v428
      %v432 = vunpack.c.l.b16 %v430
      %v433 = vunpack.c.h.b16 %v430
      %v434 = vpack.c.b16 %v432, %v432
      %v435 = vpack.c.b16 %v433, %v433
      %vm438 = vcmask 519168
      %439 = vst.msk [vmem:[%s170] sm:$0xf] %vm438, %v434
      %440 = vst.msk [vmem:[%s170 + $0x4] sm:$0xf] %vm438, %v435
      %p441 = scmp.lt.s32.totalorder %s14, 1
      %s442 = scalar_select %p441, %s14, 1
      %s443 = smul.addr %s442, 2
      %s444 = smul.addr %s443, 4
      %s445 = scalar_lea.vmem %s3, %s444
      // Predicated region
      $region33: #{forward.13} parent=31 // pred_check
        %p446 = pneg %p100
      $region34: #{forward.13} parent=31 // pred_check_branch
        %448 = sbr.rel (%p446) target = $region36
      $region35: #{forward.13} parent=31 // pred_region
        _
      $region36: #{forward.13} parent=31 // pred_fallthru
        _
    $region32: #{forward.13} parent=5 // pred_fallthru
      _
    %p449 = scmp.le.s32.totalorder 2, %s9
    // Predicated region
    $region37: #{forward.13} parent=5 // pred_check
      %p450 = pneg %p449
    $region38: #{forward.13} parent=5 // pred_check_branch
      %452 = sbr.rel (%p450) target = $region40
    $region39: #{forward.13} parent=5 // pred_region
      %s453 = ssub.s32 %s9, 2
      // Predicated region
      $region41: #{forward.13} parent=39 // pred_check
        %p454 = pneg %p106
      $region42: #{forward.13} parent=39 // pred_check_branch
        %456 = sbr.rel (%p454) target = $region44
      $region43: #{forward.13} parent=39 // pred_region
        %p457 = scmp.lt.s32.totalorder %s15, 1
        %s458 = scalar_select %p457, %s15, 1
        %s459 = smul.addr %s458, 2
        %s460 = smul.addr %s459, 4
        %s461 = scalar_lea.vmem %s3, %s460
      $region44: #{forward.13} parent=39 // pred_fallthru
        _
    $region40: #{forward.13} parent=5 // pred_fallthru
      _
  $region6: #{forward.13} parent=0 // loop_footer
    %s13 = sadd.s32 1, %s9
  $region7: #{forward.13} parent=0 // loop_footer_branch
    %8 = sbr.rel target = $region3
  $region8: #{forward.13} parent=0 // loop_exit
    _

// kernel: forward.15
$region0: #{forward.15}
  #allocation0 [shape = 'u32[]', space=smem, size = 0x4, offset = 0x4, fixed_abs, tag = 'smem constant byte address 0x4 - core index']
  #allocation1 [shape = 'u32[144,128]{1,0:T(1,128)}', space=vmem, size = 0x12000, scoped, tag = 'internal scratch']
  %s0 = inlined_call_operand.vmem [shape: bf16[2,16,64], index: 0, kind: input, shape index: {}]
  %s1 = inlined_call_operand.vmem [shape: f32[64,10], index: 1, kind: input, shape index: {}]
  %s2 = inlined_call_operand.vmem [shape: f32[1,10], index: 2, kind: input, shape index: {}]
  %s3 = inlined_call_operand.hbm [shape: f32[2,10], index: 3, kind: output, shape index: {}]
  %s4 = sld [smem:[#allocation0]]
  $region22: #{forward.15} parent=0
    _
  %s6 = ssub.s32 1, %s4
  %s7 = scalar_select 0, %s6, %s4
  $region1: #{forward.15} parent=0
    #allocation2 [shape = 'u8[1024]{0}', space=vmem, size = 0x400, scoped, tag = 'output window, operand 0, single buffered']
    #allocation3 [shape = 's32[1]{0}', space=sflag, size = 0x4, scoped, tag = 'scoped memory for forward.15']
    %8 = vsyncpa [#allocation3], 0
    // Predicated region
    $region2: #{forward.15} parent=1 // pred_check
      _
    $region3: #{forward.15} parent=1 // pred_check_branch
      %10 = sbr.rel (0) target = $region5
    $region4: #{forward.15} parent=1 // pred_region
      _
    $region5: #{forward.15} parent=1 // pred_fallthru
      _
    // Predicated region
    $region6: #{forward.15} parent=1 // pred_check
      _
    $region7: #{forward.15} parent=1 // pred_check_branch
      %12 = sbr.rel (0) target = $region9
    $region8: #{forward.15} parent=1 // pred_region
      _
    $region9: #{forward.15} parent=1 // pred_fallthru
      _
    // Predicated region
    $region10: #{forward.15} parent=1 // pred_check
      _
    $region11: #{forward.15} parent=1 // pred_check_branch
      %14 = sbr.rel (0) target = $region13
    $region12: #{forward.15} parent=1 // pred_region
      _
    $region13: #{forward.15} parent=1 // pred_fallthru
      _
    %v15 = vld [vmem:[%s0] sm:$0xf]
    %v16 = vld [vmem:[%s0 + $0x4] sm:$0xf]
    %v17 = vld [vmem:[%s0 + $0x8] sm:$0xf]
    %v18 = vld [vmem:[%s0 + $0xc] sm:$0xf]
    %v19 = vunpack.c.l.bf16 %v15
    %v20 = vunpack.c.l.bf16 %v16
    %v21 = vunpack.c.l.bf16 %v17
    %v22 = vunpack.c.l.bf16 %v18
    %vm23 = vcmask 523264
    %v24 = vsel %vm23, %v19, 0.0
    %v25 = vsel %vm23, %v20, 0.0
    %v26 = vadd.f32 %v24, %v25
    %v27 = vrot.slane %v26, 4
    %v28 = vadd.f32 %v26, %v27
    %v29 = vrot.slane %v28, 2
    %v30 = vadd.f32 %v28, %v29
    %v31 = vrot.slane %v30, 1
    %v32 = vadd.f32 %v30, %v31
    %v33 = vsel %vm23, %v21, 0.0
    %v34 = vsel %vm23, %v22, 0.0
    %v35 = vadd.f32 %v33, %v34
    %v36 = vrot.slane %v35, 4
    %v37 = vadd.f32 %v35, %v36
    %v38 = vrot.slane %v37, 2
    %v39 = vadd.f32 %v37, %v38
    %v40 = vrot.slane %v39, 1
    %v41 = vadd.f32 %v39, %v40
    %v42 = vrcp.pop 16.0
    %v43 = vmul.f32 %v32, %v42
    %v44 = vmul.f32 %v41, %v42
    %v45 = vld [vmem:[%s1] sm:$0xff]
    %v46 = vld [vmem:[%s1 + $0x8] sm:$0xff]
    %v47 = vld [vmem:[%s1 + $0x10] sm:$0xff]
    %v48 = vld [vmem:[%s1 + $0x18] sm:$0xff]
    %v49 = vld [vmem:[%s1 + $0x20] sm:$0xff]
    %v50 = vld [vmem:[%s1 + $0x28] sm:$0xff]
    %v51 = vld [vmem:[%s1 + $0x30] sm:$0xff]
    %v52 = vld [vmem:[%s1 + $0x38] sm:$0xff]
    %v53 = vld [vmem:[%s2] sm:$0x1]
    %v55 = vlaneseq
    %v56 = vshrl.u32 %v55, 7
    %v57 = vsub.s32 0, %v56
    %v58 = vrot.slane %v53, %v57
    %vm62 = vcmask 1041409
    %v63 = vsel %vm62, %v44, %v43
    %v64 = vsel %vm23, %v63, 0
    %66 = vmatprep.subr.mxu0 0.0
    %67 = vmatpush1.msra.mxu0 %v45
    %68 = vmatprep.subr.mxu0 0.0
    %69 = vmatpush1.msra.mxu0 %v46
    %70 = vmatprep.subr.mxu0 0.0
    %71 = vmatpush1.msra.mxu0 %v47
    %72 = vmatprep.subr.mxu0 0.0
    %73 = vmatpush1.msra.mxu0 %v48
    %74 = vmatprep.subr.mxu0 0.0
    %75 = vmatpush1.msra.mxu0 %v49
    %76 = vmatprep.subr.mxu0 0.0
    %77 = vmatpush1.msra.mxu0 %v50
    %78 = vmatprep.subr.mxu0 0.0
    %79 = vmatpush1.msra.mxu0 %v51
    %80 = vmatprep.subr.mxu0 0.0
    %81 = vmatpush1.msra.mxu0 %v52
    %82 = vmatprep.subr.mxu0 0.0
    %83 = vmatpush1.msra.mxu0 0.0
    %84 = vmatprep.subr.mxu0 0.0
    %85 = vmatpush1.msra.mxu0 0.0
    %86 = vmatprep.subr.mxu0 0.0
    %87 = vmatpush1.msra.mxu0 0.0
    %88 = vmatprep.subr.mxu0 0.0
    %89 = vmatpush1.msra.mxu0 0.0
    %90 = vmatprep.subr.mxu0 0.0
    %91 = vmatpush1.msra.mxu0 0.0
    %92 = vmatprep.subr.mxu0 0.0
    %93 = vmatpush1.msra.mxu0 0.0
    %94 = vmatprep.subr.mxu0 0.0
    %95 = vmatpush1.msra.mxu0 0.0
    %96 = vmatprep.subr.mxu0 0.0
    %97 = vmatpush1.msra.mxu0 0.0
    %98 = vmatprep.subr.mxu0 0.0
    %99 = vmatpush1.msra.mxu0 0.0
    %100 = vmatprep.subr.mxu0 0.0
    %101 = vmatpush1.msra.mxu0 0.0
    %102 = vmatprep.subr.mxu0 0.0
    %103 = vmatpush1.msra.mxu0 0.0
    %104 = vmatprep.subr.mxu0 0.0
    %105 = vmatpush1.msra.mxu0 0.0
    %106 = vmatprep.subr.mxu0 0.0
    %107 = vmatpush1.msra.mxu0 0.0
    %108 = vmatprep.subr.mxu0 0.0
    %109 = vmatpush1.msra.mxu0 0.0
    %110 = vmatprep.subr.mxu0 0.0
    %111 = vmatpush1.msra.mxu0 0.0
    %112 = vmatprep.subr.mxu0 0.0
    %113 = vmatpush1.msra.mxu0 0.0
    %114 = vmatprep.subr.mxu0 0.0
    %115 = vmatpush1.msra.mxu0 0.0
    %116 = vmatprep.subr.mxu0 0.0
    %117 = vmatpush1.msra.mxu0 0.0
    %118 = vmatprep.subr.mxu0 0.0
    %119 = vmatpush1.msra.mxu0 0.0
    %120 = vmatprep.subr.mxu0 0.0
    %121 = vmatpush1.msra.mxu0 0.0
    %122 = vmatprep.subr.mxu0 0.0
    %123 = vmatpush1.msra.mxu0 0.0
    %124 = vmatprep.subr.mxu0 0.0
    %125 = vmatpush1.msra.mxu0 0.0
    %126 = vmatprep.subr.mxu0 0.0
    %127 = vmatpush1.msra.mxu0 0.0
    %128 = vmatprep.subr.mxu0 0.0
    %129 = vmatpush1.msra.mxu0 0.0
    %130 = vmatprep.mubr.f32.mxu0 0.0
    %131 = vmatmul.mubr.f32.gmra.mrb[0].mxu0 %v64
    %v132 = vpop.f32.mrb[0].mxu0
    %v133 = vadd.f32 %v58, %v132
    %v134 = vpop.f32.mrb[0].mxu0
    %135 = vdwg.mxu0
    %vm136 = vcmask 74752
    %137 = vst.msk [vmem:[#allocation2] sm:$0x3] %vm136, %v133
    // Predicated region
    $region14: #{forward.15} parent=1 // pred_check
      _
    $region15: #{forward.15} parent=1 // pred_check_branch
      %139 = sbr.rel (0) target = $region17
    $region16: #{forward.15} parent=1 // pred_region
      %s141 = ssub.s32 32, 32
      %142 = vsyncadd [#allocation3], %s141
      %s144 = sshll.u32 [#allocation2], 4
      %s145 = int_to_ptr.vmem [resolvable:$true] %s144
      %147 = dma.vmem_to_hbm [thread:$0]  %s145, 32, %s3, [#allocation3]
    $region17: #{forward.15} parent=1 // pred_fallthru
      _
    // Predicated region
    $region18: #{forward.15} parent=1 // pred_check
      _
    $region19: #{forward.15} parent=1 // pred_check_branch
      %149 = sbr.rel (0) target = $region21
    $region20: #{forward.15} parent=1 // pred_region
      %150 = dma.done [#allocation3], 32
    $region21: #{forward.15} parent=1 // pred_fallthru
      _
    %151 = vsyncpa [#allocation3], 1

// kernel: forward.14
$region0: #{forward.14}
  #allocation0 [shape = 'u32[]', space=smem, size = 0x4, offset = 0x4, fixed_abs, tag = 'smem constant byte address 0x4 - core index']
  #allocation1 [shape = 'u32[144,128]{1,0:T(1,128)}', space=vmem, size = 0x12000, scoped, tag = 'internal scratch']
  %s0 = inlined_call_operand.vmem [shape: bf16[2,16,576], index: 0, kind: input, shape index: {}]
  %s1 = inlined_call_operand.vmem [shape: bf16[576,64], index: 1, kind: input, shape index: {}]
  %s2 = inlined_call_operand.vmem [shape: f32[1,64], index: 2, kind: input, shape index: {}]
  %s3 = inlined_call_operand.vmem [shape: bf16[2,16,32], index: 3, kind: input, shape index: {}]
  %s4 = inlined_call_operand.vmem [shape: bf16[32,64], index: 4, kind: input, shape index: {}]
  %s5 = inlined_call_operand.vmem [shape: f32[1,64], index: 5, kind: input, shape index: {}]
  %s6 = inlined_call_operand.vmem [shape: bf16[2,16,64], index: 6, kind: output, shape index: {}]
  %s7 = sld [smem:[#allocation0]]
  $region57: #{forward.14} parent=0
    _
  %s9 = ssub.s32 1, %s7
  %s10 = scalar_select 0, %s9, %s7
  loop: start=0, step=1, limit=4
  $region2: #{forward.14} parent=0 // loop_pre_header
    _
  $region3: #{forward.14} parent=0 // loop_header
    %s12 = sphi 0, %s16
    %p13 = scmp.ge.s32.totalorder %s12, 4
    %s22 = sphi 0, %s24
    %s25 = sphi 0, %s22
    %s26 = sphi 0, %s25
    %s42 = sphi 0, %s26
    %s46 = sphi 0, %s46
    %s48 = sphi 0, %s46
    %s49 = sphi 0, %s48
    %s63 = sphi 0, %s49
    %s67 = sphi 0, %s67
    %s69 = sphi 0, %s67
    %s70 = sphi 0, %s69
    %s84 = sphi 0, %s70
    %s90 = sphi 0, %s92
    %s93 = sphi 0, %s90
    %s94 = sphi 0, %s93
    %s110 = sphi 0, %s94
    %s114 = sphi 0, %s114
    %s116 = sphi 0, %s114
    %s117 = sphi 0, %s116
    %s131 = sphi 0, %s117
    %s135 = sphi 0, %s135
    %s137 = sphi 0, %s135
    %s138 = sphi 0, %s137
    %s152 = sphi 0, %s138
    %s158 = sphi 0, %s160
    %s161 = sphi 0, %s158
    %s162 = sphi 0, %s161
    %s178 = sphi 0, %s162
  $region4: #{forward.14} parent=0 // loop_header_branch
    %15 = sbr.rel (%p13) target = $region8
  $region5: #{forward.14} parent=0 // loop_body
    %s17 = ssub.s32 %s12, 1
    %s18 = ssub.s32 %s12, 2
    %s19 = sadd.s32 %s12, 1
    %s20 = ssub.s32 %s12, %s19
    %p21 = scmp.eq.s32.totalorder %s20, 0
    %s23 = sadd.s32 %s22, 1
    %s24 = scalar_select %p21, %s22, %s23
    %p27 = pneg %p21
    %p28 = scmp.eq.s32.totalorder %s12, 1
    %p29 = por %p27, %p28
    %p30 = scmp.ne.s32.totalorder %s22, %s25
    %p31 = scmp.eq.s32.totalorder %s12, 0
    %p32 = por %p30, %p31
    %p33 = scmp.ne.s32.totalorder %s22, %s25
    %p34 = scmp.eq.s32.totalorder %s17, 1
    %p35 = por %p33, %p34
    %p36 = scmp.ne.s32.totalorder %s25, %s26
    %p37 = scmp.eq.s32.totalorder %s17, 0
    %p38 = por %p36, %p37
    %p39 = scmp.ne.s32.totalorder %s25, %s26
    %p40 = scmp.eq.s32.totalorder %s18, 1
    %p41 = por %p39, %p40
    %p43 = scmp.ne.s32.totalorder %s26, %s42
    %p44 = scmp.eq.s32.totalorder %s18, 0
    %p45 = por %p43, %p44
    %s47 = sadd.s32 %s46, 1
    %p50 = scmp.eq.s32.totalorder %s12, 1
    %p51 = scmp.ne.s32.totalorder %s46, %s48
    %p52 = scmp.eq.s32.totalorder %s12, 0
    %p53 = por %p51, %p52
    %p54 = scmp.ne.s32.totalorder %s46, %s48
    %p55 = scmp.eq.s32.totalorder %s17, 1
    %p56 = por %p54, %p55
    %p57 = scmp.ne.s32.totalorder %s48, %s49
    %p58 = scmp.eq.s32.totalorder %s17, 0
    %p59 = por %p57, %p58
    %p60 = scmp.ne.s32.totalorder %s48, %s49
    %p61 = scmp.eq.s32.totalorder %s18, 1
    %p62 = por %p60, %p61
    %p64 = scmp.ne.s32.totalorder %s49, %s63
    %p65 = scmp.eq.s32.totalorder %s18, 0
    %p66 = por %p64, %p65
    %s68 = sadd.s32 %s67, 1
    %p71 = scmp.eq.s32.totalorder %s12, 1
    %p72 = scmp.ne.s32.totalorder %s67, %s69
    %p73 = scmp.eq.s32.totalorder %s12, 0
    %p74 = por %p72, %p73
    %p75 = scmp.ne.s32.totalorder %s67, %s69
    %p76 = scmp.eq.s32.totalorder %s17, 1
    %p77 = por %p75, %p76
    %p78 = scmp.ne.s32.totalorder %s69, %s70
    %p79 = scmp.eq.s32.totalorder %s17, 0
    %p80 = por %p78, %p79
    %p81 = scmp.ne.s32.totalorder %s69, %s70
    %p82 = scmp.eq.s32.totalorder %s18, 1
    %p83 = por %p81, %p82
    %p85 = scmp.ne.s32.totalorder %s70, %s84
    %p86 = scmp.eq.s32.totalorder %s18, 0
    %p87 = por %p85, %p86
    %s88 = ssub.s32 %s12, %s19
    %p89 = scmp.eq.s32.totalorder %s88, 0
    %s91 = sadd.s32 %s90, 1
    %s92 = scalar_select %p89, %s90, %s91
    %p95 = pneg %p89
    %p96 = scmp.eq.s32.totalorder %s12, 1
    %p97 = por %p95, %p96
    %p98 = scmp.ne.s32.totalorder %s90, %s93
    %p99 = scmp.eq.s32.totalorder %s12, 0
    %p100 = por %p98, %p99
    %p101 = scmp.ne.s32.totalorder %s90, %s93
    %p102 = scmp.eq.s32.totalorder %s17, 1
    %p103 = por %p101, %p102
    %p104 = scmp.ne.s32.totalorder %s93, %s94
    %p105 = scmp.eq.s32.totalorder %s17, 0
    %p106 = por %p104, %p105
    %p107 = scmp.ne.s32.totalorder %s93, %s94
    %p108 = scmp.eq.s32.totalorder %s18, 1
    %p109 = por %p107, %p108
    %p111 = scmp.ne.s32.totalorder %s94, %s110
    %p112 = scmp.eq.s32.totalorder %s18, 0
    %p113 = por %p111, %p112
    %s115 = sadd.s32 %s114, 1
    %p118 = scmp.eq.s32.totalorder %s12, 1
    %p119 = scmp.ne.s32.totalorder %s114, %s116
    %p120 = scmp.eq.s32.totalorder %s12, 0
    %p121 = por %p119, %p120
    %p122 = scmp.ne.s32.totalorder %s114, %s116
    %p123 = scmp.eq.s32.totalorder %s17, 1
    %p124 = por %p122, %p123
    %p125 = scmp.ne.s32.totalorder %s116, %s117
    %p126 = scmp.eq.s32.totalorder %s17, 0
    %p127 = por %p125, %p126
    %p128 = scmp.ne.s32.totalorder %s116, %s117
    %p129 = scmp.eq.s32.totalorder %s18, 1
    %p130 = por %p128, %p129
    %p132 = scmp.ne.s32.totalorder %s117, %s131
    %p133 = scmp.eq.s32.totalorder %s18, 0
    %p134 = por %p132, %p133
    %s136 = sadd.s32 %s135, 1
    %p139 = scmp.eq.s32.totalorder %s12, 1
    %p140 = scmp.ne.s32.totalorder %s135, %s137
    %p141 = scmp.eq.s32.totalorder %s12, 0
    %p142 = por %p140, %p141
    %p143 = scmp.ne.s32.totalorder %s135, %s137
    %p144 = scmp.eq.s32.totalorder %s17, 1
    %p145 = por %p143, %p144
    %p146 = scmp.ne.s32.totalorder %s137, %s138
    %p147 = scmp.eq.s32.totalorder %s17, 0
    %p148 = por %p146, %p147
    %p149 = scmp.ne.s32.totalorder %s137, %s138
    %p150 = scmp.eq.s32.totalorder %s18, 1
    %p151 = por %p149, %p150
    %p153 = scmp.ne.s32.totalorder %s138, %s152
    %p154 = scmp.eq.s32.totalorder %s18, 0
    %p155 = por %p153, %p154
    %s156 = ssub.s32 %s12, %s19
    %p157 = scmp.eq.s32.totalorder %s156, 0
    %s159 = sadd.s32 %s158, 1
    %s160 = scalar_select %p157, %s158, %s159
    %p163 = pneg %p157
    %p164 = scmp.eq.s32.totalorder %s12, 1
    %p165 = por %p163, %p164
    %p166 = scmp.ne.s32.totalorder %s158, %s161
    %p167 = scmp.eq.s32.totalorder %s12, 0
    %p168 = por %p166, %p167
    %p169 = scmp.ne.s32.totalorder %s158, %s161
    %p170 = scmp.eq.s32.totalorder %s17, 1
    %p171 = por %p169, %p170
    %p172 = scmp.ne.s32.totalorder %s161, %s162
    %p173 = scmp.eq.s32.totalorder %s17, 0
    %p174 = por %p172, %p173
    %p175 = scmp.ne.s32.totalorder %s161, %s162
    %p176 = scmp.eq.s32.totalorder %s18, 1
    %p177 = por %p175, %p176
    %p179 = scmp.ne.s32.totalorder %s162, %s178
    %p180 = scmp.eq.s32.totalorder %s18, 0
    %p181 = por %p179, %p180
    %p182 = scmp.le.s32.totalorder 1, %s12
    %p183 = scmp.lt.s32.totalorder %s12, 3
    %p184 = pnand %p182, %p183
    %p185 = pneg %p184
    // Predicated region
    $region9: #{forward.14} parent=5 // pred_check
      _
    $region10: #{forward.14} parent=5 // pred_check_branch
      %187 = sbr.rel (%p184) target = $region12
    $region11: #{forward.14} parent=5 // pred_region
      %s188 = ssub.s32 %s12, 1
      // Predicated region
      $region13: #{forward.14} parent=11 // pred_check
        %p189 = pneg %p59
      $region14: #{forward.14} parent=11 // pred_check_branch
        %191 = sbr.rel (%p189) target = $region16
      $region15: #{forward.14} parent=11 // pred_region
        _
      $region16: #{forward.14} parent=11 // pred_fallthru
        _
      // Predicated region
      $region17: #{forward.14} parent=11 // pred_check
        %p192 = pneg %p80
      $region18: #{forward.14} parent=11 // pred_check_branch
        %194 = sbr.rel (%p192) target = $region20
      $region19: #{forward.14} parent=11 // pred_region
        _
      $region20: #{forward.14} parent=11 // pred_fallthru
        _
      // Predicated region
      $region21: #{forward.14} parent=11 // pred_check
        %p195 = pneg %p127
      $region22: #{forward.14} parent=11 // pred_check_branch
        %197 = sbr.rel (%p195) target = $region24
      $region23: #{forward.14} parent=11 // pred_region
        _
      $region24: #{forward.14} parent=11 // pred_fallthru
        _
      // Predicated region
      $region25: #{forward.14} parent=11 // pred_check
        %p198 = pneg %p148
      $region26: #{forward.14} parent=11 // pred_check_branch
        %200 = sbr.rel (%p198) target = $region28
      $region27: #{forward.14} parent=11 // pred_region
        _
      $region28: #{forward.14} parent=11 // pred_fallthru
        _
    $region12: #{forward.14} parent=5 // pred_fallthru
      _
    %p201 = scmp.lt.s32.totalorder %s12, 2
    // Predicated region
    $region29: #{forward.14} parent=5 // pred_check
      %p202 = pneg %p201
    $region30: #{forward.14} parent=5 // pred_check_branch
      %204 = sbr.rel (%p202) target = $region32
    $region31: #{forward.14} parent=5 // pred_region
      // Predicated region
      $region33: #{forward.14} parent=31 // pred_check
        %p205 = pneg %p32
      $region34: #{forward.14} parent=31 // pred_check_branch
        %207 = sbr.rel (%p205) target = $region36
      $region35: #{forward.14} parent=31 // pred_region
        %p208 = scmp.lt.s32.totalorder %s12, 1
        %s209 = scalar_select %p208, %s12, 1
        %s210 = smul.addr %s209, 10
        %s211 = smul.addr %s210, 4
        %s212 = scalar_lea.vmem %s0, %s211
      $region36: #{forward.14} parent=31 // pred_fallthru
        _
      // Predicated region
      $region37: #{forward.14} parent=31 // pred_check
        %p213 = pneg %p100
      $region38: #{forward.14} parent=31 // pred_check_branch
        %215 = sbr.rel (%p213) target = $region40
      $region39: #{forward.14} parent=31 // pred_region
        %p216 = scmp.lt.s32.totalorder %s12, 1
        %s217 = scalar_select %p216, %s12, 1
        %s218 = smul.addr %s217, 2
        %s219 = smul.addr %s218, 4
        %s220 = scalar_lea.vmem %s3, %s219
      $region40: #{forward.14} parent=31 // pred_fallthru
        _
    $region32: #{forward.14} parent=5 // pred_fallthru
      _
    %p221 = scmp.le.s32.totalorder 1, %s12
    %p222 = scmp.lt.s32.totalorder %s12, 3
    %p223 = pnand %p221, %p222
    %p224 = pneg %p223
    // Predicated region
    $region41: #{forward.14} parent=5 // pred_check
      _
    $region42: #{forward.14} parent=5 // pred_check_branch
      %226 = sbr.rel (%p223) target = $region44
    $region43: #{forward.14} parent=5 // pred_region
      %s227 = ssub.s32 %s12, 1
      %p228 = scmp.lt.s32.totalorder %s17, 1
      %s229 = scalar_select %p228, %s17, 1
      %s230 = smul.addr %s229, 10
      %s231 = smul.addr %s230, 4
      %s232 = scalar_lea.vmem %s0, %s231
      %p233 = pneg %p38
      %p234 = pneg %p35
      %p235 = pneg %p59
      %p236 = pneg %p56
      %p237 = pneg %p80
      %p238 = pneg %p77
      %p239 = scmp.lt.s32.totalorder %s17, 1
      %s240 = scalar_select %p239, %s17, 1
      %s241 = smul.addr %s240, 2
      %s242 = smul.addr %s241, 4
      %s243 = scalar_lea.vmem %s3, %s242
      %p244 = pneg %p106
      %p245 = pneg %p103
      %p246 = pneg %p127
      %p247 = pneg %p124
      %p248 = pneg %p148
      %p249 = pneg %p145
      %p250 = pneg %p174
      %p251 = pneg %p171
      %p252 = scmp.lt.s32.totalorder %s17, 1
      %s253 = scalar_select %p252, %s17, 1
      %s254 = smul.addr %s253, 2
      %s255 = smul.addr %s254, 4
      %s256 = scalar_lea.vmem %s6, %s255
      %p257 = scmp.lt.s32.totalorder %s17, 1
      %s258 = scalar_select %p257, %s17, 1
      %s259 = smul.addr %s258, 10
      %s260 = smul.addr %s259, 4
      %s261 = scalar_lea.vmem %s0, %s260
      %p262 = scmp.lt.s32.totalorder %s17, 1
      %s263 = scalar_select %p262, %s17, 1
      %s264 = smul.addr %s263, 2
      %s265 = smul.addr %s264, 4
      %s266 = scalar_lea.vmem %s3, %s265
      %p267 = scmp.lt.s32.totalorder %s17, 1
      %s268 = scalar_select %p267, %s17, 1
      %s269 = smul.addr %s268, 2
      %s270 = smul.addr %s269, 4
      %s271 = scalar_lea.vmem %s6, %s270
      %v273 = vld [vmem:[%s261] sm:$0xff]
      %v274 = vld [vmem:[%s261 + $0x8] sm:$0xff]
      %v275 = vld [vmem:[%s261 + $0x10] sm:$0xf]
      %v276 = vld [vmem:[%s261 + $0x14] sm:$0xff]
      %v277 = vld [vmem:[%s261 + $0x1c] sm:$0xff]
      %v278 = vld [vmem:[%s261 + $0x24] sm:$0xf]
      %v279 = vld [vmem:[%s1] sm:$0xf]
      %v280 = vld [vmem:[%s1 + $0x4] sm:$0xf]
      %v281 = vld [vmem:[%s1 + $0x8] sm:$0xf]
      %v282 = vld [vmem:[%s1 + $0xc] sm:$0xf]
      %v283 = vld [vmem:[%s1 + $0x10] sm:$0xf]
      %v284 = vld [vmem:[%s1 + $0x14] sm:$0xf]
      %v285 = vld [vmem:[%s1 + $0x18] sm:$0xf]
      %v286 = vld [vmem:[%s1 + $0x1c] sm:$0xf]
      %v287 = vld [vmem:[%s1 + $0x20] sm:$0xf]
      %v288 = vld [vmem:[%s1 + $0x24] sm:$0xf]
      %v289 = vld [vmem:[%s1 + $0x28] sm:$0xf]
      %v290 = vld [vmem:[%s1 + $0x2c] sm:$0xf]
      %v291 = vld [vmem:[%s1 + $0x30] sm:$0xf]
      %v292 = vld [vmem:[%s1 + $0x34] sm:$0xf]
      %v293 = vld [vmem:[%s1 + $0x38] sm:$0xf]
      %v294 = vld [vmem:[%s1 + $0x3c] sm:$0xf]
      %v295 = vld [vmem:[%s1 + $0x40] sm:$0xf]
      %v296 = vld [vmem:[%s1 + $0x44] sm:$0xf]
      %v297 = vld [vmem:[%s1 + $0x48] sm:$0xf]
      %v298 = vld [vmem:[%s1 + $0x4c] sm:$0xf]
      %v299 = vld [vmem:[%s1 + $0x50] sm:$0xf]
      %v300 = vld [vmem:[%s1 + $0x54] sm:$0xf]
      %v301 = vld [vmem:[%s1 + $0x58] sm:$0xf]
      %v302 = vld [vmem:[%s1 + $0x5c] sm:$0xf]
      %v303 = vld [vmem:[%s1 + $0x60] sm:$0xf]
      %v304 = vld [vmem:[%s1 + $0x64] sm:$0xf]
      %v305 = vld [vmem:[%s1 + $0x68] sm:$0xf]
      %v306 = vld [vmem:[%s1 + $0x6c] sm:$0xf]
      %v307 = vld [vmem:[%s1 + $0x70] sm:$0xf]
      %v308 = vld [vmem:[%s1 + $0x74] sm:$0xf]
      %v309 = vld [vmem:[%s1 + $0x78] sm:$0xf]
      %v310 = vld [vmem:[%s1 + $0x7c] sm:$0xf]
      %v311 = vld [vmem:[%s1 + $0x80] sm:$0xf]
      %v312 = vld [vmem:[%s1 + $0x84] sm:$0xf]
      %v313 = vld [vmem:[%s1 + $0x88] sm:$0xf]
      %v314 = vld [vmem:[%s1 + $0x8c] sm:$0xf]
      %v315 = vld [vmem:[%s1 + $0x90] sm:$0xf]
      %v316 = vld [vmem:[%s1 + $0x94] sm:$0xf]
      %v317 = vld [vmem:[%s1 + $0x98] sm:$0xf]
      %v318 = vld [vmem:[%s1 + $0x9c] sm:$0xf]
      %v319 = vld [vmem:[%s1 + $0xa0] sm:$0xf]
      %v320 = vld [vmem:[%s1 + $0xa4] sm:$0xf]
      %v321 = vld [vmem:[%s1 + $0xa8] sm:$0xf]
      %v322 = vld [vmem:[%s1 + $0xac] sm:$0xf]
      %v323 = vld [vmem:[%s1 + $0xb0] sm:$0xf]
      %v324 = vld [vmem:[%s1 + $0xb4] sm:$0xf]
      %v325 = vld [vmem:[%s1 + $0xb8] sm:$0xf]
      %v326 = vld [vmem:[%s1 + $0xbc] sm:$0xf]
      %v327 = vld [vmem:[%s1 + $0xc0] sm:$0xf]
      %v328 = vld [vmem:[%s1 + $0xc4] sm:$0xf]
      %v329 = vld [vmem:[%s1 + $0xc8] sm:$0xf]
      %v330 = vld [vmem:[%s1 + $0xcc] sm:$0xf]
      %v331 = vld [vmem:[%s1 + $0xd0] sm:$0xf]
      %v332 = vld [vmem:[%s1 + $0xd4] sm:$0xf]
      %v333 = vld [vmem:[%s1 + $0xd8] sm:$0xf]
      %v334 = vld [vmem:[%s1 + $0xdc] sm:$0xf]
      %v335 = vld [vmem:[%s1 + $0xe0] sm:$0xf]
      %v336 = vld [vmem:[%s1 + $0xe4] sm:$0xf]
      %v337 = vld [vmem:[%s1 + $0xe8] sm:$0xf]
      %v338 = vld [vmem:[%s1 + $0xec] sm:$0xf]
      %v339 = vld [vmem:[%s1 + $0xf0] sm:$0xf]
      %v340 = vld [vmem:[%s1 + $0xf4] sm:$0xf]
      %v341 = vld [vmem:[%s1 + $0xf8] sm:$0xf]
      %v342 = vld [vmem:[%s1 + $0xfc] sm:$0xf]
      %v343 = vld [vmem:[%s1 + $0x100] sm:$0xf]
      %v344 = vld [vmem:[%s1 + $0x104] sm:$0xf]
      %v345 = vld [vmem:[%s1 + $0x108] sm:$0xf]
      %v346 = vld [vmem:[%s1 + $0x10c] sm:$0xf]
      %v347 = vld [vmem:[%s1 + $0x110] sm:$0xf]
      %v348 = vld [vmem:[%s1 + $0x114] sm:$0xf]
      %v349 = vld [vmem:[%s1 + $0x118] sm:$0xf]
      %v350 = vld [vmem:[%s1 + $0x11c] sm:$0xf]
      %v351 = vld [vmem:[%s266] sm:$0xf]
      %v352 = vld [vmem:[%s266 + $0x4] sm:$0xf]
      %v353 = vld [vmem:[%s4] sm:$0xf]
      %v354 = vld [vmem:[%s4 + $0x4] sm:$0xf]
      %v355 = vld [vmem:[%s4 + $0x8] sm:$0xf]
      %v356 = vld [vmem:[%s4 + $0xc] sm:$0xf]
      %v359 = vunpack.c.l.b16 %v351
      %v360 = vunpack.c.l.b16 %v352
      %v361 = vpack.c.b16 %v360, %v359
      %v366 = vunpack.c.l.b16 %v353
      %v367 = vunpack.c.l.b16 %v354
      %v368 = vunpack.c.l.b16 %v355
      %v369 = vunpack.c.l.b16 %v356
      %v370 = vpack.c.b16 %v367, %v366
      %v371 = vpack.c.b16 %v369, %v368
      %vm374 = vcmask 261120
      %v376 = vsel %vm374, %v361, 0
      %378 = vmatprep.subr.bf16.mxu0 0
      %379 = vmatpush1.bf16.msra.mxu0 %v370
      %380 = vmatprep.subr.bf16.mxu0 0
      %381 = vmatpush1.bf16.msra.mxu0 %v371
      %382 = vmatprep.subr.bf16.mxu0 0
      %383 = vmatpush1.bf16.msra.mxu0 0
      %384 = vmatprep.subr.bf16.mxu0 0
      %385 = vmatpush1.bf16.msra.mxu0 0
      %386 = vmatprep.subr.bf16.mxu0 0
      %387 = vmatpush1.bf16.msra.mxu0 0
      %388 = vmatprep.subr.bf16.mxu0 0
      %389 = vmatpush1.bf16.msra.mxu0 0
      %390 = vmatprep.subr.bf16.mxu0 0
      %391 = vmatpush1.bf16.msra.mxu0 0
      %392 = vmatprep.subr.bf16.mxu0 0
      %393 = vmatpush1.bf16.msra.mxu0 0
      %394 = vmatprep.subr.bf16.mxu0 0
      %395 = vmatpush1.bf16.msra.mxu0 0
      %396 = vmatprep.subr.bf16.mxu0 0
      %397 = vmatpush1.bf16.msra.mxu0 0
      %398 = vmatprep.subr.bf16.mxu0 0
      %399 = vmatpush1.bf16.msra.mxu0 0
      %400 = vmatprep.subr.bf16.mxu0 0
      %401 = vmatpush1.bf16.msra.mxu0 0
      %402 = vmatprep.subr.bf16.mxu0 0
      %403 = vmatpush1.bf16.msra.mxu0 0
      %404 = vmatprep.subr.bf16.mxu0 0
      %405 = vmatpush1.bf16.msra.mxu0 0
      %406 = vmatprep.subr.bf16.mxu0 0
      %407 = vmatpush1.bf16.msra.mxu0 0
      %408 = vmatprep.subr.bf16.mxu0 0
      %409 = vmatpush1.bf16.msra.mxu0 0
      %410 = vmatprep.mubr.bf16.mxu0 0
      %411 = vmatmul.mubr.bf16.gmra.mrb[0].mxu0 %v376
      %v412 = vpop.f32.mrb[0].mxu0
      %v413 = vadd.f32 0.0, %v412
      %v414 = vpop.f32.mrb[0].mxu0
      %v415 = vpop.f32.mrb[0].mxu0
      %v416 = vadd.f32 0.0, %v415
      %v417 = vpop.f32.mrb[0].mxu0
      %418 = vdwg.mxu0
      %v419 = vld [vmem:[%s2] sm:$0x1]
      %v421 = vlaneseq
      %v422 = vshrl.u32 %v421, 7
      %v423 = vsub.s32 0, %v422
      %v424 = vrot.slane %v419, %v423
      %v432 = vunpack.c.l.b16 %v273
      %v433 = vunpack.c.h.b16 %v273
      %v434 = vunpack.c.l.b16 %v274
      %v435 = vunpack.c.h.b16 %v274
      %v436 = vunpack.c.l.b16 %v275
      %v437 = vunpack.c.l.b16 %v276
      %v438 = vunpack.c.h.b16 %v276
      %v439 = vunpack.c.l.b16 %v277
      %v440 = vunpack.c.h.b16 %v277
      %v441 = vunpack.c.l.b16 %v278
      %v442 = vpack.c.b16 %v437, %v432
      %v443 = vpack.c.b16 %v438, %v433
      %v444 = vpack.c.b16 %v439, %v434
      %v445 = vpack.c.b16 %v440, %v435
      %v446 = vpack.c.b16 %v441, %v436
      %v523 = vunpack.c.l.b16 %v279
      %v524 = vunpack.c.l.b16 %v280
      %v525 = vunpack.c.l.b16 %v281
      %v526 = vunpack.c.l.b16 %v282
      %v527 = vunpack.c.l.b16 %v283
      %v528 = vunpack.c.l.b16 %v284
      %v529 = vunpack.c.l.b16 %v285
      %v530 = vunpack.c.l.b16 %v286
      %v531 = vunpack.c.l.b16 %v287
      %v532 = vunpack.c.l.b16 %v288
      %v533 = vunpack.c.l.b16 %v289
      %v534 = vunpack.c.l.b16 %v290
      %v535 = vunpack.c.l.b16 %v291
      %v536 = vunpack.c.l.b16 %v292
      %v537 = vunpack.c.l.b16 %v293
      %v538 = vunpack.c.l.b16 %v294
      %v539 = vunpack.c.l.b16 %v295
      %v540 = vunpack.c.l.b16 %v296
      %v541 = vunpack.c.l.b16 %v297
      %v542 = vunpack.c.l.b16 %v298
      %v543 = vunpack.c.l.b16 %v299
      %v544 = vunpack.c.l.b16 %v300
      %v545 = vunpack.c.l.b16 %v301
      %v546 = vunpack.c.l.b16 %v302
      %v547 = vunpack.c.l.b16 %v303
      %v548 = vunpack.c.l.b16 %v304
      %v549 = vunpack.c.l.b16 %v305
      %v550 = vunpack.c.l.b16 %v306
      %v551 = vunpack.c.l.b16 %v307
      %v552 = vunpack.c.l.b16 %v308
      %v553 = vunpack.c.l.b16 %v309
      %v554 = vunpack.c.l.b16 %v310
      %v555 = vunpack.c.l.b16 %v311
      %v556 = vunpack.c.l.b16 %v312
      %v557 = vunpack.c.l.b16 %v313
      %v558 = vunpack.c.l.b16 %v314
      %v559 = vunpack.c.l.b16 %v315
      %v560 = vunpack.c.l.b16 %v316
      %v561 = vunpack.c.l.b16 %v317
      %v562 = vunpack.c.l.b16 %v318
      %v563 = vunpack.c.l.b16 %v319
      %v564 = vunpack.c.l.b16 %v320
      %v565 = vunpack.c.l.b16 %v321
      %v566 = vunpack.c.l.b16 %v322
      %v567 = vunpack.c.l.b16 %v323
      %v568 = vunpack.c.l.b16 %v324
      %v569 = vunpack.c.l.b16 %v325
      %v570 = vunpack.c.l.b16 %v326
      %v571 = vunpack.c.l.b16 %v327
      %v572 = vunpack.c.l.b16 %v328
      %v573 = vunpack.c.l.b16 %v329
      %v574 = vunpack.c.l.b16 %v330
      %v575 = vunpack.c.l.b16 %v331
      %v576 = vunpack.c.l.b16 %v332
      %v577 = vunpack.c.l.b16 %v333
      %v578 = vunpack.c.l.b16 %v334
      %v579 = vunpack.c.l.b16 %v335
      %v580 = vunpack.c.l.b16 %v336
      %v581 = vunpack.c.l.b16 %v337
      %v582 = vunpack.c.l.b16 %v338
      %v583 = vunpack.c.l.b16 %v339
      %v584 = vunpack.c.l.b16 %v340
      %v585 = vunpack.c.l.b16 %v341
      %v586 = vunpack.c.l.b16 %v342
      %v587 = vunpack.c.l.b16 %v343
      %v588 = vunpack.c.l.b16 %v344
      %v589 = vunpack.c.l.b16 %v345
      %v590 = vunpack.c.l.b16 %v346
      %v591 = vunpack.c.l.b16 %v347
      %v592 = vunpack.c.l.b16 %v348
      %v593 = vunpack.c.l.b16 %v349
      %v594 = vunpack.c.l.b16 %v350
      %v595 = vpack.c.b16 %v524, %v523
      %v596 = vpack.c.b16 %v526, %v525
      %v597 = vpack.c.b16 %v528, %v527
      %v598 = vpack.c.b16 %v530, %v529
      %v599 = vpack.c.b16 %v532, %v531
      %v600 = vpack.c.b16 %v534, %v533
      %v601 = vpack.c.b16 %v536, %v535
      %v602 = vpack.c.b16 %v538, %v537
      %v603 = vpack.c.b16 %v540, %v539
      %v604 = vpack.c.b16 %v542, %v541
      %v605 = vpack.c.b16 %v544, %v543
      %v606 = vpack.c.b16 %v546, %v545
      %v607 = vpack.c.b16 %v548, %v547
      %v608 = vpack.c.b16 %v550, %v549
      %v609 = vpack.c.b16 %v552, %v551
      %v610 = vpack.c.b16 %v554, %v553
      %v611 = vpack.c.b16 %v556, %v555
      %v612 = vpack.c.b16 %v558, %v557
      %v613 = vpack.c.b16 %v560, %v559
      %v614 = vpack.c.b16 %v562, %v561
      %v615 = vpack.c.b16 %v564, %v563
      %v616 = vpack.c.b16 %v566, %v565
      %v617 = vpack.c.b16 %v568, %v567
      %v618 = vpack.c.b16 %v570, %v569
      %v619 = vpack.c.b16 %v572, %v571
      %v620 = vpack.c.b16 %v574, %v573
      %v621 = vpack.c.b16 %v576, %v575
      %v622 = vpack.c.b16 %v578, %v577
      %v623 = vpack.c.b16 %v580, %v579
      %v624 = vpack.c.b16 %v582, %v581
      %v625 = vpack.c.b16 %v584, %v583
      %v626 = vpack.c.b16 %v586, %v585
      %v627 = vpack.c.b16 %v588, %v587
      %v628 = vpack.c.b16 %v590, %v589
      %v629 = vpack.c.b16 %v592, %v591
      %v630 = vpack.c.b16 %v594, %v593
      %vm667 = vcmask 523264
      %v669 = vsel %vm667, %v446, 0
      %671 = vmatprep.subr.bf16.mxu0 0
      %672 = vmatpush1.bf16.msra.mxu0 %v595
      %673 = vmatprep.subr.bf16.mxu0 0
      %674 = vmatpush1.bf16.msra.mxu0 %v596
      %675 = vmatprep.subr.bf16.mxu0 0
      %676 = vmatpush1.bf16.msra.mxu0 %v597
      %677 = vmatprep.subr.bf16.mxu0 0
      %678 = vmatpush1.bf16.msra.mxu0 %v598
      %679 = vmatprep.subr.bf16.mxu0 0
      %680 = vmatpush1.bf16.msra.mxu0 %v599
      %681 = vmatprep.subr.bf16.mxu0 0
      %682 = vmatpush1.bf16.msra.mxu0 %v600
      %683 = vmatprep.subr.bf16.mxu0 0
      %684 = vmatpush1.bf16.msra.mxu0 %v601
      %685 = vmatprep.subr.bf16.mxu0 0
      %686 = vmatpush1.bf16.msra.mxu0 %v602
      %687 = vmatprep.subr.bf16.mxu0 0
      %688 = vmatpush1.bf16.msra.mxu0 %v603
      %689 = vmatprep.subr.bf16.mxu0 0
      %690 = vmatpush1.bf16.msra.mxu0 %v604
      %691 = vmatprep.subr.bf16.mxu0 0
      %692 = vmatpush1.bf16.msra.mxu0 %v605
      %693 = vmatprep.subr.bf16.mxu0 0
      %694 = vmatpush1.bf16.msra.mxu0 %v606
      %695 = vmatprep.subr.bf16.mxu0 0
      %696 = vmatpush1.bf16.msra.mxu0 %v607
      %697 = vmatprep.subr.bf16.mxu0 0
      %698 = vmatpush1.bf16.msra.mxu0 %v608
      %699 = vmatprep.subr.bf16.mxu0 0
      %700 = vmatpush1.bf16.msra.mxu0 %v609
      %701 = vmatprep.subr.bf16.mxu0 0
      %702 = vmatpush1.bf16.msra.mxu0 %v610
      %703 = vmatprep.mubr.bf16.mxu0 %v443
      %704 = vmatmul.mubr.bf16.gmra.mrb[0].mxu0 %v442
      %v705 = vpop.f32.mrb[0].mxu0
      %v706 = vadd.f32 %v424, %v705
      %v707 = vpop.f32.mrb[0].mxu0
      %v708 = vpop.f32.mrb[0].mxu0
      %v709 = vadd.f32 %v424, %v708
      %v710 = vpop.f32.mrb[0].mxu0
      %711 = vdwg.mxu0
      %712 = vmatprep.subr.bf16.mxu0 0
      %713 = vmatpush1.bf16.msra.mxu0 %v611
      %714 = vmatprep.subr.bf16.mxu0 0
      %715 = vmatpush1.bf16.msra.mxu0 %v612
      %716 = vmatprep.subr.bf16.mxu0 0
      %717 = vmatpush1.bf16.msra.mxu0 %v613
      %718 = vmatprep.subr.bf16.mxu0 0
      %719 = vmatpush1.bf16.msra.mxu0 %v614
      %720 = vmatprep.subr.bf16.mxu0 0
      %721 = vmatpush1.bf16.msra.mxu0 %v615
      %722 = vmatprep.subr.bf16.mxu0 0
      %723 = vmatpush1.bf16.msra.mxu0 %v616
      %724 = vmatprep.subr.bf16.mxu0 0
      %725 = vmatpush1.bf16.msra.mxu0 %v617
      %726 = vmatprep.subr.bf16.mxu0 0
      %727 = vmatpush1.bf16.msra.mxu0 %v618
      %728 = vmatprep.subr.bf16.mxu0 0
      %729 = vmatpush1.bf16.msra.mxu0 %v619
      %730 = vmatprep.subr.bf16.mxu0 0
      %731 = vmatpush1.bf16.msra.mxu0 %v620
      %732 = vmatprep.subr.bf16.mxu0 0
      %733 = vmatpush1.bf16.msra.mxu0 %v621
      %734 = vmatprep.subr.bf16.mxu0 0
      %735 = vmatpush1.bf16.msra.mxu0 %v622
      %736 = vmatprep.subr.bf16.mxu0 0
      %737 = vmatpush1.bf16.msra.mxu0 %v623
      %738 = vmatprep.subr.bf16.mxu0 0
      %739 = vmatpush1.bf16.msra.mxu0 %v624
      %740 = vmatprep.subr.bf16.mxu0 0
      %741 = vmatpush1.bf16.msra.mxu0 %v625
      %742 = vmatprep.subr.bf16.mxu0 0
      %743 = vmatpush1.bf16.msra.mxu0 %v626
      %744 = vmatprep.mubr.bf16.mxu0 %v445
      %745 = vmatmul.mubr.bf16.gmra.mrb[0].mxu0 %v444
      %v746 = vpop.f32.mrb[0].mxu0
      %v747 = vadd.f32 %v706, %v746
      %v748 = vpop.f32.mrb[0].mxu0
      %v749 = vpop.f32.mrb[0].mxu0
      %v750 = vadd.f32 %v709, %v749
      %v751 = vpop.f32.mrb[0].mxu0
      %752 = vdwg.mxu0
      %753 = vmatprep.subr.bf16.mxu0 0
      %754 = vmatpush1.bf16.msra.mxu0 %v627
      %755 = vmatprep.subr.bf16.mxu0 0
      %756 = vmatpush1.bf16.msra.mxu0 %v628
      %757 = vmatprep.subr.bf16.mxu0 0
      %758 = vmatpush1.bf16.msra.mxu0 %v629
      %759 = vmatprep.subr.bf16.mxu0 0
      %760 = vmatpush1.bf16.msra.mxu0 %v630
      %761 = vmatprep.subr.bf16.mxu0 0
      %762 = vmatpush1.bf16.msra.mxu0 0
      %763 = vmatprep.subr.bf16.mxu0 0
      %764 = vmatpush1.bf16.msra.mxu0 0
      %765 = vmatprep.subr.bf16.mxu0 0
      %766 = vmatpush1.bf16.msra.mxu0 0
      %767 = vmatprep.subr.bf16.mxu0 0
      %768 = vmatpush1.bf16.msra.mxu0 0
      %769 = vmatprep.subr.bf16.mxu0 0
      %770 = vmatpush1.bf16.msra.mxu0 0
      %771 = vmatprep.subr.bf16.mxu0 0
      %772 = vmatpush1.bf16.msra.mxu0 0
      %773 = vmatprep.subr.bf16.mxu0 0
      %774 = vmatpush1.bf16.msra.mxu0 0
      %775 = vmatprep.subr.bf16.mxu0 0
      %776 = vmatpush1.bf16.msra.mxu0 0
      %777 = vmatprep.subr.bf16.mxu0 0
      %778 = vmatpush1.bf16.msra.mxu0 0
      %779 = vmatprep.subr.bf16.mxu0 0
      %780 = vmatpush1.bf16.msra.mxu0 0
      %781 = vmatprep.subr.bf16.mxu0 0
      %782 = vmatpush1.bf16.msra.mxu0 0
      %783 = vmatprep.subr.bf16.mxu0 0
      %784 = vmatpush1.bf16.msra.mxu0 0
      %785 = vmatprep.mubr.bf16.mxu0 0
      %786 = vmatmul.mubr.bf16.gmra.mrb[0].mxu0 %v669
      %v787 = vpop.f32.mrb[0].mxu0
      %v788 = vadd.f32 %v747, %v787
      %v789 = vpop.f32.mrb[0].mxu0
      %v790 = vpop.f32.mrb[0].mxu0
      %v791 = vadd.f32 %v750, %v790
      %v792 = vpop.f32.mrb[0].mxu0
      %793 = vdwg.mxu0
      %v794 = vadd.f32 %v788, %v413
      %v795 = vadd.f32 %v791, %v416
      %v796 = vld [vmem:[%s5] sm:$0x1]
      %v798 = vlaneseq
      %v799 = vshrl.u32 %v798, 7
      %v800 = vsub.s32 0, %v799
      %v801 = vrot.slane %v796, %v800
      %v803 = vadd.f32 %v794, %v801
      %v804 = vadd.f32 %v795, %v801
      %v805 = vmax.f32 %v803, 0.0
      %v806 = vmax.f32 %v804, 0.0
      %v807 = vpack.c.bf16 %v806, %v805
      %v809 = vunpack.c.l.b16 %v807
      %v810 = vunpack.c.h.b16 %v807
      %v811 = vpack.c.b16 %v809, %v809
      %v812 = vpack.c.b16 %v810, %v810
      %vm815 = vcmask 519168
      %816 = vst.msk [vmem:[%s271] sm:$0xf] %vm815, %v811
      %817 = vst.msk [vmem:[%s271 + $0x4] sm:$0xf] %vm815, %v812
      %p818 = scmp.lt.s32.totalorder %s17, 1
      %s819 = scalar_select %p818, %s17, 1
      %s820 = smul.addr %s819, 2
      %s821 = smul.addr %s820, 4
      %s822 = scalar_lea.vmem %s6, %s821
      // Predicated region
      $region45: #{forward.14} parent=43 // pred_check
        %p823 = pneg %p171
      $region46: #{forward.14} parent=43 // pred_check_branch
        %825 = sbr.rel (%p823) target = $region48
      $region47: #{forward.14} parent=43 // pred_region
        _
      $region48: #{forward.14} parent=43 // pred_fallthru
        _
    $region44: #{forward.14} parent=5 // pred_fallthru
      _
    %p826 = scmp.le.s32.totalorder 2, %s12
    // Predicated region
    $region49: #{forward.14} parent=5 // pred_check
      %p827 = pneg %p826
    $region50: #{forward.14} parent=5 // pred_check_branch
      %829 = sbr.rel (%p827) target = $region52
    $region51: #{forward.14} parent=5 // pred_region
      %s830 = ssub.s32 %s12, 2
      // Predicated region
      $region53: #{forward.14} parent=51 // pred_check
        %p831 = pneg %p177
      $region54: #{forward.14} parent=51 // pred_check_branch
        %833 = sbr.rel (%p831) target = $region56
      $region55: #{forward.14} parent=51 // pred_region
        %p834 = scmp.lt.s32.totalorder %s18, 1
        %s835 = scalar_select %p834, %s18, 1
        %s836 = smul.addr %s835, 2
        %s837 = smul.addr %s836, 4
        %s838 = scalar_lea.vmem %s6, %s837
      $region56: #{forward.14} parent=51 // pred_fallthru
        _
    $region52: #{forward.14} parent=5 // pred_fallthru
      _
  $region6: #{forward.14} parent=0 // loop_footer
    %s16 = sadd.s32 1, %s12
  $region7: #{forward.14} parent=0 // loop_footer_branch
    %11 = sbr.rel target = $region3
  $region8: #{forward.14} parent=0 // loop_exit
    _

</llo_original>
